<compile_context>
chip_gen: v5e
topology: v5e:2x2
jax: 0.10.0
libtpu: 0.0.40
codegen_flags: <defaults>
</compile_context>

<pallas_src>
import functools

import jax
import jax.numpy as jnp
from jax.experimental import pallas as pl
from jax.experimental.pallas import tpu as pltpu


def _swish(h, beta):
    # x * sigmoid(beta*x) == 0.5 * x * (tanh(0.5*beta*x) + 1)  (exact identity)
    # tanh = 1 EUP push per vreg vs exp + reciprocal = 2 for sigmoid.
    return 0.5 * h * (jnp.tanh(0.5 * beta * h) + 1.0)


def toy_mlp_kernel(xT_ref, w2_ref, w3_ref, p_ref, o_ref, *, compute_dtype):
    """Fused (Linear+Swish) x2 + Linear on one lane-dense column tile.

    xT_ref: (d_in, TN)   input tile, features on sublanes, batch on lanes
    w2_ref: (H, H)       layer-2 weight, bf16 (torch layout: out x in)
    w3_ref: (d_out, H)   layer-3 weight, bf16 (torch layout: out x in)
    p_ref : (H, d_in+5)  packed small params (W1 | b1 | beta1 | b2 | beta2 | b3)
    o_ref : (d_out, TN)  output tile
    """
    d_in = xT_ref.shape[0]
    d_out = o_ref.shape[0]

    x = xT_ref[...].astype(compute_dtype)                     # (d_in, TN)

    # unpack the small-parameter slab (static lane slices — free)
    c = 0
    w1 = p_ref[:, c:c + d_in].astype(compute_dtype); c += d_in   # (H, d_in)
    b1 = p_ref[:, c:c + 1].astype(compute_dtype); c += 1         # (H, 1)
    beta1 = p_ref[:, c:c + 1].astype(compute_dtype); c += 1      # (H, 1)
    b2 = p_ref[:, c:c + 1]; c += 1                                # (H, 1)  f32, added post-MXU
    beta2 = p_ref[:, c:c + 1].astype(compute_dtype); c += 1      # (H, 1)
    b3 = p_ref[0:d_out, c:c + 1]                                  # (d_out, 1) f32

    # ---- layer 1: Linear(d_in -> H) + Swish.  K = d_in(=2) is too small for
    # the MXU -> VPU broadcast FMAs, bias folded into the chain. ----
    h = b1
    for k in range(d_in):                                      # static unroll (d_in=2)
        h = h + w1[:, k:k + 1] * x[k:k + 1, :]                  # (H, TN)
    h = _swish(h, beta1)

    # ---- layer 2: Linear(H -> H) + Swish.  bf16 MXU operands, f32 accumulate. ----
    h = jnp.dot(w2_ref[...], h.astype(jnp.bfloat16),
                preferred_element_type=jnp.float32) + b2        # (H, TN) f32
    h = _swish(h.astype(compute_dtype), beta2)

    # ---- layer 3: Linear(H -> d_out) also on the (otherwise idle) MXU. ----
    out = jnp.dot(w3_ref[...], h.astype(jnp.bfloat16),
                  preferred_element_type=jnp.float32) + b3      # (d_out, TN) f32
    o_ref[...] = out.astype(o_ref.dtype)


def toy_mlp_forward(x, params, *, tile_n=8192, io_dtype=None,
                    compute_dtype=jnp.float32):
    """Apply ToyMLP to x of shape (..., d_in); returns array of shape x.shape.

    io_dtype:      HBM storage dtype at the kernel boundary (jnp.bfloat16 halves
                   DMA + wrapper-transpose traffic; input rounding only).
                   Defaults to x.dtype (accuracy-safe).
    compute_dtype: dtype of the (32, TN) elementwise chain.  f32 is safe on all
                   chips; jnp.bfloat16 roughly halves VPU/EUP vreg ops on
                   v6e/v7x (do NOT use on v5e — its VPU/EUP have no bf16).
    """
    (w1, b1, beta1, w2, b2, beta2, w3, b3) = params            # torch layout (out, in)
    h1, d_in = w1.shape
    h2 = w2.shape[0]
    d_out = w3.shape[0]
    assert h1 == h2, "parameter packing assumes equal hidden sizes"
    assert x.shape[-1] == d_in and d_out == d_in, "module reshape needs d_out == d_in"

    io_dtype = x.dtype if io_dtype is None else io_dtype

    # pack the 6 tiny vector params into one (H, d_in + 5) slab
    ncol = d_in + 5
    p_small = jnp.zeros((h1, ncol), jnp.float32)
    c = 0
    p_small = p_small.at[:, c:c + d_in].set(w1); c += d_in
    p_small = p_small.at[:, c].set(b1); c += 1
    p_small = p_small.at[:, c].set(beta1); c += 1
    p_small = p_small.at[:, c].set(b2); c += 1
    p_small = p_small.at[:, c].set(beta2); c += 1
    p_small = p_small.at[:d_out, c].set(b3)

    # MXU is bf16-native on v5e/v6e/v7x: ship matmul operands as bf16 once.
    w2_mxu = w2.astype(jnp.bfloat16)
    w3_mxu = w3.astype(jnp.bfloat16)

    orig_shape = x.shape
    x2d = x.reshape(-1, d_in)                                  # (N, d_in)
    n = x2d.shape[0]
    n_blocks = pl.cdiv(n, tile_n)
    n_pad = n_blocks * tile_n

    # lane-dense layout: batch on the lane axis.  Cast to io_dtype BEFORE the
    # transpose so the wrapper-side transpose HBM pass moves io_dtype bytes.
    # TODO(synk): for very large N, deinterleave the natural (N, d_in) layout
    # inside the kernel instead to drop this wrapper transpose pass entirely.
    xT = x2d.astype(io_dtype).T                                # (d_in, N)
    if n_pad != n:
        xT = jnp.pad(xT, ((0, 0), (0, n_pad - n)))

    io_bytes = jnp.dtype(io_dtype).itemsize
    cost = pl.CostEstimate(
        flops=int((2 * h1 * (d_in + h2 + d_out) + 12 * h1) * n_pad),
        transcendentals=int(2 * h1 * n_pad),
        bytes_accessed=int((d_in + d_out) * n_pad * io_bytes
                           + 2 * (w2_mxu.size + w3_mxu.size) + 4 * p_small.size))

    kernel = functools.partial(toy_mlp_kernel, compute_dtype=compute_dtype)

    outT = pl.pallas_call(
        kernel,
        out_shape=jax.ShapeDtypeStruct((d_out, n_pad), io_dtype),
        grid_spec=pltpu.PrefetchScalarGridSpec(
            num_scalar_prefetch=0,
            grid=(n_blocks,),
            in_specs=[
                pl.BlockSpec((d_in, tile_n), lambda i: (0, i)),     # x^T column tile
                pl.BlockSpec(w2_mxu.shape, lambda i: (0, 0)),       # resident W2 (bf16)
                pl.BlockSpec(w3_mxu.shape, lambda i: (0, 0)),       # resident W3 (bf16)
                pl.BlockSpec(p_small.shape, lambda i: (0, 0)),      # resident small params
            ],
            out_specs=pl.BlockSpec((d_out, tile_n), lambda i: (0, i)),
        ),
        compiler_params=pltpu.CompilerParams(
            dimension_semantics=("parallel",)),                     # megacore-shardable
        cost_estimate=cost,
    )(xT, w2_mxu, w3_mxu, p_small)

    out2d = outT[:, :n].T                                      # (N, d_out)
    return out2d.reshape(orig_shape)


def init_params(key, input_dim=2, output_dim=2, units=(32, 32)):
    """Deterministic init matching ToyMLP layer shapes (torch Linear layout:
    W is (out, in), b is (out,)).  Swish beta initialised to ones."""
    dims = [input_dim] + list(units) + [output_dim]
    keys = jax.random.split(key, 2 * (len(dims) - 1))
    params = []
    ki = 0
    for li in range(len(dims) - 1):
        fan_in, fan_out = dims[li], dims[li + 1]
        bound = 1.0 / jnp.sqrt(fan_in)
        w = jax.random.uniform(keys[ki], (fan_out, fan_in), jnp.float32, -bound, bound); ki += 1
        b = jax.random.uniform(keys[ki], (fan_out,), jnp.float32, -bound, bound); ki += 1
        params.extend([w, b])
        if li < len(dims) - 2:
            params.append(jnp.ones((fan_out,), jnp.float32))        # Swish beta
    return tuple(params)


def reference_forward(x, params):
    """Pure-JAX reference of the same forward (torch convention y = x @ W^T + b)."""
    (w1, b1, beta1, w2, b2, beta2, w3, b3) = params
    shape = x.shape
    h = x.reshape(-1, shape[-1])
    h1 = h @ w1.T + b1
    h1 = h1 * jax.nn.sigmoid(beta1 * h1)
    h2 = h1 @ w2.T + b2
    h2 = h2 * jax.nn.sigmoid(beta2 * h2)
    out = h2 @ w3.T + b3
    return out.reshape(shape)


if __name__ == "__main__":
    key = jax.random.PRNGKey(0)
    k_param, k_x, k_xb = jax.random.split(key, 3)

    INPUT_DIM = 2
    OUTPUT_DIM = 2      # must equal INPUT_DIM for the module's reshape(*shape) to be valid
    UNITS = (32, 32)

    params = init_params(k_param, INPUT_DIM, OUTPUT_DIM, UNITS)

    # small input: batch=2, seq=4, feature=2 -> 8 rows, padded to one lane tile
    x = jax.random.normal(k_x, (2, 4, INPUT_DIM), dtype=jnp.float32)
    out = jax.block_until_ready(toy_mlp_forward(x, params))
    ref = reference_forward(x, params)
    assert out.shape == x.shape
    # bf16 MXU operands (f32 accumulate) -> small deviation from pure-f32 reference
    assert jnp.allclose(out, ref, atol=3e-2, rtol=3e-2), "f32-io mismatch vs JAX reference"

    # larger input exercising multiple grid blocks (16384 rows = 2 x tile_n)
    xb = jax.random.normal(k_xb, (4, 4096, INPUT_DIM), dtype=jnp.float32)
    outb = jax.block_until_ready(toy_mlp_forward(xb, params))
    refb = reference_forward(xb, params)
    assert outb.shape == xb.shape
    assert jnp.allclose(outb, refb, atol=3e-2, rtol=3e-2), "multi-block mismatch vs reference"

    # bf16 HBM I/O path (halved boundary DMA / transpose traffic; compute stays f32)
    out_bf16 = jax.block_until_ready(
        toy_mlp_forward(x, params, io_dtype=jnp.bfloat16))
    ref_bf16 = reference_forward(x.astype(jnp.bfloat16).astype(jnp.float32), params)
    assert jnp.allclose(out_bf16.astype(jnp.float32), ref_bf16, atol=3e-2, rtol=3e-2), \
        "bf16-io mismatch vs JAX reference"

    print("KERNEL_OK")
</pallas_src>

<mosaic_0001>
module attributes {stable_mosaic.version = 11 : i64} {
  func.func @toy_mlp_kernel(%arg0: i32, %arg1: memref<2x8192xf32, #tpu.memory_space<vmem>>, %arg2: memref<32x32xbf16, #tpu.memory_space<vmem>>, %arg3: memref<2x32xbf16, #tpu.memory_space<vmem>>, %arg4: memref<32x7xf32, #tpu.memory_space<vmem>>, %arg5: memref<2x8192xf32, #tpu.memory_space<vmem>>) attributes {dimension_semantics = [#tpu.dimension_semantics<parallel>], iteration_bounds = array<i64: 1>, scalar_prefetch = 0 : i64, scratch_operands = 0 : i64, tpu.core_type = #tpu.core_type<tc>, window_params = [{transform_indices = @transform_0, window_bounds = array<i64: 2, 8192>}, {pipeline_mode = #tpu.pipeline_mode<synchronous>, transform_indices = @transform_1, window_bounds = array<i64: 32, 32>}, {pipeline_mode = #tpu.pipeline_mode<synchronous>, transform_indices = @transform_2, window_bounds = array<i64: 2, 32>}, {pipeline_mode = #tpu.pipeline_mode<synchronous>, transform_indices = @transform_3, window_bounds = array<i64: 32, 7>}, {transform_indices = @transform_4, window_bounds = array<i64: 2, 8192>}]} {
    %c0 = arith.constant 0 : index
    %c0_0 = arith.constant 0 : index
    %0 = vector.load %arg1[%c0, %c0_0] : memref<2x8192xf32, #tpu.memory_space<vmem>>, vector<2x8192xf32>
    %c0_1 = arith.constant 0 : index
    %c0_2 = arith.constant 0 : index
    %1 = vector.load %arg4[%c0_1, %c0_2] : memref<32x7xf32, #tpu.memory_space<vmem>>, vector<32x2xf32>
    %c0_3 = arith.constant 0 : index
    %c2 = arith.constant 2 : index
    %2 = vector.load %arg4[%c0_3, %c2] : memref<32x7xf32, #tpu.memory_space<vmem>>, vector<32x1xf32>
    %c0_4 = arith.constant 0 : index
    %c3 = arith.constant 3 : index
    %3 = vector.load %arg4[%c0_4, %c3] : memref<32x7xf32, #tpu.memory_space<vmem>>, vector<32x1xf32>
    %c0_5 = arith.constant 0 : index
    %c4 = arith.constant 4 : index
    %4 = vector.load %arg4[%c0_5, %c4] : memref<32x7xf32, #tpu.memory_space<vmem>>, vector<32x1xf32>
    %c0_6 = arith.constant 0 : index
    %c5 = arith.constant 5 : index
    %5 = vector.load %arg4[%c0_6, %c5] : memref<32x7xf32, #tpu.memory_space<vmem>>, vector<32x1xf32>
    %c0_7 = arith.constant 0 : index
    %c6 = arith.constant 6 : index
    %6 = vector.load %arg4[%c0_7, %c6] : memref<32x7xf32, #tpu.memory_space<vmem>>, vector<2x1xf32>
    %7 = vector.extract_strided_slice %1 {offsets = [0, 0], sizes = [32, 1], strides = [1, 1]} : vector<32x2xf32> to vector<32x1xf32>
    %8 = vector.extract_strided_slice %0 {offsets = [0, 0], sizes = [1, 8192], strides = [1, 1]} : vector<2x8192xf32> to vector<1x8192xf32>
    %9 = vector.broadcast %7 : vector<32x1xf32> to vector<32x8192xf32>
    %10 = vector.broadcast %8 : vector<1x8192xf32> to vector<32x8192xf32>
    %11 = arith.mulf %9, %10 : vector<32x8192xf32>
    %12 = vector.broadcast %2 : vector<32x1xf32> to vector<32x8192xf32>
    %13 = arith.addf %12, %11 : vector<32x8192xf32>
    %14 = vector.extract_strided_slice %1 {offsets = [0, 1], sizes = [32, 1], strides = [1, 1]} : vector<32x2xf32> to vector<32x1xf32>
    %15 = vector.extract_strided_slice %0 {offsets = [1, 0], sizes = [1, 8192], strides = [1, 1]} : vector<2x8192xf32> to vector<1x8192xf32>
    %16 = vector.broadcast %14 : vector<32x1xf32> to vector<32x8192xf32>
    %17 = vector.broadcast %15 : vector<1x8192xf32> to vector<32x8192xf32>
    %18 = arith.mulf %16, %17 : vector<32x8192xf32>
    %19 = arith.addf %13, %18 : vector<32x8192xf32>
    %cst = arith.constant 5.000000e-01 : f32
    %20 = vector.broadcast %cst : f32 to vector<32x8192xf32>
    %21 = arith.mulf %20, %19 : vector<32x8192xf32>
    %cst_8 = arith.constant 5.000000e-01 : f32
    %22 = vector.broadcast %cst_8 : f32 to vector<32x1xf32>
    %23 = arith.mulf %22, %3 : vector<32x1xf32>
    %24 = vector.broadcast %23 : vector<32x1xf32> to vector<32x8192xf32>
    %25 = arith.mulf %24, %19 : vector<32x8192xf32>
    %26 = math.tanh %25 : vector<32x8192xf32>
    %cst_9 = arith.constant 1.000000e+00 : f32
    %27 = vector.broadcast %cst_9 : f32 to vector<32x8192xf32>
    %28 = arith.addf %26, %27 : vector<32x8192xf32>
    %29 = arith.mulf %21, %28 : vector<32x8192xf32>
    %c0_10 = arith.constant 0 : index
    %c0_11 = arith.constant 0 : index
    %30 = vector.load %arg2[%c0_10, %c0_11] : memref<32x32xbf16, #tpu.memory_space<vmem>>, vector<32x32xbf16>
    %31 = arith.truncf %29 : vector<32x8192xf32> to vector<32x8192xbf16>
    %cst_12 = arith.constant dense<0.000000e+00> : vector<32x8192xf32>
    %32 = tpu.matmul %30, %31, %cst_12 {dimension_numbers = #tpu.dot_dimension_numbers<[1], [0], [0], [1], [0, 0, 1, 1], [], []>} : vector<32x32xbf16>, vector<32x8192xbf16>, vector<32x8192xf32> -> vector<32x8192xf32>
    %33 = vector.broadcast %4 : vector<32x1xf32> to vector<32x8192xf32>
    %34 = arith.addf %32, %33 : vector<32x8192xf32>
    %cst_13 = arith.constant 5.000000e-01 : f32
    %35 = vector.broadcast %cst_13 : f32 to vector<32x8192xf32>
    %36 = arith.mulf %35, %34 : vector<32x8192xf32>
    %cst_14 = arith.constant 5.000000e-01 : f32
    %37 = vector.broadcast %cst_14 : f32 to vector<32x1xf32>
    %38 = arith.mulf %37, %5 : vector<32x1xf32>
    %39 = vector.broadcast %38 : vector<32x1xf32> to vector<32x8192xf32>
    %40 = arith.mulf %39, %34 : vector<32x8192xf32>
    %41 = math.tanh %40 : vector<32x8192xf32>
    %cst_15 = arith.constant 1.000000e+00 : f32
    %42 = vector.broadcast %cst_15 : f32 to vector<32x8192xf32>
    %43 = arith.addf %41, %42 : vector<32x8192xf32>
    %44 = arith.mulf %36, %43 : vector<32x8192xf32>
    %c0_16 = arith.constant 0 : index
    %c0_17 = arith.constant 0 : index
    %45 = vector.load %arg3[%c0_16, %c0_17] : memref<2x32xbf16, #tpu.memory_space<vmem>>, vector<2x32xbf16>
    %46 = arith.truncf %44 : vector<32x8192xf32> to vector<32x8192xbf16>
    %cst_18 = arith.constant dense<0.000000e+00> : vector<2x8192xf32>
    %47 = tpu.matmul %45, %46, %cst_18 {dimension_numbers = #tpu.dot_dimension_numbers<[1], [0], [0], [1], [0, 0, 1, 1], [], []>} : vector<2x32xbf16>, vector<32x8192xbf16>, vector<2x8192xf32> -> vector<2x8192xf32>
    %48 = vector.broadcast %6 : vector<2x1xf32> to vector<2x8192xf32>
    %49 = arith.addf %47, %48 : vector<2x8192xf32>
    %c0_19 = arith.constant 0 : index
    %c0_20 = arith.constant 0 : index
    %50 = vector.load %arg5[%c0_19, %c0_20] : memref<2x8192xf32, #tpu.memory_space<vmem>>, vector<2x8192xf32>
    tpu.vector_store %arg5[%c0_19, %c0_20], %49 {strides = array<i32>} : memref<2x8192xf32, #tpu.memory_space<vmem>>, vector<2x8192xf32>,
    return
  }
  func.func @transform_0(%arg0: i32) -> (i32, i32) {
    %c0_i32 = arith.constant 0 : i32
    %c0_i32_0 = arith.constant 0 : i32
    return %c0_i32, %arg0 : i32, i32
  }
  func.func @transform_1(%arg0: i32) -> (i32, i32) {
    %c0_i32 = arith.constant 0 : i32
    %c0_i32_0 = arith.constant 0 : i32
    %c0_i32_1 = arith.constant 0 : i32
    return %c0_i32, %c0_i32_0 : i32, i32
  }
  func.func @transform_2(%arg0: i32) -> (i32, i32) {
    %c0_i32 = arith.constant 0 : i32
    %c0_i32_0 = arith.constant 0 : i32
    %c0_i32_1 = arith.constant 0 : i32
    return %c0_i32, %c0_i32_0 : i32, i32
  }
  func.func @transform_3(%arg0: i32) -> (i32, i32) {
    %c0_i32 = arith.constant 0 : i32
    %c0_i32_0 = arith.constant 0 : i32
    %c0_i32_1 = arith.constant 0 : i32
    return %c0_i32, %c0_i32_0 : i32, i32
  }
  func.func @transform_4(%arg0: i32) -> (i32, i32) {
    %c0_i32 = arith.constant 0 : i32
    %c0_i32_0 = arith.constant 0 : i32
    return %c0_i32, %arg0 : i32, i32
  }
}

</mosaic_0001>

<llo_original>
// kernel: tpu_custom_call.1
$region0: #{tpu_custom_call.1}
  #allocation0 [shape = 'u32[]', space=smem, size = 0x4, offset = 0x4, fixed_abs, tag = 'smem constant byte address 0x4 - core index']
  #allocation1 [shape = 'u32[72,128]{1,0:T(1,128)}', space=vmem, size = 0x9000, scoped, tag = 'internal scratch']
  %s0 = inlined_call_operand.hbm [shape: f32[2,8192], index: 0, kind: input, shape index: {}]
  %s1 = inlined_call_operand.vmem [shape: bf16[32,32], index: 1, kind: input, shape index: {}]
  %s2 = inlined_call_operand.vmem [shape: bf16[2,32], index: 2, kind: input, shape index: {}]
  %s3 = inlined_call_operand.vmem [shape: f32[32,7], index: 3, kind: input, shape index: {}]
  %s4 = inlined_call_operand.hbm [shape: f32[2,8192], index: 4, kind: output, shape index: {}]
  %s5 = sld [smem:[#allocation0]]
  $region30: #{tpu_custom_call.1} parent=0
    _
  %s7 = ssub.s32 1, %s5
  %s8 = scalar_select 0, %s7, %s5
  $region1: #{tpu_custom_call.1} parent=0
    #allocation2 [shape = 'u8[65536]{0}', space=vmem, size = 0x10000, scoped, tag = 'input window, operand 0, single buffered']
    #allocation3 [shape = 's32[1]{0}', space=sflag, size = 0x4, scoped, tag = 'scoped memory for tpu_custom_call.1']
    #allocation4 [shape = 's32[1]{0}', space=sflag, size = 0x4, scoped, tag = 'scoped memory for tpu_custom_call.1']
    #allocation5 [shape = 'u8[65536]{0}', space=vmem, size = 0x10000, scoped, tag = 'output window, operand 0, single buffered']
    %9 = vsyncpa [#allocation3], 0
    %10 = vsyncpa [#allocation4], 0
    // Predicated region
    $region2: #{tpu_custom_call.1} parent=1 // pred_check
      _
    $region3: #{tpu_custom_call.1} parent=1 // pred_check_branch
      %12 = sbr.rel (0) target = $region5
    $region4: #{tpu_custom_call.1} parent=1 // pred_region
      %14 = vsyncadd [#allocation3], 0
      %s16 = sshll.u32 %s0, 4
      %s17 = int_to_ptr.hbm [resolvable:$true] %s16
      %s18 = sshll.u32 [#allocation2], 4
      %s19 = int_to_ptr.vmem [resolvable:$true] %s18
      %21 = dma.hbm_to_vmem [thread:$0]  %s17, 2048, %s19, [#allocation3]
    $region5: #{tpu_custom_call.1} parent=1 // pred_fallthru
      _
    // Predicated region
    $region6: #{tpu_custom_call.1} parent=1 // pred_check
      _
    $region7: #{tpu_custom_call.1} parent=1 // pred_check_branch
      %23 = sbr.rel (0) target = $region9
    $region8: #{tpu_custom_call.1} parent=1 // pred_region
      _
    $region9: #{tpu_custom_call.1} parent=1 // pred_fallthru
      _
    // Predicated region
    $region10: #{tpu_custom_call.1} parent=1 // pred_check
      _
    $region11: #{tpu_custom_call.1} parent=1 // pred_check_branch
      %25 = sbr.rel (0) target = $region13
    $region12: #{tpu_custom_call.1} parent=1 // pred_region
      _
    $region13: #{tpu_custom_call.1} parent=1 // pred_fallthru
      _
    // Predicated region
    $region14: #{tpu_custom_call.1} parent=1 // pred_check
      _
    $region15: #{tpu_custom_call.1} parent=1 // pred_check_branch
      %27 = sbr.rel (0) target = $region17
    $region16: #{tpu_custom_call.1} parent=1 // pred_region
      _
    $region17: #{tpu_custom_call.1} parent=1 // pred_fallthru
      _
    // Predicated region
    $region18: #{tpu_custom_call.1} parent=1 // pred_check
      _
    $region19: #{tpu_custom_call.1} parent=1 // pred_check_branch
      %29 = sbr.rel (0) target = $region21
    $region20: #{tpu_custom_call.1} parent=1 // pred_region
      %31 = dma.done [#allocation3], 2048
    $region21: #{tpu_custom_call.1} parent=1 // pred_fallthru
      _
    %v33 = vld [vmem:[#allocation2] sm:$0xff]
    %v34 = vld [vmem:[#allocation2 + $0x8] sm:$0xff]
    %v35 = vld [vmem:[#allocation2 + $0x10] sm:$0xff]
    %v36 = vld [vmem:[#allocation2 + $0x18] sm:$0xff]
    %v37 = vld [vmem:[#allocation2 + $0x20] sm:$0xff]
    %v38 = vld [vmem:[#allocation2 + $0x28] sm:$0xff]
    %v39 = vld [vmem:[#allocation2 + $0x30] sm:$0xff]
    %v40 = vld [vmem:[#allocation2 + $0x38] sm:$0xff]
    %v41 = vld [vmem:[#allocation2 + $0x40] sm:$0xff]
    %v42 = vld [vmem:[#allocation2 + $0x48] sm:$0xff]
    %v43 = vld [vmem:[#allocation2 + $0x50] sm:$0xff]
    %v44 = vld [vmem:[#allocation2 + $0x58] sm:$0xff]
    %v45 = vld [vmem:[#allocation2 + $0x60] sm:$0xff]
    %v46 = vld [vmem:[#allocation2 + $0x68] sm:$0xff]
    %v47 = vld [vmem:[#allocation2 + $0x70] sm:$0xff]
    %v48 = vld [vmem:[#allocation2 + $0x78] sm:$0xff]
    %v49 = vld [vmem:[%s3] sm:$0xff]
    %v50 = vld [vmem:[%s3 + $0x8] sm:$0xff]
    %v51 = vld [vmem:[%s3 + $0x10] sm:$0xff]
    %v52 = vld [vmem:[%s3 + $0x18] sm:$0xff]
    %v53 = vld [vmem:[%s3] sm:$0x3]
    %55 = vset.pattern.permute.xlu0 0
    %56 = vperm.xlu0 %55, %v49
    %v57 = vpop.permute.xlu0 %56
    %60 = vset.pattern.permute.xlu0 0
    %61 = vperm.xlu0 %60, %v50
    %v62 = vpop.permute.xlu0 %61
    %65 = vset.pattern.permute.xlu0 0
    %66 = vperm.xlu0 %65, %v51
    %v67 = vpop.permute.xlu0 %66
    %70 = vset.pattern.permute.xlu0 0
    %71 = vperm.xlu0 %70, %v52
    %v72 = vpop.permute.xlu0 %71
    %v90 = vperm.slane %v33, 0
    %v91 = vperm.slane %v33, 2
    %v92 = vperm.slane %v33, 4
    %v93 = vperm.slane %v33, 6
    %v94 = vperm.slane %v34, 0
    %v95 = vperm.slane %v34, 2
    %v96 = vperm.slane %v34, 4
    %v97 = vperm.slane %v34, 6
    %v98 = vperm.slane %v35, 0
    %v99 = vperm.slane %v35, 2
    %v100 = vperm.slane %v35, 4
    %v101 = vperm.slane %v35, 6
    %v102 = vperm.slane %v36, 0
    %v103 = vperm.slane %v36, 2
    %v104 = vperm.slane %v36, 4
    %v105 = vperm.slane %v36, 6
    %v106 = vperm.slane %v37, 0
    %v107 = vperm.slane %v37, 2
    %v108 = vperm.slane %v37, 4
    %v109 = vperm.slane %v37, 6
    %v110 = vperm.slane %v38, 0
    %v111 = vperm.slane %v38, 2
    %v112 = vperm.slane %v38, 4
    %v113 = vperm.slane %v38, 6
    %v114 = vperm.slane %v39, 0
    %v115 = vperm.slane %v39, 2
    %v116 = vperm.slane %v39, 4
    %v117 = vperm.slane %v39, 6
    %v118 = vperm.slane %v40, 0
    %v119 = vperm.slane %v40, 2
    %v120 = vperm.slane %v40, 4
    %v121 = vperm.slane %v40, 6
    %v122 = vperm.slane %v41, 0
    %v123 = vperm.slane %v41, 2
    %v124 = vperm.slane %v41, 4
    %v125 = vperm.slane %v41, 6
    %v126 = vperm.slane %v42, 0
    %v127 = vperm.slane %v42, 2
    %v128 = vperm.slane %v42, 4
    %v129 = vperm.slane %v42, 6
    %v130 = vperm.slane %v43, 0
    %v131 = vperm.slane %v43, 2
    %v132 = vperm.slane %v43, 4
    %v133 = vperm.slane %v43, 6
    %v134 = vperm.slane %v44, 0
    %v135 = vperm.slane %v44, 2
    %v136 = vperm.slane %v44, 4
    %v137 = vperm.slane %v44, 6
    %v138 = vperm.slane %v45, 0
    %v139 = vperm.slane %v45, 2
    %v140 = vperm.slane %v45, 4
    %v141 = vperm.slane %v45, 6
    %v142 = vperm.slane %v46, 0
    %v143 = vperm.slane %v46, 2
    %v144 = vperm.slane %v46, 4
    %v145 = vperm.slane %v46, 6
    %v146 = vperm.slane %v47, 0
    %v147 = vperm.slane %v47, 2
    %v148 = vperm.slane %v47, 4
    %v149 = vperm.slane %v47, 6
    %v150 = vperm.slane %v48, 0
    %v151 = vperm.slane %v48, 2
    %v152 = vperm.slane %v48, 4
    %v153 = vperm.slane %v48, 6
    %v218 = vperm.slane %v90, 0
    %v219 = vperm.slane %v91, 0
    %v220 = vperm.slane %v92, 0
    %v221 = vperm.slane %v93, 0
    %v222 = vperm.slane %v94, 0
    %v223 = vperm.slane %v95, 0
    %v224 = vperm.slane %v96, 0
    %v225 = vperm.slane %v97, 0
    %v226 = vperm.slane %v98, 0
    %v227 = vperm.slane %v99, 0
    %v228 = vperm.slane %v100, 0
    %v229 = vperm.slane %v101, 0
    %v230 = vperm.slane %v102, 0
    %v231 = vperm.slane %v103, 0
    %v232 = vperm.slane %v104, 0
    %v233 = vperm.slane %v105, 0
    %v234 = vperm.slane %v106, 0
    %v235 = vperm.slane %v107, 0
    %v236 = vperm.slane %v108, 0
    %v237 = vperm.slane %v109, 0
    %v238 = vperm.slane %v110, 0
    %v239 = vperm.slane %v111, 0
    %v240 = vperm.slane %v112, 0
    %v241 = vperm.slane %v113, 0
    %v242 = vperm.slane %v114, 0
    %v243 = vperm.slane %v115, 0
    %v244 = vperm.slane %v116, 0
    %v245 = vperm.slane %v117, 0
    %v246 = vperm.slane %v118, 0
    %v247 = vperm.slane %v119, 0
    %v248 = vperm.slane %v120, 0
    %v249 = vperm.slane %v121, 0
    %v250 = vperm.slane %v122, 0
    %v251 = vperm.slane %v123, 0
    %v252 = vperm.slane %v124, 0
    %v253 = vperm.slane %v125, 0
    %v254 = vperm.slane %v126, 0
    %v255 = vperm.slane %v127, 0
    %v256 = vperm.slane %v128, 0
    %v257 = vperm.slane %v129, 0
    %v258 = vperm.slane %v130, 0
    %v259 = vperm.slane %v131, 0
    %v260 = vperm.slane %v132, 0
    %v261 = vperm.slane %v133, 0
    %v262 = vperm.slane %v134, 0
    %v263 = vperm.slane %v135, 0
    %v264 = vperm.slane %v136, 0
    %v265 = vperm.slane %v137, 0
    %v266 = vperm.slane %v138, 0
    %v267 = vperm.slane %v139, 0
    %v268 = vperm.slane %v140, 0
    %v269 = vperm.slane %v141, 0
    %v270 = vperm.slane %v142, 0
    %v271 = vperm.slane %v143, 0
    %v272 = vperm.slane %v144, 0
    %v273 = vperm.slane %v145, 0
    %v274 = vperm.slane %v146, 0
    %v275 = vperm.slane %v147, 0
    %v276 = vperm.slane %v148, 0
    %v277 = vperm.slane %v149, 0
    %v278 = vperm.slane %v150, 0
    %v279 = vperm.slane %v151, 0
    %v280 = vperm.slane %v152, 0
    %v281 = vperm.slane %v153, 0
    %v282 = vmul.f32 %v57, %v218
    %v283 = vmul.f32 %v57, %v219
    %v284 = vmul.f32 %v57, %v220
    %v285 = vmul.f32 %v57, %v221
    %v286 = vmul.f32 %v57, %v222
    %v287 = vmul.f32 %v57, %v223
    %v288 = vmul.f32 %v57, %v224
    %v289 = vmul.f32 %v57, %v225
    %v290 = vmul.f32 %v57, %v226
    %v291 = vmul.f32 %v57, %v227
    %v292 = vmul.f32 %v57, %v228
    %v293 = vmul.f32 %v57, %v229
    %v294 = vmul.f32 %v57, %v230
    %v295 = vmul.f32 %v57, %v231
    %v296 = vmul.f32 %v57, %v232
    %v297 = vmul.f32 %v57, %v233
    %v298 = vmul.f32 %v57, %v234
    %v299 = vmul.f32 %v57, %v235
    %v300 = vmul.f32 %v57, %v236
    %v301 = vmul.f32 %v57, %v237
    %v302 = vmul.f32 %v57, %v238
    %v303 = vmul.f32 %v57, %v239
    %v304 = vmul.f32 %v57, %v240
    %v305 = vmul.f32 %v57, %v241
    %v306 = vmul.f32 %v57, %v242
    %v307 = vmul.f32 %v57, %v243
    %v308 = vmul.f32 %v57, %v244
    %v309 = vmul.f32 %v57, %v245
    %v310 = vmul.f32 %v57, %v246
    %v311 = vmul.f32 %v57, %v247
    %v312 = vmul.f32 %v57, %v248
    %v313 = vmul.f32 %v57, %v249
    %v314 = vmul.f32 %v57, %v250
    %v315 = vmul.f32 %v57, %v251
    %v316 = vmul.f32 %v57, %v252
    %v317 = vmul.f32 %v57, %v253
    %v318 = vmul.f32 %v57, %v254
    %v319 = vmul.f32 %v57, %v255
    %v320 = vmul.f32 %v57, %v256
    %v321 = vmul.f32 %v57, %v257
    %v322 = vmul.f32 %v57, %v258
    %v323 = vmul.f32 %v57, %v259
    %v324 = vmul.f32 %v57, %v260
    %v325 = vmul.f32 %v57, %v261
    %v326 = vmul.f32 %v57, %v262
    %v327 = vmul.f32 %v57, %v263
    %v328 = vmul.f32 %v57, %v264
    %v329 = vmul.f32 %v57, %v265
    %v330 = vmul.f32 %v57, %v266
    %v331 = vmul.f32 %v57, %v267
    %v332 = vmul.f32 %v57, %v268
    %v333 = vmul.f32 %v57, %v269
    %v334 = vmul.f32 %v57, %v270
    %v335 = vmul.f32 %v57, %v271
    %v336 = vmul.f32 %v57, %v272
    %v337 = vmul.f32 %v57, %v273
    %v338 = vmul.f32 %v57, %v274
    %v339 = vmul.f32 %v57, %v275
    %v340 = vmul.f32 %v57, %v276
    %v341 = vmul.f32 %v57, %v277
    %v342 = vmul.f32 %v57, %v278
    %v343 = vmul.f32 %v57, %v279
    %v344 = vmul.f32 %v57, %v280
    %v345 = vmul.f32 %v57, %v281
    %v346 = vmul.f32 %v62, %v218
    %v347 = vmul.f32 %v62, %v219
    %v348 = vmul.f32 %v62, %v220
    %v349 = vmul.f32 %v62, %v221
    %v350 = vmul.f32 %v62, %v222
    %v351 = vmul.f32 %v62, %v223
    %v352 = vmul.f32 %v62, %v224
    %v353 = vmul.f32 %v62, %v225
    %v354 = vmul.f32 %v62, %v226
    %v355 = vmul.f32 %v62, %v227
    %v356 = vmul.f32 %v62, %v228
    %v357 = vmul.f32 %v62, %v229
    %v358 = vmul.f32 %v62, %v230
    %v359 = vmul.f32 %v62, %v231
    %v360 = vmul.f32 %v62, %v232
    %v361 = vmul.f32 %v62, %v233
    %v362 = vmul.f32 %v62, %v234
    %v363 = vmul.f32 %v62, %v235
    %v364 = vmul.f32 %v62, %v236
    %v365 = vmul.f32 %v62, %v237
    %v366 = vmul.f32 %v62, %v238
    %v367 = vmul.f32 %v62, %v239
    %v368 = vmul.f32 %v62, %v240
    %v369 = vmul.f32 %v62, %v241
    %v370 = vmul.f32 %v62, %v242
    %v371 = vmul.f32 %v62, %v243
    %v372 = vmul.f32 %v62, %v244
    %v373 = vmul.f32 %v62, %v245
    %v374 = vmul.f32 %v62, %v246
    %v375 = vmul.f32 %v62, %v247
    %v376 = vmul.f32 %v62, %v248
    %v377 = vmul.f32 %v62, %v249
    %v378 = vmul.f32 %v62, %v250
    %v379 = vmul.f32 %v62, %v251
    %v380 = vmul.f32 %v62, %v252
    %v381 = vmul.f32 %v62, %v253
    %v382 = vmul.f32 %v62, %v254
    %v383 = vmul.f32 %v62, %v255
    %v384 = vmul.f32 %v62, %v256
    %v385 = vmul.f32 %v62, %v257
    %v386 = vmul.f32 %v62, %v258
    %v387 = vmul.f32 %v62, %v259
    %v388 = vmul.f32 %v62, %v260
    %v389 = vmul.f32 %v62, %v261
    %v390 = vmul.f32 %v62, %v262
    %v391 = vmul.f32 %v62, %v263
    %v392 = vmul.f32 %v62, %v264
    %v393 = vmul.f32 %v62, %v265
    %v394 = vmul.f32 %v62, %v266
    %v395 = vmul.f32 %v62, %v267
    %v396 = vmul.f32 %v62, %v268
    %v397 = vmul.f32 %v62, %v269
    %v398 = vmul.f32 %v62, %v270
    %v399 = vmul.f32 %v62, %v271
    %v400 = vmul.f32 %v62, %v272
    %v401 = vmul.f32 %v62, %v273
    %v402 = vmul.f32 %v62, %v274
    %v403 = vmul.f32 %v62, %v275
    %v404 = vmul.f32 %v62, %v276
    %v405 = vmul.f32 %v62, %v277
    %v406 = vmul.f32 %v62, %v278
    %v407 = vmul.f32 %v62, %v279
    %v408 = vmul.f32 %v62, %v280
    %v409 = vmul.f32 %v62, %v281
    %v410 = vmul.f32 %v67, %v218
    %v411 = vmul.f32 %v67, %v219
    %v412 = vmul.f32 %v67, %v220
    %v413 = vmul.f32 %v67, %v221
    %v414 = vmul.f32 %v67, %v222
    %v415 = vmul.f32 %v67, %v223
    %v416 = vmul.f32 %v67, %v224
    %v417 = vmul.f32 %v67, %v225
    %v418 = vmul.f32 %v67, %v226
    %v419 = vmul.f32 %v67, %v227
    %v420 = vmul.f32 %v67, %v228
    %v421 = vmul.f32 %v67, %v229
    %v422 = vmul.f32 %v67, %v230
    %v423 = vmul.f32 %v67, %v231
    %v424 = vmul.f32 %v67, %v232
    %v425 = vmul.f32 %v67, %v233
    %v426 = vmul.f32 %v67, %v234
    %v427 = vmul.f32 %v67, %v235
    %v428 = vmul.f32 %v67, %v236
    %v429 = vmul.f32 %v67, %v237
    %v430 = vmul.f32 %v67, %v238
    %v431 = vmul.f32 %v67, %v239
    %v432 = vmul.f32 %v67, %v240
    %v433 = vmul.f32 %v67, %v241
    %v434 = vmul.f32 %v67, %v242
    %v435 = vmul.f32 %v67, %v243
    %v436 = vmul.f32 %v67, %v244
    %v437 = vmul.f32 %v67, %v245
    %v438 = vmul.f32 %v67, %v246
    %v439 = vmul.f32 %v67, %v247
    %v440 = vmul.f32 %v67, %v248
    %v441 = vmul.f32 %v67, %v249
    %v442 = vmul.f32 %v67, %v250
    %v443 = vmul.f32 %v67, %v251
    %v444 = vmul.f32 %v67, %v252
    %v445 = vmul.f32 %v67, %v253
    %v446 = vmul.f32 %v67, %v254
    %v447 = vmul.f32 %v67, %v255
    %v448 = vmul.f32 %v67, %v256
    %v449 = vmul.f32 %v67, %v257
    %v450 = vmul.f32 %v67, %v258
    %v451 = vmul.f32 %v67, %v259
    %v452 = vmul.f32 %v67, %v260
    %v453 = vmul.f32 %v67, %v261
    %v454 = vmul.f32 %v67, %v262
    %v455 = vmul.f32 %v67, %v263
    %v456 = vmul.f32 %v67, %v264
    %v457 = vmul.f32 %v67, %v265
    %v458 = vmul.f32 %v67, %v266
    %v459 = vmul.f32 %v67, %v267
    %v460 = vmul.f32 %v67, %v268
    %v461 = vmul.f32 %v67, %v269
    %v462 = vmul.f32 %v67, %v270
    %v463 = vmul.f32 %v67, %v271
    %v464 = vmul.f32 %v67, %v272
    %v465 = vmul.f32 %v67, %v273
    %v466 = vmul.f32 %v67, %v274
    %v467 = vmul.f32 %v67, %v275
    %v468 = vmul.f32 %v67, %v276
    %v469 = vmul.f32 %v67, %v277
    %v470 = vmul.f32 %v67, %v278
    %v471 = vmul.f32 %v67, %v279
    %v472 = vmul.f32 %v67, %v280
    %v473 = vmul.f32 %v67, %v281
    %v474 = vmul.f32 %v72, %v218
    %v475 = vmul.f32 %v72, %v219
    %v476 = vmul.f32 %v72, %v220
    %v477 = vmul.f32 %v72, %v221
    %v478 = vmul.f32 %v72, %v222
    %v479 = vmul.f32 %v72, %v223
    %v480 = vmul.f32 %v72, %v224
    %v481 = vmul.f32 %v72, %v225
    %v482 = vmul.f32 %v72, %v226
    %v483 = vmul.f32 %v72, %v227
    %v484 = vmul.f32 %v72, %v228
    %v485 = vmul.f32 %v72, %v229
    %v486 = vmul.f32 %v72, %v230
    %v487 = vmul.f32 %v72, %v231
    %v488 = vmul.f32 %v72, %v232
    %v489 = vmul.f32 %v72, %v233
    %v490 = vmul.f32 %v72, %v234
    %v491 = vmul.f32 %v72, %v235
    %v492 = vmul.f32 %v72, %v236
    %v493 = vmul.f32 %v72, %v237
    %v494 = vmul.f32 %v72, %v238
    %v495 = vmul.f32 %v72, %v239
    %v496 = vmul.f32 %v72, %v240
    %v497 = vmul.f32 %v72, %v241
    %v498 = vmul.f32 %v72, %v242
    %v499 = vmul.f32 %v72, %v243
    %v500 = vmul.f32 %v72, %v244
    %v501 = vmul.f32 %v72, %v245
    %v502 = vmul.f32 %v72, %v246
    %v503 = vmul.f32 %v72, %v247
    %v504 = vmul.f32 %v72, %v248
    %v505 = vmul.f32 %v72, %v249
    %v506 = vmul.f32 %v72, %v250
    %v507 = vmul.f32 %v72, %v251
    %v508 = vmul.f32 %v72, %v252
    %v509 = vmul.f32 %v72, %v253
    %v510 = vmul.f32 %v72, %v254
    %v511 = vmul.f32 %v72, %v255
    %v512 = vmul.f32 %v72, %v256
    %v513 = vmul.f32 %v72, %v257
    %v514 = vmul.f32 %v72, %v258
    %v515 = vmul.f32 %v72, %v259
    %v516 = vmul.f32 %v72, %v260
    %v517 = vmul.f32 %v72, %v261
    %v518 = vmul.f32 %v72, %v262
    %v519 = vmul.f32 %v72, %v263
    %v520 = vmul.f32 %v72, %v264
    %v521 = vmul.f32 %v72, %v265
    %v522 = vmul.f32 %v72, %v266
    %v523 = vmul.f32 %v72, %v267
    %v524 = vmul.f32 %v72, %v268
    %v525 = vmul.f32 %v72, %v269
    %v526 = vmul.f32 %v72, %v270
    %v527 = vmul.f32 %v72, %v271
    %v528 = vmul.f32 %v72, %v272
    %v529 = vmul.f32 %v72, %v273
    %v530 = vmul.f32 %v72, %v274
    %v531 = vmul.f32 %v72, %v275
    %v532 = vmul.f32 %v72, %v276
    %v533 = vmul.f32 %v72, %v277
    %v534 = vmul.f32 %v72, %v278
    %v535 = vmul.f32 %v72, %v279
    %v536 = vmul.f32 %v72, %v280
    %v537 = vmul.f32 %v72, %v281
    %538 = vset.pattern.permute.xlu0 2
    %539 = vperm.xlu0 %538, %v49
    %v540 = vpop.permute.xlu0 %539
    %542 = vset.pattern.permute.xlu0 2
    %543 = vperm.xlu0 %542, %v50
    %v544 = vpop.permute.xlu0 %543
    %546 = vset.pattern.permute.xlu0 2
    %547 = vperm.xlu0 %546, %v51
    %v548 = vpop.permute.xlu0 %547
    %550 = vset.pattern.permute.xlu0 2
    %551 = vperm.xlu0 %550, %v52
    %v552 = vpop.permute.xlu0 %551
    %v554 = vadd.f32 %v540, %v282
    %v555 = vadd.f32 %v540, %v283
    %v556 = vadd.f32 %v540, %v284
    %v557 = vadd.f32 %v540, %v285
    %v558 = vadd.f32 %v540, %v286
    %v559 = vadd.f32 %v540, %v287
    %v560 = vadd.f32 %v540, %v288
    %v561 = vadd.f32 %v540, %v289
    %v562 = vadd.f32 %v540, %v290
    %v563 = vadd.f32 %v540, %v291
    %v564 = vadd.f32 %v540, %v292
    %v565 = vadd.f32 %v540, %v293
    %v566 = vadd.f32 %v540, %v294
    %v567 = vadd.f32 %v540, %v295
    %v568 = vadd.f32 %v540, %v296
    %v569 = vadd.f32 %v540, %v297
    %v570 = vadd.f32 %v540, %v298
    %v571 = vadd.f32 %v540, %v299
    %v572 = vadd.f32 %v540, %v300
    %v573 = vadd.f32 %v540, %v301
    %v574 = vadd.f32 %v540, %v302
    %v575 = vadd.f32 %v540, %v303
    %v576 = vadd.f32 %v540, %v304
    %v577 = vadd.f32 %v540, %v305
    %v578 = vadd.f32 %v540, %v306
    %v579 = vadd.f32 %v540, %v307
    %v580 = vadd.f32 %v540, %v308
    %v581 = vadd.f32 %v540, %v309
    %v582 = vadd.f32 %v540, %v310
    %v583 = vadd.f32 %v540, %v311
    %v584 = vadd.f32 %v540, %v312
    %v585 = vadd.f32 %v540, %v313
    %v586 = vadd.f32 %v540, %v314
    %v587 = vadd.f32 %v540, %v315
    %v588 = vadd.f32 %v540, %v316
    %v589 = vadd.f32 %v540, %v317
    %v590 = vadd.f32 %v540, %v318
    %v591 = vadd.f32 %v540, %v319
    %v592 = vadd.f32 %v540, %v320
    %v593 = vadd.f32 %v540, %v321
    %v594 = vadd.f32 %v540, %v322
    %v595 = vadd.f32 %v540, %v323
    %v596 = vadd.f32 %v540, %v324
    %v597 = vadd.f32 %v540, %v325
    %v598 = vadd.f32 %v540, %v326
    %v599 = vadd.f32 %v540, %v327
    %v600 = vadd.f32 %v540, %v328
    %v601 = vadd.f32 %v540, %v329
    %v602 = vadd.f32 %v540, %v330
    %v603 = vadd.f32 %v540, %v331
    %v604 = vadd.f32 %v540, %v332
    %v605 = vadd.f32 %v540, %v333
    %v606 = vadd.f32 %v540, %v334
    %v607 = vadd.f32 %v540, %v335
    %v608 = vadd.f32 %v540, %v336
    %v609 = vadd.f32 %v540, %v337
    %v610 = vadd.f32 %v540, %v338
    %v611 = vadd.f32 %v540, %v339
    %v612 = vadd.f32 %v540, %v340
    %v613 = vadd.f32 %v540, %v341
    %v614 = vadd.f32 %v540, %v342
    %v615 = vadd.f32 %v540, %v343
    %v616 = vadd.f32 %v540, %v344
    %v617 = vadd.f32 %v540, %v345
    %v618 = vadd.f32 %v544, %v346
    %v619 = vadd.f32 %v544, %v347
    %v620 = vadd.f32 %v544, %v348
    %v621 = vadd.f32 %v544, %v349
    %v622 = vadd.f32 %v544, %v350
    %v623 = vadd.f32 %v544, %v351
    %v624 = vadd.f32 %v544, %v352
    %v625 = vadd.f32 %v544, %v353
    %v626 = vadd.f32 %v544, %v354
    %v627 = vadd.f32 %v544, %v355
    %v628 = vadd.f32 %v544, %v356
    %v629 = vadd.f32 %v544, %v357
    %v630 = vadd.f32 %v544, %v358
    %v631 = vadd.f32 %v544, %v359
    %v632 = vadd.f32 %v544, %v360
    %v633 = vadd.f32 %v544, %v361
    %v634 = vadd.f32 %v544, %v362
    %v635 = vadd.f32 %v544, %v363
    %v636 = vadd.f32 %v544, %v364
    %v637 = vadd.f32 %v544, %v365
    %v638 = vadd.f32 %v544, %v366
    %v639 = vadd.f32 %v544, %v367
    %v640 = vadd.f32 %v544, %v368
    %v641 = vadd.f32 %v544, %v369
    %v642 = vadd.f32 %v544, %v370
    %v643 = vadd.f32 %v544, %v371
    %v644 = vadd.f32 %v544, %v372
    %v645 = vadd.f32 %v544, %v373
    %v646 = vadd.f32 %v544, %v374
    %v647 = vadd.f32 %v544, %v375
    %v648 = vadd.f32 %v544, %v376
    %v649 = vadd.f32 %v544, %v377
    %v650 = vadd.f32 %v544, %v378
    %v651 = vadd.f32 %v544, %v379
    %v652 = vadd.f32 %v544, %v380
    %v653 = vadd.f32 %v544, %v381
    %v654 = vadd.f32 %v544, %v382
    %v655 = vadd.f32 %v544, %v383
    %v656 = vadd.f32 %v544, %v384
    %v657 = vadd.f32 %v544, %v385
    %v658 = vadd.f32 %v544, %v386
    %v659 = vadd.f32 %v544, %v387
    %v660 = vadd.f32 %v544, %v388
    %v661 = vadd.f32 %v544, %v389
    %v662 = vadd.f32 %v544, %v390
    %v663 = vadd.f32 %v544, %v391
    %v664 = vadd.f32 %v544, %v392
    %v665 = vadd.f32 %v544, %v393
    %v666 = vadd.f32 %v544, %v394
    %v667 = vadd.f32 %v544, %v395
    %v668 = vadd.f32 %v544, %v396
    %v669 = vadd.f32 %v544, %v397
    %v670 = vadd.f32 %v544, %v398
    %v671 = vadd.f32 %v544, %v399
    %v672 = vadd.f32 %v544, %v400
    %v673 = vadd.f32 %v544, %v401
    %v674 = vadd.f32 %v544, %v402
    %v675 = vadd.f32 %v544, %v403
    %v676 = vadd.f32 %v544, %v404
    %v677 = vadd.f32 %v544, %v405
    %v678 = vadd.f32 %v544, %v406
    %v679 = vadd.f32 %v544, %v407
    %v680 = vadd.f32 %v544, %v408
    %v681 = vadd.f32 %v544, %v409
    %v682 = vadd.f32 %v548, %v410
    %v683 = vadd.f32 %v548, %v411
    %v684 = vadd.f32 %v548, %v412
    %v685 = vadd.f32 %v548, %v413
    %v686 = vadd.f32 %v548, %v414
    %v687 = vadd.f32 %v548, %v415
    %v688 = vadd.f32 %v548, %v416
    %v689 = vadd.f32 %v548, %v417
    %v690 = vadd.f32 %v548, %v418
    %v691 = vadd.f32 %v548, %v419
    %v692 = vadd.f32 %v548, %v420
    %v693 = vadd.f32 %v548, %v421
    %v694 = vadd.f32 %v548, %v422
    %v695 = vadd.f32 %v548, %v423
    %v696 = vadd.f32 %v548, %v424
    %v697 = vadd.f32 %v548, %v425
    %v698 = vadd.f32 %v548, %v426
    %v699 = vadd.f32 %v548, %v427
    %v700 = vadd.f32 %v548, %v428
    %v701 = vadd.f32 %v548, %v429
    %v702 = vadd.f32 %v548, %v430
    %v703 = vadd.f32 %v548, %v431
    %v704 = vadd.f32 %v548, %v432
    %v705 = vadd.f32 %v548, %v433
    %v706 = vadd.f32 %v548, %v434
    %v707 = vadd.f32 %v548, %v435
    %v708 = vadd.f32 %v548, %v436
    %v709 = vadd.f32 %v548, %v437
    %v710 = vadd.f32 %v548, %v438
    %v711 = vadd.f32 %v548, %v439
    %v712 = vadd.f32 %v548, %v440
    %v713 = vadd.f32 %v548, %v441
    %v714 = vadd.f32 %v548, %v442
    %v715 = vadd.f32 %v548, %v443
    %v716 = vadd.f32 %v548, %v444
    %v717 = vadd.f32 %v548, %v445
    %v718 = vadd.f32 %v548, %v446
    %v719 = vadd.f32 %v548, %v447
    %v720 = vadd.f32 %v548, %v448
    %v721 = vadd.f32 %v548, %v449
    %v722 = vadd.f32 %v548, %v450
    %v723 = vadd.f32 %v548, %v451
    %v724 = vadd.f32 %v548, %v452
    %v725 = vadd.f32 %v548, %v453
    %v726 = vadd.f32 %v548, %v454
    %v727 = vadd.f32 %v548, %v455
    %v728 = vadd.f32 %v548, %v456
    %v729 = vadd.f32 %v548, %v457
    %v730 = vadd.f32 %v548, %v458
    %v731 = vadd.f32 %v548, %v459
    %v732 = vadd.f32 %v548, %v460
    %v733 = vadd.f32 %v548, %v461
    %v734 = vadd.f32 %v548, %v462
    %v735 = vadd.f32 %v548, %v463
    %v736 = vadd.f32 %v548, %v464
    %v737 = vadd.f32 %v548, %v465
    %v738 = vadd.f32 %v548, %v466
    %v739 = vadd.f32 %v548, %v467
    %v740 = vadd.f32 %v548, %v468
    %v741 = vadd.f32 %v548, %v469
    %v742 = vadd.f32 %v548, %v470
    %v743 = vadd.f32 %v548, %v471
    %v744 = vadd.f32 %v548, %v472
    %v745 = vadd.f32 %v548, %v473
    %v746 = vadd.f32 %v552, %v474
    %v747 = vadd.f32 %v552, %v475
    %v748 = vadd.f32 %v552, %v476
    %v749 = vadd.f32 %v552, %v477
    %v750 = vadd.f32 %v552, %v478
    %v751 = vadd.f32 %v552, %v479
    %v752 = vadd.f32 %v552, %v480
    %v753 = vadd.f32 %v552, %v481
    %v754 = vadd.f32 %v552, %v482
    %v755 = vadd.f32 %v552, %v483
    %v756 = vadd.f32 %v552, %v484
    %v757 = vadd.f32 %v552, %v485
    %v758 = vadd.f32 %v552, %v486
    %v759 = vadd.f32 %v552, %v487
    %v760 = vadd.f32 %v552, %v488
    %v761 = vadd.f32 %v552, %v489
    %v762 = vadd.f32 %v552, %v490
    %v763 = vadd.f32 %v552, %v491
    %v764 = vadd.f32 %v552, %v492
    %v765 = vadd.f32 %v552, %v493
    %v766 = vadd.f32 %v552, %v494
    %v767 = vadd.f32 %v552, %v495
    %v768 = vadd.f32 %v552, %v496
    %v769 = vadd.f32 %v552, %v497
    %v770 = vadd.f32 %v552, %v498
    %v771 = vadd.f32 %v552, %v499
    %v772 = vadd.f32 %v552, %v500
    %v773 = vadd.f32 %v552, %v501
    %v774 = vadd.f32 %v552, %v502
    %v775 = vadd.f32 %v552, %v503
    %v776 = vadd.f32 %v552, %v504
    %v777 = vadd.f32 %v552, %v505
    %v778 = vadd.f32 %v552, %v506
    %v779 = vadd.f32 %v552, %v507
    %v780 = vadd.f32 %v552, %v508
    %v781 = vadd.f32 %v552, %v509
    %v782 = vadd.f32 %v552, %v510
    %v783 = vadd.f32 %v552, %v511
    %v784 = vadd.f32 %v552, %v512
    %v785 = vadd.f32 %v552, %v513
    %v786 = vadd.f32 %v552, %v514
    %v787 = vadd.f32 %v552, %v515
    %v788 = vadd.f32 %v552, %v516
    %v789 = vadd.f32 %v552, %v517
    %v790 = vadd.f32 %v552, %v518
    %v791 = vadd.f32 %v552, %v519
    %v792 = vadd.f32 %v552, %v520
    %v793 = vadd.f32 %v552, %v521
    %v794 = vadd.f32 %v552, %v522
    %v795 = vadd.f32 %v552, %v523
    %v796 = vadd.f32 %v552, %v524
    %v797 = vadd.f32 %v552, %v525
    %v798 = vadd.f32 %v552, %v526
    %v799 = vadd.f32 %v552, %v527
    %v800 = vadd.f32 %v552, %v528
    %v801 = vadd.f32 %v552, %v529
    %v802 = vadd.f32 %v552, %v530
    %v803 = vadd.f32 %v552, %v531
    %v804 = vadd.f32 %v552, %v532
    %v805 = vadd.f32 %v552, %v533
    %v806 = vadd.f32 %v552, %v534
    %v807 = vadd.f32 %v552, %v535
    %v808 = vadd.f32 %v552, %v536
    %v809 = vadd.f32 %v552, %v537
    %810 = vset.pattern.permute.xlu0 1
    %811 = vperm.xlu0 %810, %v49
    %v812 = vpop.permute.xlu0 %811
    %814 = vset.pattern.permute.xlu0 1
    %815 = vperm.xlu0 %814, %v50
    %v816 = vpop.permute.xlu0 %815
    %818 = vset.pattern.permute.xlu0 1
    %819 = vperm.xlu0 %818, %v51
    %v820 = vpop.permute.xlu0 %819
    %822 = vset.pattern.permute.xlu0 1
    %823 = vperm.xlu0 %822, %v52
    %v824 = vpop.permute.xlu0 %823
    %v826 = vperm.slane %v33, 1
    %v827 = vperm.slane %v33, 3
    %v828 = vperm.slane %v33, 5
    %v829 = vperm.slane %v33, 7
    %v830 = vperm.slane %v34, 1
    %v831 = vperm.slane %v34, 3
    %v832 = vperm.slane %v34, 5
    %v833 = vperm.slane %v34, 7
    %v834 = vperm.slane %v35, 1
    %v835 = vperm.slane %v35, 3
    %v836 = vperm.slane %v35, 5
    %v837 = vperm.slane %v35, 7
    %v838 = vperm.slane %v36, 1
    %v839 = vperm.slane %v36, 3
    %v840 = vperm.slane %v36, 5
    %v841 = vperm.slane %v36, 7
    %v842 = vperm.slane %v37, 1
    %v843 = vperm.slane %v37, 3
    %v844 = vperm.slane %v37, 5
    %v845 = vperm.slane %v37, 7
    %v846 = vperm.slane %v38, 1
    %v847 = vperm.slane %v38, 3
    %v848 = vperm.slane %v38, 5
    %v849 = vperm.slane %v38, 7
    %v850 = vperm.slane %v39, 1
    %v851 = vperm.slane %v39, 3
    %v852 = vperm.slane %v39, 5
    %v853 = vperm.slane %v39, 7
    %v854 = vperm.slane %v40, 1
    %v855 = vperm.slane %v40, 3
    %v856 = vperm.slane %v40, 5
    %v857 = vperm.slane %v40, 7
    %v858 = vperm.slane %v41, 1
    %v859 = vperm.slane %v41, 3
    %v860 = vperm.slane %v41, 5
    %v861 = vperm.slane %v41, 7
    %v862 = vperm.slane %v42, 1
    %v863 = vperm.slane %v42, 3
    %v864 = vperm.slane %v42, 5
    %v865 = vperm.slane %v42, 7
    %v866 = vperm.slane %v43, 1
    %v867 = vperm.slane %v43, 3
    %v868 = vperm.slane %v43, 5
    %v869 = vperm.slane %v43, 7
    %v870 = vperm.slane %v44, 1
    %v871 = vperm.slane %v44, 3
    %v872 = vperm.slane %v44, 5
    %v873 = vperm.slane %v44, 7
    %v874 = vperm.slane %v45, 1
    %v875 = vperm.slane %v45, 3
    %v876 = vperm.slane %v45, 5
    %v877 = vperm.slane %v45, 7
    %v878 = vperm.slane %v46, 1
    %v879 = vperm.slane %v46, 3
    %v880 = vperm.slane %v46, 5
    %v881 = vperm.slane %v46, 7
    %v882 = vperm.slane %v47, 1
    %v883 = vperm.slane %v47, 3
    %v884 = vperm.slane %v47, 5
    %v885 = vperm.slane %v47, 7
    %v886 = vperm.slane %v48, 1
    %v887 = vperm.slane %v48, 3
    %v888 = vperm.slane %v48, 5
    %v889 = vperm.slane %v48, 7
    %v954 = vperm.slane %v826, 1
    %v955 = vperm.slane %v827, 1
    %v956 = vperm.slane %v828, 1
    %v957 = vperm.slane %v829, 1
    %v958 = vperm.slane %v830, 1
    %v959 = vperm.slane %v831, 1
    %v960 = vperm.slane %v832, 1
    %v961 = vperm.slane %v833, 1
    %v962 = vperm.slane %v834, 1
    %v963 = vperm.slane %v835, 1
    %v964 = vperm.slane %v836, 1
    %v965 = vperm.slane %v837, 1
    %v966 = vperm.slane %v838, 1
    %v967 = vperm.slane %v839, 1
    %v968 = vperm.slane %v840, 1
    %v969 = vperm.slane %v841, 1
    %v970 = vperm.slane %v842, 1
    %v971 = vperm.slane %v843, 1
    %v972 = vperm.slane %v844, 1
    %v973 = vperm.slane %v845, 1
    %v974 = vperm.slane %v846, 1
    %v975 = vperm.slane %v847, 1
    %v976 = vperm.slane %v848, 1
    %v977 = vperm.slane %v849, 1
    %v978 = vperm.slane %v850, 1
    %v979 = vperm.slane %v851, 1
    %v980 = vperm.slane %v852, 1
    %v981 = vperm.slane %v853, 1
    %v982 = vperm.slane %v854, 1
    %v983 = vperm.slane %v855, 1
    %v984 = vperm.slane %v856, 1
    %v985 = vperm.slane %v857, 1
    %v986 = vperm.slane %v858, 1
    %v987 = vperm.slane %v859, 1
    %v988 = vperm.slane %v860, 1
    %v989 = vperm.slane %v861, 1
    %v990 = vperm.slane %v862, 1
    %v991 = vperm.slane %v863, 1
    %v992 = vperm.slane %v864, 1
    %v993 = vperm.slane %v865, 1
    %v994 = vperm.slane %v866, 1
    %v995 = vperm.slane %v867, 1
    %v996 = vperm.slane %v868, 1
    %v997 = vperm.slane %v869, 1
    %v998 = vperm.slane %v870, 1
    %v999 = vperm.slane %v871, 1
    %v1000 = vperm.slane %v872, 1
    %v1001 = vperm.slane %v873, 1
    %v1002 = vperm.slane %v874, 1
    %v1003 = vperm.slane %v875, 1
    %v1004 = vperm.slane %v876, 1
    %v1005 = vperm.slane %v877, 1
    %v1006 = vperm.slane %v878, 1
    %v1007 = vperm.slane %v879, 1
    %v1008 = vperm.slane %v880, 1
    %v1009 = vperm.slane %v881, 1
    %v1010 = vperm.slane %v882, 1
    %v1011 = vperm.slane %v883, 1
    %v1012 = vperm.slane %v884, 1
    %v1013 = vperm.slane %v885, 1
    %v1014 = vperm.slane %v886, 1
    %v1015 = vperm.slane %v887, 1
    %v1016 = vperm.slane %v888, 1
    %v1017 = vperm.slane %v889, 1
    %v1018 = vmul.f32 %v812, %v954
    %v1019 = vmul.f32 %v812, %v955
    %v1020 = vmul.f32 %v812, %v956
    %v1021 = vmul.f32 %v812, %v957
    %v1022 = vmul.f32 %v812, %v958
    %v1023 = vmul.f32 %v812, %v959
    %v1024 = vmul.f32 %v812, %v960
    %v1025 = vmul.f32 %v812, %v961
    %v1026 = vmul.f32 %v812, %v962
    %v1027 = vmul.f32 %v812, %v963
    %v1028 = vmul.f32 %v812, %v964
    %v1029 = vmul.f32 %v812, %v965
    %v1030 = vmul.f32 %v812, %v966
    %v1031 = vmul.f32 %v812, %v967
    %v1032 = vmul.f32 %v812, %v968
    %v1033 = vmul.f32 %v812, %v969
    %v1034 = vmul.f32 %v812, %v970
    %v1035 = vmul.f32 %v812, %v971
    %v1036 = vmul.f32 %v812, %v972
    %v1037 = vmul.f32 %v812, %v973
    %v1038 = vmul.f32 %v812, %v974
    %v1039 = vmul.f32 %v812, %v975
    %v1040 = vmul.f32 %v812, %v976
    %v1041 = vmul.f32 %v812, %v977
    %v1042 = vmul.f32 %v812, %v978
    %v1043 = vmul.f32 %v812, %v979
    %v1044 = vmul.f32 %v812, %v980
    %v1045 = vmul.f32 %v812, %v981
    %v1046 = vmul.f32 %v812, %v982
    %v1047 = vmul.f32 %v812, %v983
    %v1048 = vmul.f32 %v812, %v984
    %v1049 = vmul.f32 %v812, %v985
    %v1050 = vmul.f32 %v812, %v986
    %v1051 = vmul.f32 %v812, %v987
    %v1052 = vmul.f32 %v812, %v988
    %v1053 = vmul.f32 %v812, %v989
    %v1054 = vmul.f32 %v812, %v990
    %v1055 = vmul.f32 %v812, %v991
    %v1056 = vmul.f32 %v812, %v992
    %v1057 = vmul.f32 %v812, %v993
    %v1058 = vmul.f32 %v812, %v994
    %v1059 = vmul.f32 %v812, %v995
    %v1060 = vmul.f32 %v812, %v996
    %v1061 = vmul.f32 %v812, %v997
    %v1062 = vmul.f32 %v812, %v998
    %v1063 = vmul.f32 %v812, %v999
    %v1064 = vmul.f32 %v812, %v1000
    %v1065 = vmul.f32 %v812, %v1001
    %v1066 = vmul.f32 %v812, %v1002
    %v1067 = vmul.f32 %v812, %v1003
    %v1068 = vmul.f32 %v812, %v1004
    %v1069 = vmul.f32 %v812, %v1005
    %v1070 = vmul.f32 %v812, %v1006
    %v1071 = vmul.f32 %v812, %v1007
    %v1072 = vmul.f32 %v812, %v1008
    %v1073 = vmul.f32 %v812, %v1009
    %v1074 = vmul.f32 %v812, %v1010
    %v1075 = vmul.f32 %v812, %v1011
    %v1076 = vmul.f32 %v812, %v1012
    %v1077 = vmul.f32 %v812, %v1013
    %v1078 = vmul.f32 %v812, %v1014
    %v1079 = vmul.f32 %v812, %v1015
    %v1080 = vmul.f32 %v812, %v1016
    %v1081 = vmul.f32 %v812, %v1017
    %v1082 = vmul.f32 %v816, %v954
    %v1083 = vmul.f32 %v816, %v955
    %v1084 = vmul.f32 %v816, %v956
    %v1085 = vmul.f32 %v816, %v957
    %v1086 = vmul.f32 %v816, %v958
    %v1087 = vmul.f32 %v816, %v959
    %v1088 = vmul.f32 %v816, %v960
    %v1089 = vmul.f32 %v816, %v961
    %v1090 = vmul.f32 %v816, %v962
    %v1091 = vmul.f32 %v816, %v963
    %v1092 = vmul.f32 %v816, %v964
    %v1093 = vmul.f32 %v816, %v965
    %v1094 = vmul.f32 %v816, %v966
    %v1095 = vmul.f32 %v816, %v967
    %v1096 = vmul.f32 %v816, %v968
    %v1097 = vmul.f32 %v816, %v969
    %v1098 = vmul.f32 %v816, %v970
    %v1099 = vmul.f32 %v816, %v971
    %v1100 = vmul.f32 %v816, %v972
    %v1101 = vmul.f32 %v816, %v973
    %v1102 = vmul.f32 %v816, %v974
    %v1103 = vmul.f32 %v816, %v975
    %v1104 = vmul.f32 %v816, %v976
    %v1105 = vmul.f32 %v816, %v977
    %v1106 = vmul.f32 %v816, %v978
    %v1107 = vmul.f32 %v816, %v979
    %v1108 = vmul.f32 %v816, %v980
    %v1109 = vmul.f32 %v816, %v981
    %v1110 = vmul.f32 %v816, %v982
    %v1111 = vmul.f32 %v816, %v983
    %v1112 = vmul.f32 %v816, %v984
    %v1113 = vmul.f32 %v816, %v985
    %v1114 = vmul.f32 %v816, %v986
    %v1115 = vmul.f32 %v816, %v987
    %v1116 = vmul.f32 %v816, %v988
    %v1117 = vmul.f32 %v816, %v989
    %v1118 = vmul.f32 %v816, %v990
    %v1119 = vmul.f32 %v816, %v991
    %v1120 = vmul.f32 %v816, %v992
    %v1121 = vmul.f32 %v816, %v993
    %v1122 = vmul.f32 %v816, %v994
    %v1123 = vmul.f32 %v816, %v995
    %v1124 = vmul.f32 %v816, %v996
    %v1125 = vmul.f32 %v816, %v997
    %v1126 = vmul.f32 %v816, %v998
    %v1127 = vmul.f32 %v816, %v999
    %v1128 = vmul.f32 %v816, %v1000
    %v1129 = vmul.f32 %v816, %v1001
    %v1130 = vmul.f32 %v816, %v1002
    %v1131 = vmul.f32 %v816, %v1003
    %v1132 = vmul.f32 %v816, %v1004
    %v1133 = vmul.f32 %v816, %v1005
    %v1134 = vmul.f32 %v816, %v1006
    %v1135 = vmul.f32 %v816, %v1007
    %v1136 = vmul.f32 %v816, %v1008
    %v1137 = vmul.f32 %v816, %v1009
    %v1138 = vmul.f32 %v816, %v1010
    %v1139 = vmul.f32 %v816, %v1011
    %v1140 = vmul.f32 %v816, %v1012
    %v1141 = vmul.f32 %v816, %v1013
    %v1142 = vmul.f32 %v816, %v1014
    %v1143 = vmul.f32 %v816, %v1015
    %v1144 = vmul.f32 %v816, %v1016
    %v1145 = vmul.f32 %v816, %v1017
    %v1146 = vmul.f32 %v820, %v954
    %v1147 = vmul.f32 %v820, %v955
    %v1148 = vmul.f32 %v820, %v956
    %v1149 = vmul.f32 %v820, %v957
    %v1150 = vmul.f32 %v820, %v958
    %v1151 = vmul.f32 %v820, %v959
    %v1152 = vmul.f32 %v820, %v960
    %v1153 = vmul.f32 %v820, %v961
    %v1154 = vmul.f32 %v820, %v962
    %v1155 = vmul.f32 %v820, %v963
    %v1156 = vmul.f32 %v820, %v964
    %v1157 = vmul.f32 %v820, %v965
    %v1158 = vmul.f32 %v820, %v966
    %v1159 = vmul.f32 %v820, %v967
    %v1160 = vmul.f32 %v820, %v968
    %v1161 = vmul.f32 %v820, %v969
    %v1162 = vmul.f32 %v820, %v970
    %v1163 = vmul.f32 %v820, %v971
    %v1164 = vmul.f32 %v820, %v972
    %v1165 = vmul.f32 %v820, %v973
    %v1166 = vmul.f32 %v820, %v974
    %v1167 = vmul.f32 %v820, %v975
    %v1168 = vmul.f32 %v820, %v976
    %v1169 = vmul.f32 %v820, %v977
    %v1170 = vmul.f32 %v820, %v978
    %v1171 = vmul.f32 %v820, %v979
    %v1172 = vmul.f32 %v820, %v980
    %v1173 = vmul.f32 %v820, %v981
    %v1174 = vmul.f32 %v820, %v982
    %v1175 = vmul.f32 %v820, %v983
    %v1176 = vmul.f32 %v820, %v984
    %v1177 = vmul.f32 %v820, %v985
    %v1178 = vmul.f32 %v820, %v986
    %v1179 = vmul.f32 %v820, %v987
    %v1180 = vmul.f32 %v820, %v988
    %v1181 = vmul.f32 %v820, %v989
    %v1182 = vmul.f32 %v820, %v990
    %v1183 = vmul.f32 %v820, %v991
    %v1184 = vmul.f32 %v820, %v992
    %v1185 = vmul.f32 %v820, %v993
    %v1186 = vmul.f32 %v820, %v994
    %v1187 = vmul.f32 %v820, %v995
    %v1188 = vmul.f32 %v820, %v996
    %v1189 = vmul.f32 %v820, %v997
    %v1190 = vmul.f32 %v820, %v998
    %v1191 = vmul.f32 %v820, %v999
    %v1192 = vmul.f32 %v820, %v1000
    %v1193 = vmul.f32 %v820, %v1001
    %v1194 = vmul.f32 %v820, %v1002
    %v1195 = vmul.f32 %v820, %v1003
    %v1196 = vmul.f32 %v820, %v1004
    %v1197 = vmul.f32 %v820, %v1005
    %v1198 = vmul.f32 %v820, %v1006
    %v1199 = vmul.f32 %v820, %v1007
    %v1200 = vmul.f32 %v820, %v1008
    %v1201 = vmul.f32 %v820, %v1009
    %v1202 = vmul.f32 %v820, %v1010
    %v1203 = vmul.f32 %v820, %v1011
    %v1204 = vmul.f32 %v820, %v1012
    %v1205 = vmul.f32 %v820, %v1013
    %v1206 = vmul.f32 %v820, %v1014
    %v1207 = vmul.f32 %v820, %v1015
    %v1208 = vmul.f32 %v820, %v1016
    %v1209 = vmul.f32 %v820, %v1017
    %v1210 = vmul.f32 %v824, %v954
    %v1211 = vmul.f32 %v824, %v955
    %v1212 = vmul.f32 %v824, %v956
    %v1213 = vmul.f32 %v824, %v957
    %v1214 = vmul.f32 %v824, %v958
    %v1215 = vmul.f32 %v824, %v959
    %v1216 = vmul.f32 %v824, %v960
    %v1217 = vmul.f32 %v824, %v961
    %v1218 = vmul.f32 %v824, %v962
    %v1219 = vmul.f32 %v824, %v963
    %v1220 = vmul.f32 %v824, %v964
    %v1221 = vmul.f32 %v824, %v965
    %v1222 = vmul.f32 %v824, %v966
    %v1223 = vmul.f32 %v824, %v967
    %v1224 = vmul.f32 %v824, %v968
    %v1225 = vmul.f32 %v824, %v969
    %v1226 = vmul.f32 %v824, %v970
    %v1227 = vmul.f32 %v824, %v971
    %v1228 = vmul.f32 %v824, %v972
    %v1229 = vmul.f32 %v824, %v973
    %v1230 = vmul.f32 %v824, %v974
    %v1231 = vmul.f32 %v824, %v975
    %v1232 = vmul.f32 %v824, %v976
    %v1233 = vmul.f32 %v824, %v977
    %v1234 = vmul.f32 %v824, %v978
    %v1235 = vmul.f32 %v824, %v979
    %v1236 = vmul.f32 %v824, %v980
    %v1237 = vmul.f32 %v824, %v981
    %v1238 = vmul.f32 %v824, %v982
    %v1239 = vmul.f32 %v824, %v983
    %v1240 = vmul.f32 %v824, %v984
    %v1241 = vmul.f32 %v824, %v985
    %v1242 = vmul.f32 %v824, %v986
    %v1243 = vmul.f32 %v824, %v987
    %v1244 = vmul.f32 %v824, %v988
    %v1245 = vmul.f32 %v824, %v989
    %v1246 = vmul.f32 %v824, %v990
    %v1247 = vmul.f32 %v824, %v991
    %v1248 = vmul.f32 %v824, %v992
    %v1249 = vmul.f32 %v824, %v993
    %v1250 = vmul.f32 %v824, %v994
    %v1251 = vmul.f32 %v824, %v995
    %v1252 = vmul.f32 %v824, %v996
    %v1253 = vmul.f32 %v824, %v997
    %v1254 = vmul.f32 %v824, %v998
    %v1255 = vmul.f32 %v824, %v999
    %v1256 = vmul.f32 %v824, %v1000
    %v1257 = vmul.f32 %v824, %v1001
    %v1258 = vmul.f32 %v824, %v1002
    %v1259 = vmul.f32 %v824, %v1003
    %v1260 = vmul.f32 %v824, %v1004
    %v1261 = vmul.f32 %v824, %v1005
    %v1262 = vmul.f32 %v824, %v1006
    %v1263 = vmul.f32 %v824, %v1007
    %v1264 = vmul.f32 %v824, %v1008
    %v1265 = vmul.f32 %v824, %v1009
    %v1266 = vmul.f32 %v824, %v1010
    %v1267 = vmul.f32 %v824, %v1011
    %v1268 = vmul.f32 %v824, %v1012
    %v1269 = vmul.f32 %v824, %v1013
    %v1270 = vmul.f32 %v824, %v1014
    %v1271 = vmul.f32 %v824, %v1015
    %v1272 = vmul.f32 %v824, %v1016
    %v1273 = vmul.f32 %v824, %v1017
    %v1274 = vadd.f32 %v554, %v1018
    %v1275 = vadd.f32 %v555, %v1019
    %v1276 = vadd.f32 %v556, %v1020
    %v1277 = vadd.f32 %v557, %v1021
    %v1278 = vadd.f32 %v558, %v1022
    %v1279 = vadd.f32 %v559, %v1023
    %v1280 = vadd.f32 %v560, %v1024
    %v1281 = vadd.f32 %v561, %v1025
    %v1282 = vadd.f32 %v562, %v1026
    %v1283 = vadd.f32 %v563, %v1027
    %v1284 = vadd.f32 %v564, %v1028
    %v1285 = vadd.f32 %v565, %v1029
    %v1286 = vadd.f32 %v566, %v1030
    %v1287 = vadd.f32 %v567, %v1031
    %v1288 = vadd.f32 %v568, %v1032
    %v1289 = vadd.f32 %v569, %v1033
    %v1290 = vadd.f32 %v570, %v1034
    %v1291 = vadd.f32 %v571, %v1035
    %v1292 = vadd.f32 %v572, %v1036
    %v1293 = vadd.f32 %v573, %v1037
    %v1294 = vadd.f32 %v574, %v1038
    %v1295 = vadd.f32 %v575, %v1039
    %v1296 = vadd.f32 %v576, %v1040
    %v1297 = vadd.f32 %v577, %v1041
    %v1298 = vadd.f32 %v578, %v1042
    %v1299 = vadd.f32 %v579, %v1043
    %v1300 = vadd.f32 %v580, %v1044
    %v1301 = vadd.f32 %v581, %v1045
    %v1302 = vadd.f32 %v582, %v1046
    %v1303 = vadd.f32 %v583, %v1047
    %v1304 = vadd.f32 %v584, %v1048
    %v1305 = vadd.f32 %v585, %v1049
    %v1306 = vadd.f32 %v586, %v1050
    %v1307 = vadd.f32 %v587, %v1051
    %v1308 = vadd.f32 %v588, %v1052
    %v1309 = vadd.f32 %v589, %v1053
    %v1310 = vadd.f32 %v590, %v1054
    %v1311 = vadd.f32 %v591, %v1055
    %v1312 = vadd.f32 %v592, %v1056
    %v1313 = vadd.f32 %v593, %v1057
    %v1314 = vadd.f32 %v594, %v1058
    %v1315 = vadd.f32 %v595, %v1059
    %v1316 = vadd.f32 %v596, %v1060
    %v1317 = vadd.f32 %v597, %v1061
    %v1318 = vadd.f32 %v598, %v1062
    %v1319 = vadd.f32 %v599, %v1063
    %v1320 = vadd.f32 %v600, %v1064
    %v1321 = vadd.f32 %v601, %v1065
    %v1322 = vadd.f32 %v602, %v1066
    %v1323 = vadd.f32 %v603, %v1067
    %v1324 = vadd.f32 %v604, %v1068
    %v1325 = vadd.f32 %v605, %v1069
    %v1326 = vadd.f32 %v606, %v1070
    %v1327 = vadd.f32 %v607, %v1071
    %v1328 = vadd.f32 %v608, %v1072
    %v1329 = vadd.f32 %v609, %v1073
    %v1330 = vadd.f32 %v610, %v1074
    %v1331 = vadd.f32 %v611, %v1075
    %v1332 = vadd.f32 %v612, %v1076
    %v1333 = vadd.f32 %v613, %v1077
    %v1334 = vadd.f32 %v614, %v1078
    %v1335 = vadd.f32 %v615, %v1079
    %v1336 = vadd.f32 %v616, %v1080
    %v1337 = vadd.f32 %v617, %v1081
    %v1338 = vadd.f32 %v618, %v1082
    %v1339 = vadd.f32 %v619, %v1083
    %v1340 = vadd.f32 %v620, %v1084
    %v1341 = vadd.f32 %v621, %v1085
    %v1342 = vadd.f32 %v622, %v1086
    %v1343 = vadd.f32 %v623, %v1087
    %v1344 = vadd.f32 %v624, %v1088
    %v1345 = vadd.f32 %v625, %v1089
    %v1346 = vadd.f32 %v626, %v1090
    %v1347 = vadd.f32 %v627, %v1091
    %v1348 = vadd.f32 %v628, %v1092
    %v1349 = vadd.f32 %v629, %v1093
    %v1350 = vadd.f32 %v630, %v1094
    %v1351 = vadd.f32 %v631, %v1095
    %v1352 = vadd.f32 %v632, %v1096
    %v1353 = vadd.f32 %v633, %v1097
    %v1354 = vadd.f32 %v634, %v1098
    %v1355 = vadd.f32 %v635, %v1099
    %v1356 = vadd.f32 %v636, %v1100
    %v1357 = vadd.f32 %v637, %v1101
    %v1358 = vadd.f32 %v638, %v1102
    %v1359 = vadd.f32 %v639, %v1103
    %v1360 = vadd.f32 %v640, %v1104
    %v1361 = vadd.f32 %v641, %v1105
    %v1362 = vadd.f32 %v642, %v1106
    %v1363 = vadd.f32 %v643, %v1107
    %v1364 = vadd.f32 %v644, %v1108
    %v1365 = vadd.f32 %v645, %v1109
    %v1366 = vadd.f32 %v646, %v1110
    %v1367 = vadd.f32 %v647, %v1111
    %v1368 = vadd.f32 %v648, %v1112
    %v1369 = vadd.f32 %v649, %v1113
    %v1370 = vadd.f32 %v650, %v1114
    %v1371 = vadd.f32 %v651, %v1115
    %v1372 = vadd.f32 %v652, %v1116
    %v1373 = vadd.f32 %v653, %v1117
    %v1374 = vadd.f32 %v654, %v1118
    %v1375 = vadd.f32 %v655, %v1119
    %v1376 = vadd.f32 %v656, %v1120
    %v1377 = vadd.f32 %v657, %v1121
    %v1378 = vadd.f32 %v658, %v1122
    %v1379 = vadd.f32 %v659, %v1123
    %v1380 = vadd.f32 %v660, %v1124
    %v1381 = vadd.f32 %v661, %v1125
    %v1382 = vadd.f32 %v662, %v1126
    %v1383 = vadd.f32 %v663, %v1127
    %v1384 = vadd.f32 %v664, %v1128
    %v1385 = vadd.f32 %v665, %v1129
    %v1386 = vadd.f32 %v666, %v1130
    %v1387 = vadd.f32 %v667, %v1131
    %v1388 = vadd.f32 %v668, %v1132
    %v1389 = vadd.f32 %v669, %v1133
    %v1390 = vadd.f32 %v670, %v1134
    %v1391 = vadd.f32 %v671, %v1135
    %v1392 = vadd.f32 %v672, %v1136
    %v1393 = vadd.f32 %v673, %v1137
    %v1394 = vadd.f32 %v674, %v1138
    %v1395 = vadd.f32 %v675, %v1139
    %v1396 = vadd.f32 %v676, %v1140
    %v1397 = vadd.f32 %v677, %v1141
    %v1398 = vadd.f32 %v678, %v1142
    %v1399 = vadd.f32 %v679, %v1143
    %v1400 = vadd.f32 %v680, %v1144
    %v1401 = vadd.f32 %v681, %v1145
    %v1402 = vadd.f32 %v682, %v1146
    %v1403 = vadd.f32 %v683, %v1147
    %v1404 = vadd.f32 %v684, %v1148
    %v1405 = vadd.f32 %v685, %v1149
    %v1406 = vadd.f32 %v686, %v1150
    %v1407 = vadd.f32 %v687, %v1151
    %v1408 = vadd.f32 %v688, %v1152
    %v1409 = vadd.f32 %v689, %v1153
    %v1410 = vadd.f32 %v690, %v1154
    %v1411 = vadd.f32 %v691, %v1155
    %v1412 = vadd.f32 %v692, %v1156
    %v1413 = vadd.f32 %v693, %v1157
    %v1414 = vadd.f32 %v694, %v1158
    %v1415 = vadd.f32 %v695, %v1159
    %v1416 = vadd.f32 %v696, %v1160
    %v1417 = vadd.f32 %v697, %v1161
    %v1418 = vadd.f32 %v698, %v1162
    %v1419 = vadd.f32 %v699, %v1163
    %v1420 = vadd.f32 %v700, %v1164
    %v1421 = vadd.f32 %v701, %v1165
    %v1422 = vadd.f32 %v702, %v1166
    %v1423 = vadd.f32 %v703, %v1167
    %v1424 = vadd.f32 %v704, %v1168
    %v1425 = vadd.f32 %v705, %v1169
    %v1426 = vadd.f32 %v706, %v1170
    %v1427 = vadd.f32 %v707, %v1171
    %v1428 = vadd.f32 %v708, %v1172
    %v1429 = vadd.f32 %v709, %v1173
    %v1430 = vadd.f32 %v710, %v1174
    %v1431 = vadd.f32 %v711, %v1175
    %v1432 = vadd.f32 %v712, %v1176
    %v1433 = vadd.f32 %v713, %v1177
    %v1434 = vadd.f32 %v714, %v1178
    %v1435 = vadd.f32 %v715, %v1179
    %v1436 = vadd.f32 %v716, %v1180
    %v1437 = vadd.f32 %v717, %v1181
    %v1438 = vadd.f32 %v718, %v1182
    %v1439 = vadd.f32 %v719, %v1183
    %v1440 = vadd.f32 %v720, %v1184
    %v1441 = vadd.f32 %v721, %v1185
    %v1442 = vadd.f32 %v722, %v1186
    %v1443 = vadd.f32 %v723, %v1187
    %v1444 = vadd.f32 %v724, %v1188
    %v1445 = vadd.f32 %v725, %v1189
    %v1446 = vadd.f32 %v726, %v1190
    %v1447 = vadd.f32 %v727, %v1191
    %v1448 = vadd.f32 %v728, %v1192
    %v1449 = vadd.f32 %v729, %v1193
    %v1450 = vadd.f32 %v730, %v1194
    %v1451 = vadd.f32 %v731, %v1195
    %v1452 = vadd.f32 %v732, %v1196
    %v1453 = vadd.f32 %v733, %v1197
    %v1454 = vadd.f32 %v734, %v1198
    %v1455 = vadd.f32 %v735, %v1199
    %v1456 = vadd.f32 %v736, %v1200
    %v1457 = vadd.f32 %v737, %v1201
    %v1458 = vadd.f32 %v738, %v1202
    %v1459 = vadd.f32 %v739, %v1203
    %v1460 = vadd.f32 %v740, %v1204
    %v1461 = vadd.f32 %v741, %v1205
    %v1462 = vadd.f32 %v742, %v1206
    %v1463 = vadd.f32 %v743, %v1207
    %v1464 = vadd.f32 %v744, %v1208
    %v1465 = vadd.f32 %v745, %v1209
    %v1466 = vadd.f32 %v746, %v1210
    %v1467 = vadd.f32 %v747, %v1211
    %v1468 = vadd.f32 %v748, %v1212
    %v1469 = vadd.f32 %v749, %v1213
    %v1470 = vadd.f32 %v750, %v1214
    %v1471 = vadd.f32 %v751, %v1215
    %v1472 = vadd.f32 %v752, %v1216
    %v1473 = vadd.f32 %v753, %v1217
    %v1474 = vadd.f32 %v754, %v1218
    %v1475 = vadd.f32 %v755, %v1219
    %v1476 = vadd.f32 %v756, %v1220
    %v1477 = vadd.f32 %v757, %v1221
    %v1478 = vadd.f32 %v758, %v1222
    %v1479 = vadd.f32 %v759, %v1223
    %v1480 = vadd.f32 %v760, %v1224
    %v1481 = vadd.f32 %v761, %v1225
    %v1482 = vadd.f32 %v762, %v1226
    %v1483 = vadd.f32 %v763, %v1227
    %v1484 = vadd.f32 %v764, %v1228
    %v1485 = vadd.f32 %v765, %v1229
    %v1486 = vadd.f32 %v766, %v1230
    %v1487 = vadd.f32 %v767, %v1231
    %v1488 = vadd.f32 %v768, %v1232
    %v1489 = vadd.f32 %v769, %v1233
    %v1490 = vadd.f32 %v770, %v1234
    %v1491 = vadd.f32 %v771, %v1235
    %v1492 = vadd.f32 %v772, %v1236
    %v1493 = vadd.f32 %v773, %v1237
    %v1494 = vadd.f32 %v774, %v1238
    %v1495 = vadd.f32 %v775, %v1239
    %v1496 = vadd.f32 %v776, %v1240
    %v1497 = vadd.f32 %v777, %v1241
    %v1498 = vadd.f32 %v778, %v1242
    %v1499 = vadd.f32 %v779, %v1243
    %v1500 = vadd.f32 %v780, %v1244
    %v1501 = vadd.f32 %v781, %v1245
    %v1502 = vadd.f32 %v782, %v1246
    %v1503 = vadd.f32 %v783, %v1247
    %v1504 = vadd.f32 %v784, %v1248
    %v1505 = vadd.f32 %v785, %v1249
    %v1506 = vadd.f32 %v786, %v1250
    %v1507 = vadd.f32 %v787, %v1251
    %v1508 = vadd.f32 %v788, %v1252
    %v1509 = vadd.f32 %v789, %v1253
    %v1510 = vadd.f32 %v790, %v1254
    %v1511 = vadd.f32 %v791, %v1255
    %v1512 = vadd.f32 %v792, %v1256
    %v1513 = vadd.f32 %v793, %v1257
    %v1514 = vadd.f32 %v794, %v1258
    %v1515 = vadd.f32 %v795, %v1259
    %v1516 = vadd.f32 %v796, %v1260
    %v1517 = vadd.f32 %v797, %v1261
    %v1518 = vadd.f32 %v798, %v1262
    %v1519 = vadd.f32 %v799, %v1263
    %v1520 = vadd.f32 %v800, %v1264
    %v1521 = vadd.f32 %v801, %v1265
    %v1522 = vadd.f32 %v802, %v1266
    %v1523 = vadd.f32 %v803, %v1267
    %v1524 = vadd.f32 %v804, %v1268
    %v1525 = vadd.f32 %v805, %v1269
    %v1526 = vadd.f32 %v806, %v1270
    %v1527 = vadd.f32 %v807, %v1271
    %v1528 = vadd.f32 %v808, %v1272
    %v1529 = vadd.f32 %v809, %v1273
    %v1530 = vmul.f32 %v1274, 0.5
    %v1531 = vmul.f32 %v1275, 0.5
    %v1532 = vmul.f32 %v1276, 0.5
    %v1533 = vmul.f32 %v1277, 0.5
    %v1534 = vmul.f32 %v1278, 0.5
    %v1535 = vmul.f32 %v1279, 0.5
    %v1536 = vmul.f32 %v1280, 0.5
    %v1537 = vmul.f32 %v1281, 0.5
    %v1538 = vmul.f32 %v1282, 0.5
    %v1539 = vmul.f32 %v1283, 0.5
    %v1540 = vmul.f32 %v1284, 0.5
    %v1541 = vmul.f32 %v1285, 0.5
    %v1542 = vmul.f32 %v1286, 0.5
    %v1543 = vmul.f32 %v1287, 0.5
    %v1544 = vmul.f32 %v1288, 0.5
    %v1545 = vmul.f32 %v1289, 0.5
    %v1546 = vmul.f32 %v1290, 0.5
    %v1547 = vmul.f32 %v1291, 0.5
    %v1548 = vmul.f32 %v1292, 0.5
    %v1549 = vmul.f32 %v1293, 0.5
    %v1550 = vmul.f32 %v1294, 0.5
    %v1551 = vmul.f32 %v1295, 0.5
    %v1552 = vmul.f32 %v1296, 0.5
    %v1553 = vmul.f32 %v1297, 0.5
    %v1554 = vmul.f32 %v1298, 0.5
    %v1555 = vmul.f32 %v1299, 0.5
    %v1556 = vmul.f32 %v1300, 0.5
    %v1557 = vmul.f32 %v1301, 0.5
    %v1558 = vmul.f32 %v1302, 0.5
    %v1559 = vmul.f32 %v1303, 0.5
    %v1560 = vmul.f32 %v1304, 0.5
    %v1561 = vmul.f32 %v1305, 0.5
    %v1562 = vmul.f32 %v1306, 0.5
    %v1563 = vmul.f32 %v1307, 0.5
    %v1564 = vmul.f32 %v1308, 0.5
    %v1565 = vmul.f32 %v1309, 0.5
    %v1566 = vmul.f32 %v1310, 0.5
    %v1567 = vmul.f32 %v1311, 0.5
    %v1568 = vmul.f32 %v1312, 0.5
    %v1569 = vmul.f32 %v1313, 0.5
    %v1570 = vmul.f32 %v1314, 0.5
    %v1571 = vmul.f32 %v1315, 0.5
    %v1572 = vmul.f32 %v1316, 0.5
    %v1573 = vmul.f32 %v1317, 0.5
    %v1574 = vmul.f32 %v1318, 0.5
    %v1575 = vmul.f32 %v1319, 0.5
    %v1576 = vmul.f32 %v1320, 0.5
    %v1577 = vmul.f32 %v1321, 0.5
    %v1578 = vmul.f32 %v1322, 0.5
    %v1579 = vmul.f32 %v1323, 0.5
    %v1580 = vmul.f32 %v1324, 0.5
    %v1581 = vmul.f32 %v1325, 0.5
    %v1582 = vmul.f32 %v1326, 0.5
    %v1583 = vmul.f32 %v1327, 0.5
    %v1584 = vmul.f32 %v1328, 0.5
    %v1585 = vmul.f32 %v1329, 0.5
    %v1586 = vmul.f32 %v1330, 0.5
    %v1587 = vmul.f32 %v1331, 0.5
    %v1588 = vmul.f32 %v1332, 0.5
    %v1589 = vmul.f32 %v1333, 0.5
    %v1590 = vmul.f32 %v1334, 0.5
    %v1591 = vmul.f32 %v1335, 0.5
    %v1592 = vmul.f32 %v1336, 0.5
    %v1593 = vmul.f32 %v1337, 0.5
    %v1594 = vmul.f32 %v1338, 0.5
    %v1595 = vmul.f32 %v1339, 0.5
    %v1596 = vmul.f32 %v1340, 0.5
    %v1597 = vmul.f32 %v1341, 0.5
    %v1598 = vmul.f32 %v1342, 0.5
    %v1599 = vmul.f32 %v1343, 0.5
    %v1600 = vmul.f32 %v1344, 0.5
    %v1601 = vmul.f32 %v1345, 0.5
    %v1602 = vmul.f32 %v1346, 0.5
    %v1603 = vmul.f32 %v1347, 0.5
    %v1604 = vmul.f32 %v1348, 0.5
    %v1605 = vmul.f32 %v1349, 0.5
    %v1606 = vmul.f32 %v1350, 0.5
    %v1607 = vmul.f32 %v1351, 0.5
    %v1608 = vmul.f32 %v1352, 0.5
    %v1609 = vmul.f32 %v1353, 0.5
    %v1610 = vmul.f32 %v1354, 0.5
    %v1611 = vmul.f32 %v1355, 0.5
    %v1612 = vmul.f32 %v1356, 0.5
    %v1613 = vmul.f32 %v1357, 0.5
    %v1614 = vmul.f32 %v1358, 0.5
    %v1615 = vmul.f32 %v1359, 0.5
    %v1616 = vmul.f32 %v1360, 0.5
    %v1617 = vmul.f32 %v1361, 0.5
    %v1618 = vmul.f32 %v1362, 0.5
    %v1619 = vmul.f32 %v1363, 0.5
    %v1620 = vmul.f32 %v1364, 0.5
    %v1621 = vmul.f32 %v1365, 0.5
    %v1622 = vmul.f32 %v1366, 0.5
    %v1623 = vmul.f32 %v1367, 0.5
    %v1624 = vmul.f32 %v1368, 0.5
    %v1625 = vmul.f32 %v1369, 0.5
    %v1626 = vmul.f32 %v1370, 0.5
    %v1627 = vmul.f32 %v1371, 0.5
    %v1628 = vmul.f32 %v1372, 0.5
    %v1629 = vmul.f32 %v1373, 0.5
    %v1630 = vmul.f32 %v1374, 0.5
    %v1631 = vmul.f32 %v1375, 0.5
    %v1632 = vmul.f32 %v1376, 0.5
    %v1633 = vmul.f32 %v1377, 0.5
    %v1634 = vmul.f32 %v1378, 0.5
    %v1635 = vmul.f32 %v1379, 0.5
    %v1636 = vmul.f32 %v1380, 0.5
    %v1637 = vmul.f32 %v1381, 0.5
    %v1638 = vmul.f32 %v1382, 0.5
    %v1639 = vmul.f32 %v1383, 0.5
    %v1640 = vmul.f32 %v1384, 0.5
    %v1641 = vmul.f32 %v1385, 0.5
    %v1642 = vmul.f32 %v1386, 0.5
    %v1643 = vmul.f32 %v1387, 0.5
    %v1644 = vmul.f32 %v1388, 0.5
    %v1645 = vmul.f32 %v1389, 0.5
    %v1646 = vmul.f32 %v1390, 0.5
    %v1647 = vmul.f32 %v1391, 0.5
    %v1648 = vmul.f32 %v1392, 0.5
    %v1649 = vmul.f32 %v1393, 0.5
    %v1650 = vmul.f32 %v1394, 0.5
    %v1651 = vmul.f32 %v1395, 0.5
    %v1652 = vmul.f32 %v1396, 0.5
    %v1653 = vmul.f32 %v1397, 0.5
    %v1654 = vmul.f32 %v1398, 0.5
    %v1655 = vmul.f32 %v1399, 0.5
    %v1656 = vmul.f32 %v1400, 0.5
    %v1657 = vmul.f32 %v1401, 0.5
    %v1658 = vmul.f32 %v1402, 0.5
    %v1659 = vmul.f32 %v1403, 0.5
    %v1660 = vmul.f32 %v1404, 0.5
    %v1661 = vmul.f32 %v1405, 0.5
    %v1662 = vmul.f32 %v1406, 0.5
    %v1663 = vmul.f32 %v1407, 0.5
    %v1664 = vmul.f32 %v1408, 0.5
    %v1665 = vmul.f32 %v1409, 0.5
    %v1666 = vmul.f32 %v1410, 0.5
    %v1667 = vmul.f32 %v1411, 0.5
    %v1668 = vmul.f32 %v1412, 0.5
    %v1669 = vmul.f32 %v1413, 0.5
    %v1670 = vmul.f32 %v1414, 0.5
    %v1671 = vmul.f32 %v1415, 0.5
    %v1672 = vmul.f32 %v1416, 0.5
    %v1673 = vmul.f32 %v1417, 0.5
    %v1674 = vmul.f32 %v1418, 0.5
    %v1675 = vmul.f32 %v1419, 0.5
    %v1676 = vmul.f32 %v1420, 0.5
    %v1677 = vmul.f32 %v1421, 0.5
    %v1678 = vmul.f32 %v1422, 0.5
    %v1679 = vmul.f32 %v1423, 0.5
    %v1680 = vmul.f32 %v1424, 0.5
    %v1681 = vmul.f32 %v1425, 0.5
    %v1682 = vmul.f32 %v1426, 0.5
    %v1683 = vmul.f32 %v1427, 0.5
    %v1684 = vmul.f32 %v1428, 0.5
    %v1685 = vmul.f32 %v1429, 0.5
    %v1686 = vmul.f32 %v1430, 0.5
    %v1687 = vmul.f32 %v1431, 0.5
    %v1688 = vmul.f32 %v1432, 0.5
    %v1689 = vmul.f32 %v1433, 0.5
    %v1690 = vmul.f32 %v1434, 0.5
    %v1691 = vmul.f32 %v1435, 0.5
    %v1692 = vmul.f32 %v1436, 0.5
    %v1693 = vmul.f32 %v1437, 0.5
    %v1694 = vmul.f32 %v1438, 0.5
    %v1695 = vmul.f32 %v1439, 0.5
    %v1696 = vmul.f32 %v1440, 0.5
    %v1697 = vmul.f32 %v1441, 0.5
    %v1698 = vmul.f32 %v1442, 0.5
    %v1699 = vmul.f32 %v1443, 0.5
    %v1700 = vmul.f32 %v1444, 0.5
    %v1701 = vmul.f32 %v1445, 0.5
    %v1702 = vmul.f32 %v1446, 0.5
    %v1703 = vmul.f32 %v1447, 0.5
    %v1704 = vmul.f32 %v1448, 0.5
    %v1705 = vmul.f32 %v1449, 0.5
    %v1706 = vmul.f32 %v1450, 0.5
    %v1707 = vmul.f32 %v1451, 0.5
    %v1708 = vmul.f32 %v1452, 0.5
    %v1709 = vmul.f32 %v1453, 0.5
    %v1710 = vmul.f32 %v1454, 0.5
    %v1711 = vmul.f32 %v1455, 0.5
    %v1712 = vmul.f32 %v1456, 0.5
    %v1713 = vmul.f32 %v1457, 0.5
    %v1714 = vmul.f32 %v1458, 0.5
    %v1715 = vmul.f32 %v1459, 0.5
    %v1716 = vmul.f32 %v1460, 0.5
    %v1717 = vmul.f32 %v1461, 0.5
    %v1718 = vmul.f32 %v1462, 0.5
    %v1719 = vmul.f32 %v1463, 0.5
    %v1720 = vmul.f32 %v1464, 0.5
    %v1721 = vmul.f32 %v1465, 0.5
    %v1722 = vmul.f32 %v1466, 0.5
    %v1723 = vmul.f32 %v1467, 0.5
    %v1724 = vmul.f32 %v1468, 0.5
    %v1725 = vmul.f32 %v1469, 0.5
    %v1726 = vmul.f32 %v1470, 0.5
    %v1727 = vmul.f32 %v1471, 0.5
    %v1728 = vmul.f32 %v1472, 0.5
    %v1729 = vmul.f32 %v1473, 0.5
    %v1730 = vmul.f32 %v1474, 0.5
    %v1731 = vmul.f32 %v1475, 0.5
    %v1732 = vmul.f32 %v1476, 0.5
    %v1733 = vmul.f32 %v1477, 0.5
    %v1734 = vmul.f32 %v1478, 0.5
    %v1735 = vmul.f32 %v1479, 0.5
    %v1736 = vmul.f32 %v1480, 0.5
    %v1737 = vmul.f32 %v1481, 0.5
    %v1738 = vmul.f32 %v1482, 0.5
    %v1739 = vmul.f32 %v1483, 0.5
    %v1740 = vmul.f32 %v1484, 0.5
    %v1741 = vmul.f32 %v1485, 0.5
    %v1742 = vmul.f32 %v1486, 0.5
    %v1743 = vmul.f32 %v1487, 0.5
    %v1744 = vmul.f32 %v1488, 0.5
    %v1745 = vmul.f32 %v1489, 0.5
    %v1746 = vmul.f32 %v1490, 0.5
    %v1747 = vmul.f32 %v1491, 0.5
    %v1748 = vmul.f32 %v1492, 0.5
    %v1749 = vmul.f32 %v1493, 0.5
    %v1750 = vmul.f32 %v1494, 0.5
    %v1751 = vmul.f32 %v1495, 0.5
    %v1752 = vmul.f32 %v1496, 0.5
    %v1753 = vmul.f32 %v1497, 0.5
    %v1754 = vmul.f32 %v1498, 0.5
    %v1755 = vmul.f32 %v1499, 0.5
    %v1756 = vmul.f32 %v1500, 0.5
    %v1757 = vmul.f32 %v1501, 0.5
    %v1758 = vmul.f32 %v1502, 0.5
    %v1759 = vmul.f32 %v1503, 0.5
    %v1760 = vmul.f32 %v1504, 0.5
    %v1761 = vmul.f32 %v1505, 0.5
    %v1762 = vmul.f32 %v1506, 0.5
    %v1763 = vmul.f32 %v1507, 0.5
    %v1764 = vmul.f32 %v1508, 0.5
    %v1765 = vmul.f32 %v1509, 0.5
    %v1766 = vmul.f32 %v1510, 0.5
    %v1767 = vmul.f32 %v1511, 0.5
    %v1768 = vmul.f32 %v1512, 0.5
    %v1769 = vmul.f32 %v1513, 0.5
    %v1770 = vmul.f32 %v1514, 0.5
    %v1771 = vmul.f32 %v1515, 0.5
    %v1772 = vmul.f32 %v1516, 0.5
    %v1773 = vmul.f32 %v1517, 0.5
    %v1774 = vmul.f32 %v1518, 0.5
    %v1775 = vmul.f32 %v1519, 0.5
    %v1776 = vmul.f32 %v1520, 0.5
    %v1777 = vmul.f32 %v1521, 0.5
    %v1778 = vmul.f32 %v1522, 0.5
    %v1779 = vmul.f32 %v1523, 0.5
    %v1780 = vmul.f32 %v1524, 0.5
    %v1781 = vmul.f32 %v1525, 0.5
    %v1782 = vmul.f32 %v1526, 0.5
    %v1783 = vmul.f32 %v1527, 0.5
    %v1784 = vmul.f32 %v1528, 0.5
    %v1785 = vmul.f32 %v1529, 0.5
    %v1786 = vmul.f32 %v49, 0.5
    %v1787 = vmul.f32 %v50, 0.5
    %v1788 = vmul.f32 %v51, 0.5
    %v1789 = vmul.f32 %v52, 0.5
    %1791 = vset.pattern.permute.xlu0 3
    %1792 = vperm.xlu0 %1791, %v1786
    %v1793 = vpop.permute.xlu0 %1792
    %1796 = vset.pattern.permute.xlu0 3
    %1797 = vperm.xlu0 %1796, %v1787
    %v1798 = vpop.permute.xlu0 %1797
    %1801 = vset.pattern.permute.xlu0 3
    %1802 = vperm.xlu0 %1801, %v1788
    %v1803 = vpop.permute.xlu0 %1802
    %1806 = vset.pattern.permute.xlu0 3
    %1807 = vperm.xlu0 %1806, %v1789
    %v1808 = vpop.permute.xlu0 %1807
    %v1810 = vmul.f32 %v1793, %v1274
    %v1811 = vmul.f32 %v1793, %v1275
    %v1812 = vmul.f32 %v1793, %v1276
    %v1813 = vmul.f32 %v1793, %v1277
    %v1814 = vmul.f32 %v1793, %v1278
    %v1815 = vmul.f32 %v1793, %v1279
    %v1816 = vmul.f32 %v1793, %v1280
    %v1817 = vmul.f32 %v1793, %v1281
    %v1818 = vmul.f32 %v1793, %v1282
    %v1819 = vmul.f32 %v1793, %v1283
    %v1820 = vmul.f32 %v1793, %v1284
    %v1821 = vmul.f32 %v1793, %v1285
    %v1822 = vmul.f32 %v1793, %v1286
    %v1823 = vmul.f32 %v1793, %v1287
    %v1824 = vmul.f32 %v1793, %v1288
    %v1825 = vmul.f32 %v1793, %v1289
    %v1826 = vmul.f32 %v1793, %v1290
    %v1827 = vmul.f32 %v1793, %v1291
    %v1828 = vmul.f32 %v1793, %v1292
    %v1829 = vmul.f32 %v1793, %v1293
    %v1830 = vmul.f32 %v1793, %v1294
    %v1831 = vmul.f32 %v1793, %v1295
    %v1832 = vmul.f32 %v1793, %v1296
    %v1833 = vmul.f32 %v1793, %v1297
    %v1834 = vmul.f32 %v1793, %v1298
    %v1835 = vmul.f32 %v1793, %v1299
    %v1836 = vmul.f32 %v1793, %v1300
    %v1837 = vmul.f32 %v1793, %v1301
    %v1838 = vmul.f32 %v1793, %v1302
    %v1839 = vmul.f32 %v1793, %v1303
    %v1840 = vmul.f32 %v1793, %v1304
    %v1841 = vmul.f32 %v1793, %v1305
    %v1842 = vmul.f32 %v1793, %v1306
    %v1843 = vmul.f32 %v1793, %v1307
    %v1844 = vmul.f32 %v1793, %v1308
    %v1845 = vmul.f32 %v1793, %v1309
    %v1846 = vmul.f32 %v1793, %v1310
    %v1847 = vmul.f32 %v1793, %v1311
    %v1848 = vmul.f32 %v1793, %v1312
    %v1849 = vmul.f32 %v1793, %v1313
    %v1850 = vmul.f32 %v1793, %v1314
    %v1851 = vmul.f32 %v1793, %v1315
    %v1852 = vmul.f32 %v1793, %v1316
    %v1853 = vmul.f32 %v1793, %v1317
    %v1854 = vmul.f32 %v1793, %v1318
    %v1855 = vmul.f32 %v1793, %v1319
    %v1856 = vmul.f32 %v1793, %v1320
    %v1857 = vmul.f32 %v1793, %v1321
    %v1858 = vmul.f32 %v1793, %v1322
    %v1859 = vmul.f32 %v1793, %v1323
    %v1860 = vmul.f32 %v1793, %v1324
    %v1861 = vmul.f32 %v1793, %v1325
    %v1862 = vmul.f32 %v1793, %v1326
    %v1863 = vmul.f32 %v1793, %v1327
    %v1864 = vmul.f32 %v1793, %v1328
    %v1865 = vmul.f32 %v1793, %v1329
    %v1866 = vmul.f32 %v1793, %v1330
    %v1867 = vmul.f32 %v1793, %v1331
    %v1868 = vmul.f32 %v1793, %v1332
    %v1869 = vmul.f32 %v1793, %v1333
    %v1870 = vmul.f32 %v1793, %v1334
    %v1871 = vmul.f32 %v1793, %v1335
    %v1872 = vmul.f32 %v1793, %v1336
    %v1873 = vmul.f32 %v1793, %v1337
    %v1874 = vmul.f32 %v1798, %v1338
    %v1875 = vmul.f32 %v1798, %v1339
    %v1876 = vmul.f32 %v1798, %v1340
    %v1877 = vmul.f32 %v1798, %v1341
    %v1878 = vmul.f32 %v1798, %v1342
    %v1879 = vmul.f32 %v1798, %v1343
    %v1880 = vmul.f32 %v1798, %v1344
    %v1881 = vmul.f32 %v1798, %v1345
    %v1882 = vmul.f32 %v1798, %v1346
    %v1883 = vmul.f32 %v1798, %v1347
    %v1884 = vmul.f32 %v1798, %v1348
    %v1885 = vmul.f32 %v1798, %v1349
    %v1886 = vmul.f32 %v1798, %v1350
    %v1887 = vmul.f32 %v1798, %v1351
    %v1888 = vmul.f32 %v1798, %v1352
    %v1889 = vmul.f32 %v1798, %v1353
    %v1890 = vmul.f32 %v1798, %v1354
    %v1891 = vmul.f32 %v1798, %v1355
    %v1892 = vmul.f32 %v1798, %v1356
    %v1893 = vmul.f32 %v1798, %v1357
    %v1894 = vmul.f32 %v1798, %v1358
    %v1895 = vmul.f32 %v1798, %v1359
    %v1896 = vmul.f32 %v1798, %v1360
    %v1897 = vmul.f32 %v1798, %v1361
    %v1898 = vmul.f32 %v1798, %v1362
    %v1899 = vmul.f32 %v1798, %v1363
    %v1900 = vmul.f32 %v1798, %v1364
    %v1901 = vmul.f32 %v1798, %v1365
    %v1902 = vmul.f32 %v1798, %v1366
    %v1903 = vmul.f32 %v1798, %v1367
    %v1904 = vmul.f32 %v1798, %v1368
    %v1905 = vmul.f32 %v1798, %v1369
    %v1906 = vmul.f32 %v1798, %v1370
    %v1907 = vmul.f32 %v1798, %v1371
    %v1908 = vmul.f32 %v1798, %v1372
    %v1909 = vmul.f32 %v1798, %v1373
    %v1910 = vmul.f32 %v1798, %v1374
    %v1911 = vmul.f32 %v1798, %v1375
    %v1912 = vmul.f32 %v1798, %v1376
    %v1913 = vmul.f32 %v1798, %v1377
    %v1914 = vmul.f32 %v1798, %v1378
    %v1915 = vmul.f32 %v1798, %v1379
    %v1916 = vmul.f32 %v1798, %v1380
    %v1917 = vmul.f32 %v1798, %v1381
    %v1918 = vmul.f32 %v1798, %v1382
    %v1919 = vmul.f32 %v1798, %v1383
    %v1920 = vmul.f32 %v1798, %v1384
    %v1921 = vmul.f32 %v1798, %v1385
    %v1922 = vmul.f32 %v1798, %v1386
    %v1923 = vmul.f32 %v1798, %v1387
    %v1924 = vmul.f32 %v1798, %v1388
    %v1925 = vmul.f32 %v1798, %v1389
    %v1926 = vmul.f32 %v1798, %v1390
    %v1927 = vmul.f32 %v1798, %v1391
    %v1928 = vmul.f32 %v1798, %v1392
    %v1929 = vmul.f32 %v1798, %v1393
    %v1930 = vmul.f32 %v1798, %v1394
    %v1931 = vmul.f32 %v1798, %v1395
    %v1932 = vmul.f32 %v1798, %v1396
    %v1933 = vmul.f32 %v1798, %v1397
    %v1934 = vmul.f32 %v1798, %v1398
    %v1935 = vmul.f32 %v1798, %v1399
    %v1936 = vmul.f32 %v1798, %v1400
    %v1937 = vmul.f32 %v1798, %v1401
    %v1938 = vmul.f32 %v1803, %v1402
    %v1939 = vmul.f32 %v1803, %v1403
    %v1940 = vmul.f32 %v1803, %v1404
    %v1941 = vmul.f32 %v1803, %v1405
    %v1942 = vmul.f32 %v1803, %v1406
    %v1943 = vmul.f32 %v1803, %v1407
    %v1944 = vmul.f32 %v1803, %v1408
    %v1945 = vmul.f32 %v1803, %v1409
    %v1946 = vmul.f32 %v1803, %v1410
    %v1947 = vmul.f32 %v1803, %v1411
    %v1948 = vmul.f32 %v1803, %v1412
    %v1949 = vmul.f32 %v1803, %v1413
    %v1950 = vmul.f32 %v1803, %v1414
    %v1951 = vmul.f32 %v1803, %v1415
    %v1952 = vmul.f32 %v1803, %v1416
    %v1953 = vmul.f32 %v1803, %v1417
    %v1954 = vmul.f32 %v1803, %v1418
    %v1955 = vmul.f32 %v1803, %v1419
    %v1956 = vmul.f32 %v1803, %v1420
    %v1957 = vmul.f32 %v1803, %v1421
    %v1958 = vmul.f32 %v1803, %v1422
    %v1959 = vmul.f32 %v1803, %v1423
    %v1960 = vmul.f32 %v1803, %v1424
    %v1961 = vmul.f32 %v1803, %v1425
    %v1962 = vmul.f32 %v1803, %v1426
    %v1963 = vmul.f32 %v1803, %v1427
    %v1964 = vmul.f32 %v1803, %v1428
    %v1965 = vmul.f32 %v1803, %v1429
    %v1966 = vmul.f32 %v1803, %v1430
    %v1967 = vmul.f32 %v1803, %v1431
    %v1968 = vmul.f32 %v1803, %v1432
    %v1969 = vmul.f32 %v1803, %v1433
    %v1970 = vmul.f32 %v1803, %v1434
    %v1971 = vmul.f32 %v1803, %v1435
    %v1972 = vmul.f32 %v1803, %v1436
    %v1973 = vmul.f32 %v1803, %v1437
    %v1974 = vmul.f32 %v1803, %v1438
    %v1975 = vmul.f32 %v1803, %v1439
    %v1976 = vmul.f32 %v1803, %v1440
    %v1977 = vmul.f32 %v1803, %v1441
    %v1978 = vmul.f32 %v1803, %v1442
    %v1979 = vmul.f32 %v1803, %v1443
    %v1980 = vmul.f32 %v1803, %v1444
    %v1981 = vmul.f32 %v1803, %v1445
    %v1982 = vmul.f32 %v1803, %v1446
    %v1983 = vmul.f32 %v1803, %v1447
    %v1984 = vmul.f32 %v1803, %v1448
    %v1985 = vmul.f32 %v1803, %v1449
    %v1986 = vmul.f32 %v1803, %v1450
    %v1987 = vmul.f32 %v1803, %v1451
    %v1988 = vmul.f32 %v1803, %v1452
    %v1989 = vmul.f32 %v1803, %v1453
    %v1990 = vmul.f32 %v1803, %v1454
    %v1991 = vmul.f32 %v1803, %v1455
    %v1992 = vmul.f32 %v1803, %v1456
    %v1993 = vmul.f32 %v1803, %v1457
    %v1994 = vmul.f32 %v1803, %v1458
    %v1995 = vmul.f32 %v1803, %v1459
    %v1996 = vmul.f32 %v1803, %v1460
    %v1997 = vmul.f32 %v1803, %v1461
    %v1998 = vmul.f32 %v1803, %v1462
    %v1999 = vmul.f32 %v1803, %v1463
    %v2000 = vmul.f32 %v1803, %v1464
    %v2001 = vmul.f32 %v1803, %v1465
    %v2002 = vmul.f32 %v1808, %v1466
    %v2003 = vmul.f32 %v1808, %v1467
    %v2004 = vmul.f32 %v1808, %v1468
    %v2005 = vmul.f32 %v1808, %v1469
    %v2006 = vmul.f32 %v1808, %v1470
    %v2007 = vmul.f32 %v1808, %v1471
    %v2008 = vmul.f32 %v1808, %v1472
    %v2009 = vmul.f32 %v1808, %v1473
    %v2010 = vmul.f32 %v1808, %v1474
    %v2011 = vmul.f32 %v1808, %v1475
    %v2012 = vmul.f32 %v1808, %v1476
    %v2013 = vmul.f32 %v1808, %v1477
    %v2014 = vmul.f32 %v1808, %v1478
    %v2015 = vmul.f32 %v1808, %v1479
    %v2016 = vmul.f32 %v1808, %v1480
    %v2017 = vmul.f32 %v1808, %v1481
    %v2018 = vmul.f32 %v1808, %v1482
    %v2019 = vmul.f32 %v1808, %v1483
    %v2020 = vmul.f32 %v1808, %v1484
    %v2021 = vmul.f32 %v1808, %v1485
    %v2022 = vmul.f32 %v1808, %v1486
    %v2023 = vmul.f32 %v1808, %v1487
    %v2024 = vmul.f32 %v1808, %v1488
    %v2025 = vmul.f32 %v1808, %v1489
    %v2026 = vmul.f32 %v1808, %v1490
    %v2027 = vmul.f32 %v1808, %v1491
    %v2028 = vmul.f32 %v1808, %v1492
    %v2029 = vmul.f32 %v1808, %v1493
    %v2030 = vmul.f32 %v1808, %v1494
    %v2031 = vmul.f32 %v1808, %v1495
    %v2032 = vmul.f32 %v1808, %v1496
    %v2033 = vmul.f32 %v1808, %v1497
    %v2034 = vmul.f32 %v1808, %v1498
    %v2035 = vmul.f32 %v1808, %v1499
    %v2036 = vmul.f32 %v1808, %v1500
    %v2037 = vmul.f32 %v1808, %v1501
    %v2038 = vmul.f32 %v1808, %v1502
    %v2039 = vmul.f32 %v1808, %v1503
    %v2040 = vmul.f32 %v1808, %v1504
    %v2041 = vmul.f32 %v1808, %v1505
    %v2042 = vmul.f32 %v1808, %v1506
    %v2043 = vmul.f32 %v1808, %v1507
    %v2044 = vmul.f32 %v1808, %v1508
    %v2045 = vmul.f32 %v1808, %v1509
    %v2046 = vmul.f32 %v1808, %v1510
    %v2047 = vmul.f32 %v1808, %v1511
    %v2048 = vmul.f32 %v1808, %v1512
    %v2049 = vmul.f32 %v1808, %v1513
    %v2050 = vmul.f32 %v1808, %v1514
    %v2051 = vmul.f32 %v1808, %v1515
    %v2052 = vmul.f32 %v1808, %v1516
    %v2053 = vmul.f32 %v1808, %v1517
    %v2054 = vmul.f32 %v1808, %v1518
    %v2055 = vmul.f32 %v1808, %v1519
    %v2056 = vmul.f32 %v1808, %v1520
    %v2057 = vmul.f32 %v1808, %v1521
    %v2058 = vmul.f32 %v1808, %v1522
    %v2059 = vmul.f32 %v1808, %v1523
    %v2060 = vmul.f32 %v1808, %v1524
    %v2061 = vmul.f32 %v1808, %v1525
    %v2062 = vmul.f32 %v1808, %v1526
    %v2063 = vmul.f32 %v1808, %v1527
    %v2064 = vmul.f32 %v1808, %v1528
    %v2065 = vmul.f32 %v1808, %v1529
    %v2066 = vtanh.pop %v1810
    %v2067 = vtanh.pop %v1811
    %v2068 = vtanh.pop %v1812
    %v2069 = vtanh.pop %v1813
    %v2070 = vtanh.pop %v1814
    %v2071 = vtanh.pop %v1815
    %v2072 = vtanh.pop %v1816
    %v2073 = vtanh.pop %v1817
    %v2074 = vtanh.pop %v1818
    %v2075 = vtanh.pop %v1819
    %v2076 = vtanh.pop %v1820
    %v2077 = vtanh.pop %v1821
    %v2078 = vtanh.pop %v1822
    %v2079 = vtanh.pop %v1823
    %v2080 = vtanh.pop %v1824
    %v2081 = vtanh.pop %v1825
    %v2082 = vtanh.pop %v1826
    %v2083 = vtanh.pop %v1827
    %v2084 = vtanh.pop %v1828
    %v2085 = vtanh.pop %v1829
    %v2086 = vtanh.pop %v1830
    %v2087 = vtanh.pop %v1831
    %v2088 = vtanh.pop %v1832
    %v2089 = vtanh.pop %v1833
    %v2090 = vtanh.pop %v1834
    %v2091 = vtanh.pop %v1835
    %v2092 = vtanh.pop %v1836
    %v2093 = vtanh.pop %v1837
    %v2094 = vtanh.pop %v1838
    %v2095 = vtanh.pop %v1839
    %v2096 = vtanh.pop %v1840
    %v2097 = vtanh.pop %v1841
    %v2098 = vtanh.pop %v1842
    %v2099 = vtanh.pop %v1843
    %v2100 = vtanh.pop %v1844
    %v2101 = vtanh.pop %v1845
    %v2102 = vtanh.pop %v1846
    %v2103 = vtanh.pop %v1847
    %v2104 = vtanh.pop %v1848
    %v2105 = vtanh.pop %v1849
    %v2106 = vtanh.pop %v1850
    %v2107 = vtanh.pop %v1851
    %v2108 = vtanh.pop %v1852
    %v2109 = vtanh.pop %v1853
    %v2110 = vtanh.pop %v1854
    %v2111 = vtanh.pop %v1855
    %v2112 = vtanh.pop %v1856
    %v2113 = vtanh.pop %v1857
    %v2114 = vtanh.pop %v1858
    %v2115 = vtanh.pop %v1859
    %v2116 = vtanh.pop %v1860
    %v2117 = vtanh.pop %v1861
    %v2118 = vtanh.pop %v1862
    %v2119 = vtanh.pop %v1863
    %v2120 = vtanh.pop %v1864
    %v2121 = vtanh.pop %v1865
    %v2122 = vtanh.pop %v1866
    %v2123 = vtanh.pop %v1867
    %v2124 = vtanh.pop %v1868
    %v2125 = vtanh.pop %v1869
    %v2126 = vtanh.pop %v1870
    %v2127 = vtanh.pop %v1871
    %v2128 = vtanh.pop %v1872
    %v2129 = vtanh.pop %v1873
    %v2130 = vtanh.pop %v1874
    %v2131 = vtanh.pop %v1875
    %v2132 = vtanh.pop %v1876
    %v2133 = vtanh.pop %v1877
    %v2134 = vtanh.pop %v1878
    %v2135 = vtanh.pop %v1879
    %v2136 = vtanh.pop %v1880
    %v2137 = vtanh.pop %v1881
    %v2138 = vtanh.pop %v1882
    %v2139 = vtanh.pop %v1883
    %v2140 = vtanh.pop %v1884
    %v2141 = vtanh.pop %v1885
    %v2142 = vtanh.pop %v1886
    %v2143 = vtanh.pop %v1887
    %v2144 = vtanh.pop %v1888
    %v2145 = vtanh.pop %v1889
    %v2146 = vtanh.pop %v1890
    %v2147 = vtanh.pop %v1891
    %v2148 = vtanh.pop %v1892
    %v2149 = vtanh.pop %v1893
    %v2150 = vtanh.pop %v1894
    %v2151 = vtanh.pop %v1895
    %v2152 = vtanh.pop %v1896
    %v2153 = vtanh.pop %v1897
    %v2154 = vtanh.pop %v1898
    %v2155 = vtanh.pop %v1899
    %v2156 = vtanh.pop %v1900
    %v2157 = vtanh.pop %v1901
    %v2158 = vtanh.pop %v1902
    %v2159 = vtanh.pop %v1903
    %v2160 = vtanh.pop %v1904
    %v2161 = vtanh.pop %v1905
    %v2162 = vtanh.pop %v1906
    %v2163 = vtanh.pop %v1907
    %v2164 = vtanh.pop %v1908
    %v2165 = vtanh.pop %v1909
    %v2166 = vtanh.pop %v1910
    %v2167 = vtanh.pop %v1911
    %v2168 = vtanh.pop %v1912
    %v2169 = vtanh.pop %v1913
    %v2170 = vtanh.pop %v1914
    %v2171 = vtanh.pop %v1915
    %v2172 = vtanh.pop %v1916
    %v2173 = vtanh.pop %v1917
    %v2174 = vtanh.pop %v1918
    %v2175 = vtanh.pop %v1919
    %v2176 = vtanh.pop %v1920
    %v2177 = vtanh.pop %v1921
    %v2178 = vtanh.pop %v1922
    %v2179 = vtanh.pop %v1923
    %v2180 = vtanh.pop %v1924
    %v2181 = vtanh.pop %v1925
    %v2182 = vtanh.pop %v1926
    %v2183 = vtanh.pop %v1927
    %v2184 = vtanh.pop %v1928
    %v2185 = vtanh.pop %v1929
    %v2186 = vtanh.pop %v1930
    %v2187 = vtanh.pop %v1931
    %v2188 = vtanh.pop %v1932
    %v2189 = vtanh.pop %v1933
    %v2190 = vtanh.pop %v1934
    %v2191 = vtanh.pop %v1935
    %v2192 = vtanh.pop %v1936
    %v2193 = vtanh.pop %v1937
    %v2194 = vtanh.pop %v1938
    %v2195 = vtanh.pop %v1939
    %v2196 = vtanh.pop %v1940
    %v2197 = vtanh.pop %v1941
    %v2198 = vtanh.pop %v1942
    %v2199 = vtanh.pop %v1943
    %v2200 = vtanh.pop %v1944
    %v2201 = vtanh.pop %v1945
    %v2202 = vtanh.pop %v1946
    %v2203 = vtanh.pop %v1947
    %v2204 = vtanh.pop %v1948
    %v2205 = vtanh.pop %v1949
    %v2206 = vtanh.pop %v1950
    %v2207 = vtanh.pop %v1951
    %v2208 = vtanh.pop %v1952
    %v2209 = vtanh.pop %v1953
    %v2210 = vtanh.pop %v1954
    %v2211 = vtanh.pop %v1955
    %v2212 = vtanh.pop %v1956
    %v2213 = vtanh.pop %v1957
    %v2214 = vtanh.pop %v1958
    %v2215 = vtanh.pop %v1959
    %v2216 = vtanh.pop %v1960
    %v2217 = vtanh.pop %v1961
    %v2218 = vtanh.pop %v1962
    %v2219 = vtanh.pop %v1963
    %v2220 = vtanh.pop %v1964
    %v2221 = vtanh.pop %v1965
    %v2222 = vtanh.pop %v1966
    %v2223 = vtanh.pop %v1967
    %v2224 = vtanh.pop %v1968
    %v2225 = vtanh.pop %v1969
    %v2226 = vtanh.pop %v1970
    %v2227 = vtanh.pop %v1971
    %v2228 = vtanh.pop %v1972
    %v2229 = vtanh.pop %v1973
    %v2230 = vtanh.pop %v1974
    %v2231 = vtanh.pop %v1975
    %v2232 = vtanh.pop %v1976
    %v2233 = vtanh.pop %v1977
    %v2234 = vtanh.pop %v1978
    %v2235 = vtanh.pop %v1979
    %v2236 = vtanh.pop %v1980
    %v2237 = vtanh.pop %v1981
    %v2238 = vtanh.pop %v1982
    %v2239 = vtanh.pop %v1983
    %v2240 = vtanh.pop %v1984
    %v2241 = vtanh.pop %v1985
    %v2242 = vtanh.pop %v1986
    %v2243 = vtanh.pop %v1987
    %v2244 = vtanh.pop %v1988
    %v2245 = vtanh.pop %v1989
    %v2246 = vtanh.pop %v1990
    %v2247 = vtanh.pop %v1991
    %v2248 = vtanh.pop %v1992
    %v2249 = vtanh.pop %v1993
    %v2250 = vtanh.pop %v1994
    %v2251 = vtanh.pop %v1995
    %v2252 = vtanh.pop %v1996
    %v2253 = vtanh.pop %v1997
    %v2254 = vtanh.pop %v1998
    %v2255 = vtanh.pop %v1999
    %v2256 = vtanh.pop %v2000
    %v2257 = vtanh.pop %v2001
    %v2258 = vtanh.pop %v2002
    %v2259 = vtanh.pop %v2003
    %v2260 = vtanh.pop %v2004
    %v2261 = vtanh.pop %v2005
    %v2262 = vtanh.pop %v2006
    %v2263 = vtanh.pop %v2007
    %v2264 = vtanh.pop %v2008
    %v2265 = vtanh.pop %v2009
    %v2266 = vtanh.pop %v2010
    %v2267 = vtanh.pop %v2011
    %v2268 = vtanh.pop %v2012
    %v2269 = vtanh.pop %v2013
    %v2270 = vtanh.pop %v2014
    %v2271 = vtanh.pop %v2015
    %v2272 = vtanh.pop %v2016
    %v2273 = vtanh.pop %v2017
    %v2274 = vtanh.pop %v2018
    %v2275 = vtanh.pop %v2019
    %v2276 = vtanh.pop %v2020
    %v2277 = vtanh.pop %v2021
    %v2278 = vtanh.pop %v2022
    %v2279 = vtanh.pop %v2023
    %v2280 = vtanh.pop %v2024
    %v2281 = vtanh.pop %v2025
    %v2282 = vtanh.pop %v2026
    %v2283 = vtanh.pop %v2027
    %v2284 = vtanh.pop %v2028
    %v2285 = vtanh.pop %v2029
    %v2286 = vtanh.pop %v2030
    %v2287 = vtanh.pop %v2031
    %v2288 = vtanh.pop %v2032
    %v2289 = vtanh.pop %v2033
    %v2290 = vtanh.pop %v2034
    %v2291 = vtanh.pop %v2035
    %v2292 = vtanh.pop %v2036
    %v2293 = vtanh.pop %v2037
    %v2294 = vtanh.pop %v2038
    %v2295 = vtanh.pop %v2039
    %v2296 = vtanh.pop %v2040
    %v2297 = vtanh.pop %v2041
    %v2298 = vtanh.pop %v2042
    %v2299 = vtanh.pop %v2043
    %v2300 = vtanh.pop %v2044
    %v2301 = vtanh.pop %v2045
    %v2302 = vtanh.pop %v2046
    %v2303 = vtanh.pop %v2047
    %v2304 = vtanh.pop %v2048
    %v2305 = vtanh.pop %v2049
    %v2306 = vtanh.pop %v2050
    %v2307 = vtanh.pop %v2051
    %v2308 = vtanh.pop %v2052
    %v2309 = vtanh.pop %v2053
    %v2310 = vtanh.pop %v2054
    %v2311 = vtanh.pop %v2055
    %v2312 = vtanh.pop %v2056
    %v2313 = vtanh.pop %v2057
    %v2314 = vtanh.pop %v2058
    %v2315 = vtanh.pop %v2059
    %v2316 = vtanh.pop %v2060
    %v2317 = vtanh.pop %v2061
    %v2318 = vtanh.pop %v2062
    %v2319 = vtanh.pop %v2063
    %v2320 = vtanh.pop %v2064
    %v2321 = vtanh.pop %v2065
    %v2322 = vadd.f32 %v2066, 1.0
    %v2323 = vadd.f32 %v2067, 1.0
    %v2324 = vadd.f32 %v2068, 1.0
    %v2325 = vadd.f32 %v2069, 1.0
    %v2326 = vadd.f32 %v2070, 1.0
    %v2327 = vadd.f32 %v2071, 1.0
    %v2328 = vadd.f32 %v2072, 1.0
    %v2329 = vadd.f32 %v2073, 1.0
    %v2330 = vadd.f32 %v2074, 1.0
    %v2331 = vadd.f32 %v2075, 1.0
    %v2332 = vadd.f32 %v2076, 1.0
    %v2333 = vadd.f32 %v2077, 1.0
    %v2334 = vadd.f32 %v2078, 1.0
    %v2335 = vadd.f32 %v2079, 1.0
    %v2336 = vadd.f32 %v2080, 1.0
    %v2337 = vadd.f32 %v2081, 1.0
    %v2338 = vadd.f32 %v2082, 1.0
    %v2339 = vadd.f32 %v2083, 1.0
    %v2340 = vadd.f32 %v2084, 1.0
    %v2341 = vadd.f32 %v2085, 1.0
    %v2342 = vadd.f32 %v2086, 1.0
    %v2343 = vadd.f32 %v2087, 1.0
    %v2344 = vadd.f32 %v2088, 1.0
    %v2345 = vadd.f32 %v2089, 1.0
    %v2346 = vadd.f32 %v2090, 1.0
    %v2347 = vadd.f32 %v2091, 1.0
    %v2348 = vadd.f32 %v2092, 1.0
    %v2349 = vadd.f32 %v2093, 1.0
    %v2350 = vadd.f32 %v2094, 1.0
    %v2351 = vadd.f32 %v2095, 1.0
    %v2352 = vadd.f32 %v2096, 1.0
    %v2353 = vadd.f32 %v2097, 1.0
    %v2354 = vadd.f32 %v2098, 1.0
    %v2355 = vadd.f32 %v2099, 1.0
    %v2356 = vadd.f32 %v2100, 1.0
    %v2357 = vadd.f32 %v2101, 1.0
    %v2358 = vadd.f32 %v2102, 1.0
    %v2359 = vadd.f32 %v2103, 1.0
    %v2360 = vadd.f32 %v2104, 1.0
    %v2361 = vadd.f32 %v2105, 1.0
    %v2362 = vadd.f32 %v2106, 1.0
    %v2363 = vadd.f32 %v2107, 1.0
    %v2364 = vadd.f32 %v2108, 1.0
    %v2365 = vadd.f32 %v2109, 1.0
    %v2366 = vadd.f32 %v2110, 1.0
    %v2367 = vadd.f32 %v2111, 1.0
    %v2368 = vadd.f32 %v2112, 1.0
    %v2369 = vadd.f32 %v2113, 1.0
    %v2370 = vadd.f32 %v2114, 1.0
    %v2371 = vadd.f32 %v2115, 1.0
    %v2372 = vadd.f32 %v2116, 1.0
    %v2373 = vadd.f32 %v2117, 1.0
    %v2374 = vadd.f32 %v2118, 1.0
    %v2375 = vadd.f32 %v2119, 1.0
    %v2376 = vadd.f32 %v2120, 1.0
    %v2377 = vadd.f32 %v2121, 1.0
    %v2378 = vadd.f32 %v2122, 1.0
    %v2379 = vadd.f32 %v2123, 1.0
    %v2380 = vadd.f32 %v2124, 1.0
    %v2381 = vadd.f32 %v2125, 1.0
    %v2382 = vadd.f32 %v2126, 1.0
    %v2383 = vadd.f32 %v2127, 1.0
    %v2384 = vadd.f32 %v2128, 1.0
    %v2385 = vadd.f32 %v2129, 1.0
    %v2386 = vadd.f32 %v2130, 1.0
    %v2387 = vadd.f32 %v2131, 1.0
    %v2388 = vadd.f32 %v2132, 1.0
    %v2389 = vadd.f32 %v2133, 1.0
    %v2390 = vadd.f32 %v2134, 1.0
    %v2391 = vadd.f32 %v2135, 1.0
    %v2392 = vadd.f32 %v2136, 1.0
    %v2393 = vadd.f32 %v2137, 1.0
    %v2394 = vadd.f32 %v2138, 1.0
    %v2395 = vadd.f32 %v2139, 1.0
    %v2396 = vadd.f32 %v2140, 1.0
    %v2397 = vadd.f32 %v2141, 1.0
    %v2398 = vadd.f32 %v2142, 1.0
    %v2399 = vadd.f32 %v2143, 1.0
    %v2400 = vadd.f32 %v2144, 1.0
    %v2401 = vadd.f32 %v2145, 1.0
    %v2402 = vadd.f32 %v2146, 1.0
    %v2403 = vadd.f32 %v2147, 1.0
    %v2404 = vadd.f32 %v2148, 1.0
    %v2405 = vadd.f32 %v2149, 1.0
    %v2406 = vadd.f32 %v2150, 1.0
    %v2407 = vadd.f32 %v2151, 1.0
    %v2408 = vadd.f32 %v2152, 1.0
    %v2409 = vadd.f32 %v2153, 1.0
    %v2410 = vadd.f32 %v2154, 1.0
    %v2411 = vadd.f32 %v2155, 1.0
    %v2412 = vadd.f32 %v2156, 1.0
    %v2413 = vadd.f32 %v2157, 1.0
    %v2414 = vadd.f32 %v2158, 1.0
    %v2415 = vadd.f32 %v2159, 1.0
    %v2416 = vadd.f32 %v2160, 1.0
    %v2417 = vadd.f32 %v2161, 1.0
    %v2418 = vadd.f32 %v2162, 1.0
    %v2419 = vadd.f32 %v2163, 1.0
    %v2420 = vadd.f32 %v2164, 1.0
    %v2421 = vadd.f32 %v2165, 1.0
    %v2422 = vadd.f32 %v2166, 1.0
    %v2423 = vadd.f32 %v2167, 1.0
    %v2424 = vadd.f32 %v2168, 1.0
    %v2425 = vadd.f32 %v2169, 1.0
    %v2426 = vadd.f32 %v2170, 1.0
    %v2427 = vadd.f32 %v2171, 1.0
    %v2428 = vadd.f32 %v2172, 1.0
    %v2429 = vadd.f32 %v2173, 1.0
    %v2430 = vadd.f32 %v2174, 1.0
    %v2431 = vadd.f32 %v2175, 1.0
    %v2432 = vadd.f32 %v2176, 1.0
    %v2433 = vadd.f32 %v2177, 1.0
    %v2434 = vadd.f32 %v2178, 1.0
    %v2435 = vadd.f32 %v2179, 1.0
    %v2436 = vadd.f32 %v2180, 1.0
    %v2437 = vadd.f32 %v2181, 1.0
    %v2438 = vadd.f32 %v2182, 1.0
    %v2439 = vadd.f32 %v2183, 1.0
    %v2440 = vadd.f32 %v2184, 1.0
    %v2441 = vadd.f32 %v2185, 1.0
    %v2442 = vadd.f32 %v2186, 1.0
    %v2443 = vadd.f32 %v2187, 1.0
    %v2444 = vadd.f32 %v2188, 1.0
    %v2445 = vadd.f32 %v2189, 1.0
    %v2446 = vadd.f32 %v2190, 1.0
    %v2447 = vadd.f32 %v2191, 1.0
    %v2448 = vadd.f32 %v2192, 1.0
    %v2449 = vadd.f32 %v2193, 1.0
    %v2450 = vadd.f32 %v2194, 1.0
    %v2451 = vadd.f32 %v2195, 1.0
    %v2452 = vadd.f32 %v2196, 1.0
    %v2453 = vadd.f32 %v2197, 1.0
    %v2454 = vadd.f32 %v2198, 1.0
    %v2455 = vadd.f32 %v2199, 1.0
    %v2456 = vadd.f32 %v2200, 1.0
    %v2457 = vadd.f32 %v2201, 1.0
    %v2458 = vadd.f32 %v2202, 1.0
    %v2459 = vadd.f32 %v2203, 1.0
    %v2460 = vadd.f32 %v2204, 1.0
    %v2461 = vadd.f32 %v2205, 1.0
    %v2462 = vadd.f32 %v2206, 1.0
    %v2463 = vadd.f32 %v2207, 1.0
    %v2464 = vadd.f32 %v2208, 1.0
    %v2465 = vadd.f32 %v2209, 1.0
    %v2466 = vadd.f32 %v2210, 1.0
    %v2467 = vadd.f32 %v2211, 1.0
    %v2468 = vadd.f32 %v2212, 1.0
    %v2469 = vadd.f32 %v2213, 1.0
    %v2470 = vadd.f32 %v2214, 1.0
    %v2471 = vadd.f32 %v2215, 1.0
    %v2472 = vadd.f32 %v2216, 1.0
    %v2473 = vadd.f32 %v2217, 1.0
    %v2474 = vadd.f32 %v2218, 1.0
    %v2475 = vadd.f32 %v2219, 1.0
    %v2476 = vadd.f32 %v2220, 1.0
    %v2477 = vadd.f32 %v2221, 1.0
    %v2478 = vadd.f32 %v2222, 1.0
    %v2479 = vadd.f32 %v2223, 1.0
    %v2480 = vadd.f32 %v2224, 1.0
    %v2481 = vadd.f32 %v2225, 1.0
    %v2482 = vadd.f32 %v2226, 1.0
    %v2483 = vadd.f32 %v2227, 1.0
    %v2484 = vadd.f32 %v2228, 1.0
    %v2485 = vadd.f32 %v2229, 1.0
    %v2486 = vadd.f32 %v2230, 1.0
    %v2487 = vadd.f32 %v2231, 1.0
    %v2488 = vadd.f32 %v2232, 1.0
    %v2489 = vadd.f32 %v2233, 1.0
    %v2490 = vadd.f32 %v2234, 1.0
    %v2491 = vadd.f32 %v2235, 1.0
    %v2492 = vadd.f32 %v2236, 1.0
    %v2493 = vadd.f32 %v2237, 1.0
    %v2494 = vadd.f32 %v2238, 1.0
    %v2495 = vadd.f32 %v2239, 1.0
    %v2496 = vadd.f32 %v2240, 1.0
    %v2497 = vadd.f32 %v2241, 1.0
    %v2498 = vadd.f32 %v2242, 1.0
    %v2499 = vadd.f32 %v2243, 1.0
    %v2500 = vadd.f32 %v2244, 1.0
    %v2501 = vadd.f32 %v2245, 1.0
    %v2502 = vadd.f32 %v2246, 1.0
    %v2503 = vadd.f32 %v2247, 1.0
    %v2504 = vadd.f32 %v2248, 1.0
    %v2505 = vadd.f32 %v2249, 1.0
    %v2506 = vadd.f32 %v2250, 1.0
    %v2507 = vadd.f32 %v2251, 1.0
    %v2508 = vadd.f32 %v2252, 1.0
    %v2509 = vadd.f32 %v2253, 1.0
    %v2510 = vadd.f32 %v2254, 1.0
    %v2511 = vadd.f32 %v2255, 1.0
    %v2512 = vadd.f32 %v2256, 1.0
    %v2513 = vadd.f32 %v2257, 1.0
    %v2514 = vadd.f32 %v2258, 1.0
    %v2515 = vadd.f32 %v2259, 1.0
    %v2516 = vadd.f32 %v2260, 1.0
    %v2517 = vadd.f32 %v2261, 1.0
    %v2518 = vadd.f32 %v2262, 1.0
    %v2519 = vadd.f32 %v2263, 1.0
    %v2520 = vadd.f32 %v2264, 1.0
    %v2521 = vadd.f32 %v2265, 1.0
    %v2522 = vadd.f32 %v2266, 1.0
    %v2523 = vadd.f32 %v2267, 1.0
    %v2524 = vadd.f32 %v2268, 1.0
    %v2525 = vadd.f32 %v2269, 1.0
    %v2526 = vadd.f32 %v2270, 1.0
    %v2527 = vadd.f32 %v2271, 1.0
    %v2528 = vadd.f32 %v2272, 1.0
    %v2529 = vadd.f32 %v2273, 1.0
    %v2530 = vadd.f32 %v2274, 1.0
    %v2531 = vadd.f32 %v2275, 1.0
    %v2532 = vadd.f32 %v2276, 1.0
    %v2533 = vadd.f32 %v2277, 1.0
    %v2534 = vadd.f32 %v2278, 1.0
    %v2535 = vadd.f32 %v2279, 1.0
    %v2536 = vadd.f32 %v2280, 1.0
    %v2537 = vadd.f32 %v2281, 1.0
    %v2538 = vadd.f32 %v2282, 1.0
    %v2539 = vadd.f32 %v2283, 1.0
    %v2540 = vadd.f32 %v2284, 1.0
    %v2541 = vadd.f32 %v2285, 1.0
    %v2542 = vadd.f32 %v2286, 1.0
    %v2543 = vadd.f32 %v2287, 1.0
    %v2544 = vadd.f32 %v2288, 1.0
    %v2545 = vadd.f32 %v2289, 1.0
    %v2546 = vadd.f32 %v2290, 1.0
    %v2547 = vadd.f32 %v2291, 1.0
    %v2548 = vadd.f32 %v2292, 1.0
    %v2549 = vadd.f32 %v2293, 1.0
    %v2550 = vadd.f32 %v2294, 1.0
    %v2551 = vadd.f32 %v2295, 1.0
    %v2552 = vadd.f32 %v2296, 1.0
    %v2553 = vadd.f32 %v2297, 1.0
    %v2554 = vadd.f32 %v2298, 1.0
    %v2555 = vadd.f32 %v2299, 1.0
    %v2556 = vadd.f32 %v2300, 1.0
    %v2557 = vadd.f32 %v2301, 1.0
    %v2558 = vadd.f32 %v2302, 1.0
    %v2559 = vadd.f32 %v2303, 1.0
    %v2560 = vadd.f32 %v2304, 1.0
    %v2561 = vadd.f32 %v2305, 1.0
    %v2562 = vadd.f32 %v2306, 1.0
    %v2563 = vadd.f32 %v2307, 1.0
    %v2564 = vadd.f32 %v2308, 1.0
    %v2565 = vadd.f32 %v2309, 1.0
    %v2566 = vadd.f32 %v2310, 1.0
    %v2567 = vadd.f32 %v2311, 1.0
    %v2568 = vadd.f32 %v2312, 1.0
    %v2569 = vadd.f32 %v2313, 1.0
    %v2570 = vadd.f32 %v2314, 1.0
    %v2571 = vadd.f32 %v2315, 1.0
    %v2572 = vadd.f32 %v2316, 1.0
    %v2573 = vadd.f32 %v2317, 1.0
    %v2574 = vadd.f32 %v2318, 1.0
    %v2575 = vadd.f32 %v2319, 1.0
    %v2576 = vadd.f32 %v2320, 1.0
    %v2577 = vadd.f32 %v2321, 1.0
    %v2578 = vmul.f32 %v1530, %v2322
    %v2579 = vmul.f32 %v1531, %v2323
    %v2580 = vmul.f32 %v1532, %v2324
    %v2581 = vmul.f32 %v1533, %v2325
    %v2582 = vmul.f32 %v1534, %v2326
    %v2583 = vmul.f32 %v1535, %v2327
    %v2584 = vmul.f32 %v1536, %v2328
    %v2585 = vmul.f32 %v1537, %v2329
    %v2586 = vmul.f32 %v1538, %v2330
    %v2587 = vmul.f32 %v1539, %v2331
    %v2588 = vmul.f32 %v1540, %v2332
    %v2589 = vmul.f32 %v1541, %v2333
    %v2590 = vmul.f32 %v1542, %v2334
    %v2591 = vmul.f32 %v1543, %v2335
    %v2592 = vmul.f32 %v1544, %v2336
    %v2593 = vmul.f32 %v1545, %v2337
    %v2594 = vmul.f32 %v1546, %v2338
    %v2595 = vmul.f32 %v1547, %v2339
    %v2596 = vmul.f32 %v1548, %v2340
    %v2597 = vmul.f32 %v1549, %v2341
    %v2598 = vmul.f32 %v1550, %v2342
    %v2599 = vmul.f32 %v1551, %v2343
    %v2600 = vmul.f32 %v1552, %v2344
    %v2601 = vmul.f32 %v1553, %v2345
    %v2602 = vmul.f32 %v1554, %v2346
    %v2603 = vmul.f32 %v1555, %v2347
    %v2604 = vmul.f32 %v1556, %v2348
    %v2605 = vmul.f32 %v1557, %v2349
    %v2606 = vmul.f32 %v1558, %v2350
    %v2607 = vmul.f32 %v1559, %v2351
    %v2608 = vmul.f32 %v1560, %v2352
    %v2609 = vmul.f32 %v1561, %v2353
    %v2610 = vmul.f32 %v1562, %v2354
    %v2611 = vmul.f32 %v1563, %v2355
    %v2612 = vmul.f32 %v1564, %v2356
    %v2613 = vmul.f32 %v1565, %v2357
    %v2614 = vmul.f32 %v1566, %v2358
    %v2615 = vmul.f32 %v1567, %v2359
    %v2616 = vmul.f32 %v1568, %v2360
    %v2617 = vmul.f32 %v1569, %v2361
    %v2618 = vmul.f32 %v1570, %v2362
    %v2619 = vmul.f32 %v1571, %v2363
    %v2620 = vmul.f32 %v1572, %v2364
    %v2621 = vmul.f32 %v1573, %v2365
    %v2622 = vmul.f32 %v1574, %v2366
    %v2623 = vmul.f32 %v1575, %v2367
    %v2624 = vmul.f32 %v1576, %v2368
    %v2625 = vmul.f32 %v1577, %v2369
    %v2626 = vmul.f32 %v1578, %v2370
    %v2627 = vmul.f32 %v1579, %v2371
    %v2628 = vmul.f32 %v1580, %v2372
    %v2629 = vmul.f32 %v1581, %v2373
    %v2630 = vmul.f32 %v1582, %v2374
    %v2631 = vmul.f32 %v1583, %v2375
    %v2632 = vmul.f32 %v1584, %v2376
    %v2633 = vmul.f32 %v1585, %v2377
    %v2634 = vmul.f32 %v1586, %v2378
    %v2635 = vmul.f32 %v1587, %v2379
    %v2636 = vmul.f32 %v1588, %v2380
    %v2637 = vmul.f32 %v1589, %v2381
    %v2638 = vmul.f32 %v1590, %v2382
    %v2639 = vmul.f32 %v1591, %v2383
    %v2640 = vmul.f32 %v1592, %v2384
    %v2641 = vmul.f32 %v1593, %v2385
    %v2642 = vmul.f32 %v1594, %v2386
    %v2643 = vmul.f32 %v1595, %v2387
    %v2644 = vmul.f32 %v1596, %v2388
    %v2645 = vmul.f32 %v1597, %v2389
    %v2646 = vmul.f32 %v1598, %v2390
    %v2647 = vmul.f32 %v1599, %v2391
    %v2648 = vmul.f32 %v1600, %v2392
    %v2649 = vmul.f32 %v1601, %v2393
    %v2650 = vmul.f32 %v1602, %v2394
    %v2651 = vmul.f32 %v1603, %v2395
    %v2652 = vmul.f32 %v1604, %v2396
    %v2653 = vmul.f32 %v1605, %v2397
    %v2654 = vmul.f32 %v1606, %v2398
    %v2655 = vmul.f32 %v1607, %v2399
    %v2656 = vmul.f32 %v1608, %v2400
    %v2657 = vmul.f32 %v1609, %v2401
    %v2658 = vmul.f32 %v1610, %v2402
    %v2659 = vmul.f32 %v1611, %v2403
    %v2660 = vmul.f32 %v1612, %v2404
    %v2661 = vmul.f32 %v1613, %v2405
    %v2662 = vmul.f32 %v1614, %v2406
    %v2663 = vmul.f32 %v1615, %v2407
    %v2664 = vmul.f32 %v1616, %v2408
    %v2665 = vmul.f32 %v1617, %v2409
    %v2666 = vmul.f32 %v1618, %v2410
    %v2667 = vmul.f32 %v1619, %v2411
    %v2668 = vmul.f32 %v1620, %v2412
    %v2669 = vmul.f32 %v1621, %v2413
    %v2670 = vmul.f32 %v1622, %v2414
    %v2671 = vmul.f32 %v1623, %v2415
    %v2672 = vmul.f32 %v1624, %v2416
    %v2673 = vmul.f32 %v1625, %v2417
    %v2674 = vmul.f32 %v1626, %v2418
    %v2675 = vmul.f32 %v1627, %v2419
    %v2676 = vmul.f32 %v1628, %v2420
    %v2677 = vmul.f32 %v1629, %v2421
    %v2678 = vmul.f32 %v1630, %v2422
    %v2679 = vmul.f32 %v1631, %v2423
    %v2680 = vmul.f32 %v1632, %v2424
    %v2681 = vmul.f32 %v1633, %v2425
    %v2682 = vmul.f32 %v1634, %v2426
    %v2683 = vmul.f32 %v1635, %v2427
    %v2684 = vmul.f32 %v1636, %v2428
    %v2685 = vmul.f32 %v1637, %v2429
    %v2686 = vmul.f32 %v1638, %v2430
    %v2687 = vmul.f32 %v1639, %v2431
    %v2688 = vmul.f32 %v1640, %v2432
    %v2689 = vmul.f32 %v1641, %v2433
    %v2690 = vmul.f32 %v1642, %v2434
    %v2691 = vmul.f32 %v1643, %v2435
    %v2692 = vmul.f32 %v1644, %v2436
    %v2693 = vmul.f32 %v1645, %v2437
    %v2694 = vmul.f32 %v1646, %v2438
    %v2695 = vmul.f32 %v1647, %v2439
    %v2696 = vmul.f32 %v1648, %v2440
    %v2697 = vmul.f32 %v1649, %v2441
    %v2698 = vmul.f32 %v1650, %v2442
    %v2699 = vmul.f32 %v1651, %v2443
    %v2700 = vmul.f32 %v1652, %v2444
    %v2701 = vmul.f32 %v1653, %v2445
    %v2702 = vmul.f32 %v1654, %v2446
    %v2703 = vmul.f32 %v1655, %v2447
    %v2704 = vmul.f32 %v1656, %v2448
    %v2705 = vmul.f32 %v1657, %v2449
    %v2706 = vmul.f32 %v1658, %v2450
    %v2707 = vmul.f32 %v1659, %v2451
    %v2708 = vmul.f32 %v1660, %v2452
    %v2709 = vmul.f32 %v1661, %v2453
    %v2710 = vmul.f32 %v1662, %v2454
    %v2711 = vmul.f32 %v1663, %v2455
    %v2712 = vmul.f32 %v1664, %v2456
    %v2713 = vmul.f32 %v1665, %v2457
    %v2714 = vmul.f32 %v1666, %v2458
    %v2715 = vmul.f32 %v1667, %v2459
    %v2716 = vmul.f32 %v1668, %v2460
    %v2717 = vmul.f32 %v1669, %v2461
    %v2718 = vmul.f32 %v1670, %v2462
    %v2719 = vmul.f32 %v1671, %v2463
    %v2720 = vmul.f32 %v1672, %v2464
    %v2721 = vmul.f32 %v1673, %v2465
    %v2722 = vmul.f32 %v1674, %v2466
    %v2723 = vmul.f32 %v1675, %v2467
    %v2724 = vmul.f32 %v1676, %v2468
    %v2725 = vmul.f32 %v1677, %v2469
    %v2726 = vmul.f32 %v1678, %v2470
    %v2727 = vmul.f32 %v1679, %v2471
    %v2728 = vmul.f32 %v1680, %v2472
    %v2729 = vmul.f32 %v1681, %v2473
    %v2730 = vmul.f32 %v1682, %v2474
    %v2731 = vmul.f32 %v1683, %v2475
    %v2732 = vmul.f32 %v1684, %v2476
    %v2733 = vmul.f32 %v1685, %v2477
    %v2734 = vmul.f32 %v1686, %v2478
    %v2735 = vmul.f32 %v1687, %v2479
    %v2736 = vmul.f32 %v1688, %v2480
    %v2737 = vmul.f32 %v1689, %v2481
    %v2738 = vmul.f32 %v1690, %v2482
    %v2739 = vmul.f32 %v1691, %v2483
    %v2740 = vmul.f32 %v1692, %v2484
    %v2741 = vmul.f32 %v1693, %v2485
    %v2742 = vmul.f32 %v1694, %v2486
    %v2743 = vmul.f32 %v1695, %v2487
    %v2744 = vmul.f32 %v1696, %v2488
    %v2745 = vmul.f32 %v1697, %v2489
    %v2746 = vmul.f32 %v1698, %v2490
    %v2747 = vmul.f32 %v1699, %v2491
    %v2748 = vmul.f32 %v1700, %v2492
    %v2749 = vmul.f32 %v1701, %v2493
    %v2750 = vmul.f32 %v1702, %v2494
    %v2751 = vmul.f32 %v1703, %v2495
    %v2752 = vmul.f32 %v1704, %v2496
    %v2753 = vmul.f32 %v1705, %v2497
    %v2754 = vmul.f32 %v1706, %v2498
    %v2755 = vmul.f32 %v1707, %v2499
    %v2756 = vmul.f32 %v1708, %v2500
    %v2757 = vmul.f32 %v1709, %v2501
    %v2758 = vmul.f32 %v1710, %v2502
    %v2759 = vmul.f32 %v1711, %v2503
    %v2760 = vmul.f32 %v1712, %v2504
    %v2761 = vmul.f32 %v1713, %v2505
    %v2762 = vmul.f32 %v1714, %v2506
    %v2763 = vmul.f32 %v1715, %v2507
    %v2764 = vmul.f32 %v1716, %v2508
    %v2765 = vmul.f32 %v1717, %v2509
    %v2766 = vmul.f32 %v1718, %v2510
    %v2767 = vmul.f32 %v1719, %v2511
    %v2768 = vmul.f32 %v1720, %v2512
    %v2769 = vmul.f32 %v1721, %v2513
    %v2770 = vmul.f32 %v1722, %v2514
    %v2771 = vmul.f32 %v1723, %v2515
    %v2772 = vmul.f32 %v1724, %v2516
    %v2773 = vmul.f32 %v1725, %v2517
    %v2774 = vmul.f32 %v1726, %v2518
    %v2775 = vmul.f32 %v1727, %v2519
    %v2776 = vmul.f32 %v1728, %v2520
    %v2777 = vmul.f32 %v1729, %v2521
    %v2778 = vmul.f32 %v1730, %v2522
    %v2779 = vmul.f32 %v1731, %v2523
    %v2780 = vmul.f32 %v1732, %v2524
    %v2781 = vmul.f32 %v1733, %v2525
    %v2782 = vmul.f32 %v1734, %v2526
    %v2783 = vmul.f32 %v1735, %v2527
    %v2784 = vmul.f32 %v1736, %v2528
    %v2785 = vmul.f32 %v1737, %v2529
    %v2786 = vmul.f32 %v1738, %v2530
    %v2787 = vmul.f32 %v1739, %v2531
    %v2788 = vmul.f32 %v1740, %v2532
    %v2789 = vmul.f32 %v1741, %v2533
    %v2790 = vmul.f32 %v1742, %v2534
    %v2791 = vmul.f32 %v1743, %v2535
    %v2792 = vmul.f32 %v1744, %v2536
    %v2793 = vmul.f32 %v1745, %v2537
    %v2794 = vmul.f32 %v1746, %v2538
    %v2795 = vmul.f32 %v1747, %v2539
    %v2796 = vmul.f32 %v1748, %v2540
    %v2797 = vmul.f32 %v1749, %v2541
    %v2798 = vmul.f32 %v1750, %v2542
    %v2799 = vmul.f32 %v1751, %v2543
    %v2800 = vmul.f32 %v1752, %v2544
    %v2801 = vmul.f32 %v1753, %v2545
    %v2802 = vmul.f32 %v1754, %v2546
    %v2803 = vmul.f32 %v1755, %v2547
    %v2804 = vmul.f32 %v1756, %v2548
    %v2805 = vmul.f32 %v1757, %v2549
    %v2806 = vmul.f32 %v1758, %v2550
    %v2807 = vmul.f32 %v1759, %v2551
    %v2808 = vmul.f32 %v1760, %v2552
    %v2809 = vmul.f32 %v1761, %v2553
    %v2810 = vmul.f32 %v1762, %v2554
    %v2811 = vmul.f32 %v1763, %v2555
    %v2812 = vmul.f32 %v1764, %v2556
    %v2813 = vmul.f32 %v1765, %v2557
    %v2814 = vmul.f32 %v1766, %v2558
    %v2815 = vmul.f32 %v1767, %v2559
    %v2816 = vmul.f32 %v1768, %v2560
    %v2817 = vmul.f32 %v1769, %v2561
    %v2818 = vmul.f32 %v1770, %v2562
    %v2819 = vmul.f32 %v1771, %v2563
    %v2820 = vmul.f32 %v1772, %v2564
    %v2821 = vmul.f32 %v1773, %v2565
    %v2822 = vmul.f32 %v1774, %v2566
    %v2823 = vmul.f32 %v1775, %v2567
    %v2824 = vmul.f32 %v1776, %v2568
    %v2825 = vmul.f32 %v1777, %v2569
    %v2826 = vmul.f32 %v1778, %v2570
    %v2827 = vmul.f32 %v1779, %v2571
    %v2828 = vmul.f32 %v1780, %v2572
    %v2829 = vmul.f32 %v1781, %v2573
    %v2830 = vmul.f32 %v1782, %v2574
    %v2831 = vmul.f32 %v1783, %v2575
    %v2832 = vmul.f32 %v1784, %v2576
    %v2833 = vmul.f32 %v1785, %v2577
    %v2834 = vld [vmem:[%s1] sm:$0xf]
    %v2835 = vld [vmem:[%s1 + $0x4] sm:$0xf]
    %v2836 = vld [vmem:[%s1 + $0x8] sm:$0xf]
    %v2837 = vld [vmem:[%s1 + $0xc] sm:$0xf]
    %v2838 = vpack.c.bf16 %v2642, %v2578
    %v2839 = vpack.c.bf16 %v2643, %v2579
    %v2840 = vpack.c.bf16 %v2644, %v2580
    %v2841 = vpack.c.bf16 %v2645, %v2581
    %v2842 = vpack.c.bf16 %v2646, %v2582
    %v2843 = vpack.c.bf16 %v2647, %v2583
    %v2844 = vpack.c.bf16 %v2648, %v2584
    %v2845 = vpack.c.bf16 %v2649, %v2585
    %v2846 = vpack.c.bf16 %v2650, %v2586
    %v2847 = vpack.c.bf16 %v2651, %v2587
    %v2848 = vpack.c.bf16 %v2652, %v2588
    %v2849 = vpack.c.bf16 %v2653, %v2589
    %v2850 = vpack.c.bf16 %v2654, %v2590
    %v2851 = vpack.c.bf16 %v2655, %v2591
    %v2852 = vpack.c.bf16 %v2656, %v2592
    %v2853 = vpack.c.bf16 %v2657, %v2593
    %v2854 = vpack.c.bf16 %v2658, %v2594
    %v2855 = vpack.c.bf16 %v2659, %v2595
    %v2856 = vpack.c.bf16 %v2660, %v2596
    %v2857 = vpack.c.bf16 %v2661, %v2597
    %v2858 = vpack.c.bf16 %v2662, %v2598
    %v2859 = vpack.c.bf16 %v2663, %v2599
    %v2860 = vpack.c.bf16 %v2664, %v2600
    %v2861 = vpack.c.bf16 %v2665, %v2601
    %v2862 = vpack.c.bf16 %v2666, %v2602
    %v2863 = vpack.c.bf16 %v2667, %v2603
    %v2864 = vpack.c.bf16 %v2668, %v2604
    %v2865 = vpack.c.bf16 %v2669, %v2605
    %v2866 = vpack.c.bf16 %v2670, %v2606
    %v2867 = vpack.c.bf16 %v2671, %v2607
    %v2868 = vpack.c.bf16 %v2672, %v2608
    %v2869 = vpack.c.bf16 %v2673, %v2609
    %v2870 = vpack.c.bf16 %v2674, %v2610
    %v2871 = vpack.c.bf16 %v2675, %v2611
    %v2872 = vpack.c.bf16 %v2676, %v2612
    %v2873 = vpack.c.bf16 %v2677, %v2613
    %v2874 = vpack.c.bf16 %v2678, %v2614
    %v2875 = vpack.c.bf16 %v2679, %v2615
    %v2876 = vpack.c.bf16 %v2680, %v2616
    %v2877 = vpack.c.bf16 %v2681, %v2617
    %v2878 = vpack.c.bf16 %v2682, %v2618
    %v2879 = vpack.c.bf16 %v2683, %v2619
    %v2880 = vpack.c.bf16 %v2684, %v2620
    %v2881 = vpack.c.bf16 %v2685, %v2621
    %v2882 = vpack.c.bf16 %v2686, %v2622
    %v2883 = vpack.c.bf16 %v2687, %v2623
    %v2884 = vpack.c.bf16 %v2688, %v2624
    %v2885 = vpack.c.bf16 %v2689, %v2625
    %v2886 = vpack.c.bf16 %v2690, %v2626
    %v2887 = vpack.c.bf16 %v2691, %v2627
    %v2888 = vpack.c.bf16 %v2692, %v2628
    %v2889 = vpack.c.bf16 %v2693, %v2629
    %v2890 = vpack.c.bf16 %v2694, %v2630
    %v2891 = vpack.c.bf16 %v2695, %v2631
    %v2892 = vpack.c.bf16 %v2696, %v2632
    %v2893 = vpack.c.bf16 %v2697, %v2633
    %v2894 = vpack.c.bf16 %v2698, %v2634
    %v2895 = vpack.c.bf16 %v2699, %v2635
    %v2896 = vpack.c.bf16 %v2700, %v2636
    %v2897 = vpack.c.bf16 %v2701, %v2637
    %v2898 = vpack.c.bf16 %v2702, %v2638
    %v2899 = vpack.c.bf16 %v2703, %v2639
    %v2900 = vpack.c.bf16 %v2704, %v2640
    %v2901 = vpack.c.bf16 %v2705, %v2641
    %v2902 = vpack.c.bf16 %v2770, %v2706
    %v2903 = vpack.c.bf16 %v2771, %v2707
    %v2904 = vpack.c.bf16 %v2772, %v2708
    %v2905 = vpack.c.bf16 %v2773, %v2709
    %v2906 = vpack.c.bf16 %v2774, %v2710
    %v2907 = vpack.c.bf16 %v2775, %v2711
    %v2908 = vpack.c.bf16 %v2776, %v2712
    %v2909 = vpack.c.bf16 %v2777, %v2713
    %v2910 = vpack.c.bf16 %v2778, %v2714
    %v2911 = vpack.c.bf16 %v2779, %v2715
    %v2912 = vpack.c.bf16 %v2780, %v2716
    %v2913 = vpack.c.bf16 %v2781, %v2717
    %v2914 = vpack.c.bf16 %v2782, %v2718
    %v2915 = vpack.c.bf16 %v2783, %v2719
    %v2916 = vpack.c.bf16 %v2784, %v2720
    %v2917 = vpack.c.bf16 %v2785, %v2721
    %v2918 = vpack.c.bf16 %v2786, %v2722
    %v2919 = vpack.c.bf16 %v2787, %v2723
    %v2920 = vpack.c.bf16 %v2788, %v2724
    %v2921 = vpack.c.bf16 %v2789, %v2725
    %v2922 = vpack.c.bf16 %v2790, %v2726
    %v2923 = vpack.c.bf16 %v2791, %v2727
    %v2924 = vpack.c.bf16 %v2792, %v2728
    %v2925 = vpack.c.bf16 %v2793, %v2729
    %v2926 = vpack.c.bf16 %v2794, %v2730
    %v2927 = vpack.c.bf16 %v2795, %v2731
    %v2928 = vpack.c.bf16 %v2796, %v2732
    %v2929 = vpack.c.bf16 %v2797, %v2733
    %v2930 = vpack.c.bf16 %v2798, %v2734
    %v2931 = vpack.c.bf16 %v2799, %v2735
    %v2932 = vpack.c.bf16 %v2800, %v2736
    %v2933 = vpack.c.bf16 %v2801, %v2737
    %v2934 = vpack.c.bf16 %v2802, %v2738
    %v2935 = vpack.c.bf16 %v2803, %v2739
    %v2936 = vpack.c.bf16 %v2804, %v2740
    %v2937 = vpack.c.bf16 %v2805, %v2741
    %v2938 = vpack.c.bf16 %v2806, %v2742
    %v2939 = vpack.c.bf16 %v2807, %v2743
    %v2940 = vpack.c.bf16 %v2808, %v2744
    %v2941 = vpack.c.bf16 %v2809, %v2745
    %v2942 = vpack.c.bf16 %v2810, %v2746
    %v2943 = vpack.c.bf16 %v2811, %v2747
    %v2944 = vpack.c.bf16 %v2812, %v2748
    %v2945 = vpack.c.bf16 %v2813, %v2749
    %v2946 = vpack.c.bf16 %v2814, %v2750
    %v2947 = vpack.c.bf16 %v2815, %v2751
    %v2948 = vpack.c.bf16 %v2816, %v2752
    %v2949 = vpack.c.bf16 %v2817, %v2753
    %v2950 = vpack.c.bf16 %v2818, %v2754
    %v2951 = vpack.c.bf16 %v2819, %v2755
    %v2952 = vpack.c.bf16 %v2820, %v2756
    %v2953 = vpack.c.bf16 %v2821, %v2757
    %v2954 = vpack.c.bf16 %v2822, %v2758
    %v2955 = vpack.c.bf16 %v2823, %v2759
    %v2956 = vpack.c.bf16 %v2824, %v2760
    %v2957 = vpack.c.bf16 %v2825, %v2761
    %v2958 = vpack.c.bf16 %v2826, %v2762
    %v2959 = vpack.c.bf16 %v2827, %v2763
    %v2960 = vpack.c.bf16 %v2828, %v2764
    %v2961 = vpack.c.bf16 %v2829, %v2765
    %v2962 = vpack.c.bf16 %v2830, %v2766
    %v2963 = vpack.c.bf16 %v2831, %v2767
    %v2964 = vpack.c.bf16 %v2832, %v2768
    %v2965 = vpack.c.bf16 %v2833, %v2769
    %2966 = vset.pattern.permute.xlu0 4
    %2967 = vperm.xlu0 %2966, %v49
    %v2968 = vpop.permute.xlu0 %2967
    %2970 = vset.pattern.permute.xlu0 4
    %2971 = vperm.xlu0 %2970, %v50
    %v2972 = vpop.permute.xlu0 %2971
    %2974 = vset.pattern.permute.xlu0 4
    %2975 = vperm.xlu0 %2974, %v51
    %v2976 = vpop.permute.xlu0 %2975
    %2978 = vset.pattern.permute.xlu0 4
    %2979 = vperm.xlu0 %2978, %v52
    %v2980 = vpop.permute.xlu0 %2979
    %v2986 = vunpack.c.l.b16 %v2834
    %v2987 = vunpack.c.l.b16 %v2835
    %v2988 = vunpack.c.l.b16 %v2836
    %v2989 = vunpack.c.l.b16 %v2837
    %v2990 = vpack.c.b16 %v2987, %v2986
    %v2991 = vpack.c.b16 %v2989, %v2988
    %vm2992 = vcmask 261120
    %v2994 = vsel %vm2992, %v2990, 0
    %v2997 = vsel %vm2992, %v2991, 0
    %2999 = vmatpush.bf16.msra.mxu0 0
    %3000 = vmatpush.bf16.msra.mxu0 0
    %3001 = vmatpush.bf16.msra.mxu0 0
    %3002 = vmatpush.bf16.msra.mxu0 0
    %3003 = vmatpush.bf16.msra.mxu0 0
    %3004 = vmatpush.bf16.msra.mxu0 0
    %3005 = vmatpush.bf16.msra.mxu0 %v2902
    %3006 = vmatpush.bf16.msra.mxu0 %v2838
    %3007 = vmatmul.bf16.gmra.mxu0 %v2994
    %v3008 = vpop.f32.mrf.mxu0
    %v3009 = vadd.f32 %v2968, %v3008
    %v3010 = vpop.f32.mrf.mxu0
    %v3011 = vadd.f32 %v2972, %v3010
    %3012 = vmatmul.bf16.gmra.mxu0 %v2997
    %v3013 = vpop.f32.mrf.mxu0
    %v3014 = vadd.f32 %v2976, %v3013
    %v3015 = vpop.f32.mrf.mxu0
    %v3016 = vadd.f32 %v2980, %v3015
    %3017 = vdwg.mxu0
    %3018 = vmatpush.bf16.msra.mxu0 0
    %3019 = vmatpush.bf16.msra.mxu0 0
    %3020 = vmatpush.bf16.msra.mxu0 0
    %3021 = vmatpush.bf16.msra.mxu0 0
    %3022 = vmatpush.bf16.msra.mxu0 0
    %3023 = vmatpush.bf16.msra.mxu0 0
    %3024 = vmatpush.bf16.msra.mxu0 %v2903
    %3025 = vmatpush.bf16.msra.mxu0 %v2839
    %3026 = vmatmul.bf16.gmra.mxu0 %v2994
    %v3027 = vpop.f32.mrf.mxu0
    %v3028 = vadd.f32 %v2968, %v3027
    %v3029 = vpop.f32.mrf.mxu0
    %v3030 = vadd.f32 %v2972, %v3029
    %3031 = vmatmul.bf16.gmra.mxu0 %v2997
    %v3032 = vpop.f32.mrf.mxu0
    %v3033 = vadd.f32 %v2976, %v3032
    %v3034 = vpop.f32.mrf.mxu0
    %v3035 = vadd.f32 %v2980, %v3034
    %3036 = vdwg.mxu0
    %3037 = vmatpush.bf16.msra.mxu0 0
    %3038 = vmatpush.bf16.msra.mxu0 0
    %3039 = vmatpush.bf16.msra.mxu0 0
    %3040 = vmatpush.bf16.msra.mxu0 0
    %3041 = vmatpush.bf16.msra.mxu0 0
    %3042 = vmatpush.bf16.msra.mxu0 0
    %3043 = vmatpush.bf16.msra.mxu0 %v2904
    %3044 = vmatpush.bf16.msra.mxu0 %v2840
    %3045 = vmatmul.bf16.gmra.mxu0 %v2994
    %v3046 = vpop.f32.mrf.mxu0
    %v3047 = vadd.f32 %v2968, %v3046
    %v3048 = vpop.f32.mrf.mxu0
    %v3049 = vadd.f32 %v2972, %v3048
    %3050 = vmatmul.bf16.gmra.mxu0 %v2997
    %v3051 = vpop.f32.mrf.mxu0
    %v3052 = vadd.f32 %v2976, %v3051
    %v3053 = vpop.f32.mrf.mxu0
    %v3054 = vadd.f32 %v2980, %v3053
    %3055 = vdwg.mxu0
    %3056 = vmatpush.bf16.msra.mxu0 0
    %3057 = vmatpush.bf16.msra.mxu0 0
    %3058 = vmatpush.bf16.msra.mxu0 0
    %3059 = vmatpush.bf16.msra.mxu0 0
    %3060 = vmatpush.bf16.msra.mxu0 0
    %3061 = vmatpush.bf16.msra.mxu0 0
    %3062 = vmatpush.bf16.msra.mxu0 %v2905
    %3063 = vmatpush.bf16.msra.mxu0 %v2841
    %3064 = vmatmul.bf16.gmra.mxu0 %v2994
    %v3065 = vpop.f32.mrf.mxu0
    %v3066 = vadd.f32 %v2968, %v3065
    %v3067 = vpop.f32.mrf.mxu0
    %v3068 = vadd.f32 %v2972, %v3067
    %3069 = vmatmul.bf16.gmra.mxu0 %v2997
    %v3070 = vpop.f32.mrf.mxu0
    %v3071 = vadd.f32 %v2976, %v3070
    %v3072 = vpop.f32.mrf.mxu0
    %v3073 = vadd.f32 %v2980, %v3072
    %3074 = vdwg.mxu0
    %3075 = vmatpush.bf16.msra.mxu0 0
    %3076 = vmatpush.bf16.msra.mxu0 0
    %3077 = vmatpush.bf16.msra.mxu0 0
    %3078 = vmatpush.bf16.msra.mxu0 0
    %3079 = vmatpush.bf16.msra.mxu0 0
    %3080 = vmatpush.bf16.msra.mxu0 0
    %3081 = vmatpush.bf16.msra.mxu0 %v2906
    %3082 = vmatpush.bf16.msra.mxu0 %v2842
    %3083 = vmatmul.bf16.gmra.mxu0 %v2994
    %v3084 = vpop.f32.mrf.mxu0
    %v3085 = vadd.f32 %v2968, %v3084
    %v3086 = vpop.f32.mrf.mxu0
    %v3087 = vadd.f32 %v2972, %v3086
    %3088 = vmatmul.bf16.gmra.mxu0 %v2997
    %v3089 = vpop.f32.mrf.mxu0
    %v3090 = vadd.f32 %v2976, %v3089
    %v3091 = vpop.f32.mrf.mxu0
    %v3092 = vadd.f32 %v2980, %v3091
    %3093 = vdwg.mxu0
    %3094 = vmatpush.bf16.msra.mxu0 0
    %3095 = vmatpush.bf16.msra.mxu0 0
    %3096 = vmatpush.bf16.msra.mxu0 0
    %3097 = vmatpush.bf16.msra.mxu0 0
    %3098 = vmatpush.bf16.msra.mxu0 0
    %3099 = vmatpush.bf16.msra.mxu0 0
    %3100 = vmatpush.bf16.msra.mxu0 %v2907
    %3101 = vmatpush.bf16.msra.mxu0 %v2843
    %3102 = vmatmul.bf16.gmra.mxu0 %v2994
    %v3103 = vpop.f32.mrf.mxu0
    %v3104 = vadd.f32 %v2968, %v3103
    %v3105 = vpop.f32.mrf.mxu0
    %v3106 = vadd.f32 %v2972, %v3105
    %3107 = vmatmul.bf16.gmra.mxu0 %v2997
    %v3108 = vpop.f32.mrf.mxu0
    %v3109 = vadd.f32 %v2976, %v3108
    %v3110 = vpop.f32.mrf.mxu0
    %v3111 = vadd.f32 %v2980, %v3110
    %3112 = vdwg.mxu0
    %3113 = vmatpush.bf16.msra.mxu0 0
    %3114 = vmatpush.bf16.msra.mxu0 0
    %3115 = vmatpush.bf16.msra.mxu0 0
    %3116 = vmatpush.bf16.msra.mxu0 0
    %3117 = vmatpush.bf16.msra.mxu0 0
    %3118 = vmatpush.bf16.msra.mxu0 0
    %3119 = vmatpush.bf16.msra.mxu0 %v2908
    %3120 = vmatpush.bf16.msra.mxu0 %v2844
    %3121 = vmatmul.bf16.gmra.mxu0 %v2994
    %v3122 = vpop.f32.mrf.mxu0
    %v3123 = vadd.f32 %v2968, %v3122
    %v3124 = vpop.f32.mrf.mxu0
    %v3125 = vadd.f32 %v2972, %v3124
    %3126 = vmatmul.bf16.gmra.mxu0 %v2997
    %v3127 = vpop.f32.mrf.mxu0
    %v3128 = vadd.f32 %v2976, %v3127
    %v3129 = vpop.f32.mrf.mxu0
    %v3130 = vadd.f32 %v2980, %v3129
    %3131 = vdwg.mxu0
    %3132 = vmatpush.bf16.msra.mxu0 0
    %3133 = vmatpush.bf16.msra.mxu0 0
    %3134 = vmatpush.bf16.msra.mxu0 0
    %3135 = vmatpush.bf16.msra.mxu0 0
    %3136 = vmatpush.bf16.msra.mxu0 0
    %3137 = vmatpush.bf16.msra.mxu0 0
    %3138 = vmatpush.bf16.msra.mxu0 %v2909
    %3139 = vmatpush.bf16.msra.mxu0 %v2845
    %3140 = vmatmul.bf16.gmra.mxu0 %v2994
    %v3141 = vpop.f32.mrf.mxu0
    %v3142 = vadd.f32 %v2968, %v3141
    %v3143 = vpop.f32.mrf.mxu0
    %v3144 = vadd.f32 %v2972, %v3143
    %3145 = vmatmul.bf16.gmra.mxu0 %v2997
    %v3146 = vpop.f32.mrf.mxu0
    %v3147 = vadd.f32 %v2976, %v3146
    %v3148 = vpop.f32.mrf.mxu0
    %v3149 = vadd.f32 %v2980, %v3148
    %3150 = vdwg.mxu0
    %3151 = vmatpush.bf16.msra.mxu0 0
    %3152 = vmatpush.bf16.msra.mxu0 0
    %3153 = vmatpush.bf16.msra.mxu0 0
    %3154 = vmatpush.bf16.msra.mxu0 0
    %3155 = vmatpush.bf16.msra.mxu0 0
    %3156 = vmatpush.bf16.msra.mxu0 0
    %3157 = vmatpush.bf16.msra.mxu0 %v2910
    %3158 = vmatpush.bf16.msra.mxu0 %v2846
    %3159 = vmatmul.bf16.gmra.mxu0 %v2994
    %v3160 = vpop.f32.mrf.mxu0
    %v3161 = vadd.f32 %v2968, %v3160
    %v3162 = vpop.f32.mrf.mxu0
    %v3163 = vadd.f32 %v2972, %v3162
    %3164 = vmatmul.bf16.gmra.mxu0 %v2997
    %v3165 = vpop.f32.mrf.mxu0
    %v3166 = vadd.f32 %v2976, %v3165
    %v3167 = vpop.f32.mrf.mxu0
    %v3168 = vadd.f32 %v2980, %v3167
    %3169 = vdwg.mxu0
    %3170 = vmatpush.bf16.msra.mxu0 0
    %3171 = vmatpush.bf16.msra.mxu0 0
    %3172 = vmatpush.bf16.msra.mxu0 0
    %3173 = vmatpush.bf16.msra.mxu0 0
    %3174 = vmatpush.bf16.msra.mxu0 0
    %3175 = vmatpush.bf16.msra.mxu0 0
    %3176 = vmatpush.bf16.msra.mxu0 %v2911
    %3177 = vmatpush.bf16.msra.mxu0 %v2847
    %3178 = vmatmul.bf16.gmra.mxu0 %v2994
    %v3179 = vpop.f32.mrf.mxu0
    %v3180 = vadd.f32 %v2968, %v3179
    %v3181 = vpop.f32.mrf.mxu0
    %v3182 = vadd.f32 %v2972, %v3181
    %3183 = vmatmul.bf16.gmra.mxu0 %v2997
    %v3184 = vpop.f32.mrf.mxu0
    %v3185 = vadd.f32 %v2976, %v3184
    %v3186 = vpop.f32.mrf.mxu0
    %v3187 = vadd.f32 %v2980, %v3186
    %3188 = vdwg.mxu0
    %3189 = vmatpush.bf16.msra.mxu0 0
    %3190 = vmatpush.bf16.msra.mxu0 0
    %3191 = vmatpush.bf16.msra.mxu0 0
    %3192 = vmatpush.bf16.msra.mxu0 0
    %3193 = vmatpush.bf16.msra.mxu0 0
    %3194 = vmatpush.bf16.msra.mxu0 0
    %3195 = vmatpush.bf16.msra.mxu0 %v2912
    %3196 = vmatpush.bf16.msra.mxu0 %v2848
    %3197 = vmatmul.bf16.gmra.mxu0 %v2994
    %v3198 = vpop.f32.mrf.mxu0
    %v3199 = vadd.f32 %v2968, %v3198
    %v3200 = vpop.f32.mrf.mxu0
    %v3201 = vadd.f32 %v2972, %v3200
    %3202 = vmatmul.bf16.gmra.mxu0 %v2997
    %v3203 = vpop.f32.mrf.mxu0
    %v3204 = vadd.f32 %v2976, %v3203
    %v3205 = vpop.f32.mrf.mxu0
    %v3206 = vadd.f32 %v2980, %v3205
    %3207 = vdwg.mxu0
    %3208 = vmatpush.bf16.msra.mxu0 0
    %3209 = vmatpush.bf16.msra.mxu0 0
    %3210 = vmatpush.bf16.msra.mxu0 0
    %3211 = vmatpush.bf16.msra.mxu0 0
    %3212 = vmatpush.bf16.msra.mxu0 0
    %3213 = vmatpush.bf16.msra.mxu0 0
    %3214 = vmatpush.bf16.msra.mxu0 %v2913
    %3215 = vmatpush.bf16.msra.mxu0 %v2849
    %3216 = vmatmul.bf16.gmra.mxu0 %v2994
    %v3217 = vpop.f32.mrf.mxu0
    %v3218 = vadd.f32 %v2968, %v3217
    %v3219 = vpop.f32.mrf.mxu0
    %v3220 = vadd.f32 %v2972, %v3219
    %3221 = vmatmul.bf16.gmra.mxu0 %v2997
    %v3222 = vpop.f32.mrf.mxu0
    %v3223 = vadd.f32 %v2976, %v3222
    %v3224 = vpop.f32.mrf.mxu0
    %v3225 = vadd.f32 %v2980, %v3224
    %3226 = vdwg.mxu0
    %3227 = vmatpush.bf16.msra.mxu0 0
    %3228 = vmatpush.bf16.msra.mxu0 0
    %3229 = vmatpush.bf16.msra.mxu0 0
    %3230 = vmatpush.bf16.msra.mxu0 0
    %3231 = vmatpush.bf16.msra.mxu0 0
    %3232 = vmatpush.bf16.msra.mxu0 0
    %3233 = vmatpush.bf16.msra.mxu0 %v2914
    %3234 = vmatpush.bf16.msra.mxu0 %v2850
    %3235 = vmatmul.bf16.gmra.mxu0 %v2994
    %v3236 = vpop.f32.mrf.mxu0
    %v3237 = vadd.f32 %v2968, %v3236
    %v3238 = vpop.f32.mrf.mxu0
    %v3239 = vadd.f32 %v2972, %v3238
    %3240 = vmatmul.bf16.gmra.mxu0 %v2997
    %v3241 = vpop.f32.mrf.mxu0
    %v3242 = vadd.f32 %v2976, %v3241
    %v3243 = vpop.f32.mrf.mxu0
    %v3244 = vadd.f32 %v2980, %v3243
    %3245 = vdwg.mxu0
    %3246 = vmatpush.bf16.msra.mxu0 0
    %3247 = vmatpush.bf16.msra.mxu0 0
    %3248 = vmatpush.bf16.msra.mxu0 0
    %3249 = vmatpush.bf16.msra.mxu0 0
    %3250 = vmatpush.bf16.msra.mxu0 0
    %3251 = vmatpush.bf16.msra.mxu0 0
    %3252 = vmatpush.bf16.msra.mxu0 %v2915
    %3253 = vmatpush.bf16.msra.mxu0 %v2851
    %3254 = vmatmul.bf16.gmra.mxu0 %v2994
    %v3255 = vpop.f32.mrf.mxu0
    %v3256 = vadd.f32 %v2968, %v3255
    %v3257 = vpop.f32.mrf.mxu0
    %v3258 = vadd.f32 %v2972, %v3257
    %3259 = vmatmul.bf16.gmra.mxu0 %v2997
    %v3260 = vpop.f32.mrf.mxu0
    %v3261 = vadd.f32 %v2976, %v3260
    %v3262 = vpop.f32.mrf.mxu0
    %v3263 = vadd.f32 %v2980, %v3262
    %3264 = vdwg.mxu0
    %3265 = vmatpush.bf16.msra.mxu0 0
    %3266 = vmatpush.bf16.msra.mxu0 0
    %3267 = vmatpush.bf16.msra.mxu0 0
    %3268 = vmatpush.bf16.msra.mxu0 0
    %3269 = vmatpush.bf16.msra.mxu0 0
    %3270 = vmatpush.bf16.msra.mxu0 0
    %3271 = vmatpush.bf16.msra.mxu0 %v2916
    %3272 = vmatpush.bf16.msra.mxu0 %v2852
    %3273 = vmatmul.bf16.gmra.mxu0 %v2994
    %v3274 = vpop.f32.mrf.mxu0
    %v3275 = vadd.f32 %v2968, %v3274
    %v3276 = vpop.f32.mrf.mxu0
    %v3277 = vadd.f32 %v2972, %v3276
    %3278 = vmatmul.bf16.gmra.mxu0 %v2997
    %v3279 = vpop.f32.mrf.mxu0
    %v3280 = vadd.f32 %v2976, %v3279
    %v3281 = vpop.f32.mrf.mxu0
    %v3282 = vadd.f32 %v2980, %v3281
    %3283 = vdwg.mxu0
    %3284 = vmatpush.bf16.msra.mxu0 0
    %3285 = vmatpush.bf16.msra.mxu0 0
    %3286 = vmatpush.bf16.msra.mxu0 0
    %3287 = vmatpush.bf16.msra.mxu0 0
    %3288 = vmatpush.bf16.msra.mxu0 0
    %3289 = vmatpush.bf16.msra.mxu0 0
    %3290 = vmatpush.bf16.msra.mxu0 %v2917
    %3291 = vmatpush.bf16.msra.mxu0 %v2853
    %3292 = vmatmul.bf16.gmra.mxu0 %v2994
    %v3293 = vpop.f32.mrf.mxu0
    %v3294 = vadd.f32 %v2968, %v3293
    %v3295 = vpop.f32.mrf.mxu0
    %v3296 = vadd.f32 %v2972, %v3295
    %3297 = vmatmul.bf16.gmra.mxu0 %v2997
    %v3298 = vpop.f32.mrf.mxu0
    %v3299 = vadd.f32 %v2976, %v3298
    %v3300 = vpop.f32.mrf.mxu0
    %v3301 = vadd.f32 %v2980, %v3300
    %3302 = vdwg.mxu0
    %3303 = vmatpush.bf16.msra.mxu0 0
    %3304 = vmatpush.bf16.msra.mxu0 0
    %3305 = vmatpush.bf16.msra.mxu0 0
    %3306 = vmatpush.bf16.msra.mxu0 0
    %3307 = vmatpush.bf16.msra.mxu0 0
    %3308 = vmatpush.bf16.msra.mxu0 0
    %3309 = vmatpush.bf16.msra.mxu0 %v2918
    %3310 = vmatpush.bf16.msra.mxu0 %v2854
    %3311 = vmatmul.bf16.gmra.mxu0 %v2994
    %v3312 = vpop.f32.mrf.mxu0
    %v3313 = vadd.f32 %v2968, %v3312
    %v3314 = vpop.f32.mrf.mxu0
    %v3315 = vadd.f32 %v2972, %v3314
    %3316 = vmatmul.bf16.gmra.mxu0 %v2997
    %v3317 = vpop.f32.mrf.mxu0
    %v3318 = vadd.f32 %v2976, %v3317
    %v3319 = vpop.f32.mrf.mxu0
    %v3320 = vadd.f32 %v2980, %v3319
    %3321 = vdwg.mxu0
    %3322 = vmatpush.bf16.msra.mxu0 0
    %3323 = vmatpush.bf16.msra.mxu0 0
    %3324 = vmatpush.bf16.msra.mxu0 0
    %3325 = vmatpush.bf16.msra.mxu0 0
    %3326 = vmatpush.bf16.msra.mxu0 0
    %3327 = vmatpush.bf16.msra.mxu0 0
    %3328 = vmatpush.bf16.msra.mxu0 %v2919
    %3329 = vmatpush.bf16.msra.mxu0 %v2855
    %3330 = vmatmul.bf16.gmra.mxu0 %v2994
    %v3331 = vpop.f32.mrf.mxu0
    %v3332 = vadd.f32 %v2968, %v3331
    %v3333 = vpop.f32.mrf.mxu0
    %v3334 = vadd.f32 %v2972, %v3333
    %3335 = vmatmul.bf16.gmra.mxu0 %v2997
    %v3336 = vpop.f32.mrf.mxu0
    %v3337 = vadd.f32 %v2976, %v3336
    %v3338 = vpop.f32.mrf.mxu0
    %v3339 = vadd.f32 %v2980, %v3338
    %3340 = vdwg.mxu0
    %3341 = vmatpush.bf16.msra.mxu0 0
    %3342 = vmatpush.bf16.msra.mxu0 0
    %3343 = vmatpush.bf16.msra.mxu0 0
    %3344 = vmatpush.bf16.msra.mxu0 0
    %3345 = vmatpush.bf16.msra.mxu0 0
    %3346 = vmatpush.bf16.msra.mxu0 0
    %3347 = vmatpush.bf16.msra.mxu0 %v2920
    %3348 = vmatpush.bf16.msra.mxu0 %v2856
    %3349 = vmatmul.bf16.gmra.mxu0 %v2994
    %v3350 = vpop.f32.mrf.mxu0
    %v3351 = vadd.f32 %v2968, %v3350
    %v3352 = vpop.f32.mrf.mxu0
    %v3353 = vadd.f32 %v2972, %v3352
    %3354 = vmatmul.bf16.gmra.mxu0 %v2997
    %v3355 = vpop.f32.mrf.mxu0
    %v3356 = vadd.f32 %v2976, %v3355
    %v3357 = vpop.f32.mrf.mxu0
    %v3358 = vadd.f32 %v2980, %v3357
    %3359 = vdwg.mxu0
    %3360 = vmatpush.bf16.msra.mxu0 0
    %3361 = vmatpush.bf16.msra.mxu0 0
    %3362 = vmatpush.bf16.msra.mxu0 0
    %3363 = vmatpush.bf16.msra.mxu0 0
    %3364 = vmatpush.bf16.msra.mxu0 0
    %3365 = vmatpush.bf16.msra.mxu0 0
    %3366 = vmatpush.bf16.msra.mxu0 %v2921
    %3367 = vmatpush.bf16.msra.mxu0 %v2857
    %3368 = vmatmul.bf16.gmra.mxu0 %v2994
    %v3369 = vpop.f32.mrf.mxu0
    %v3370 = vadd.f32 %v2968, %v3369
    %v3371 = vpop.f32.mrf.mxu0
    %v3372 = vadd.f32 %v2972, %v3371
    %3373 = vmatmul.bf16.gmra.mxu0 %v2997
    %v3374 = vpop.f32.mrf.mxu0
    %v3375 = vadd.f32 %v2976, %v3374
    %v3376 = vpop.f32.mrf.mxu0
    %v3377 = vadd.f32 %v2980, %v3376
    %3378 = vdwg.mxu0
    %3379 = vmatpush.bf16.msra.mxu0 0
    %3380 = vmatpush.bf16.msra.mxu0 0
    %3381 = vmatpush.bf16.msra.mxu0 0
    %3382 = vmatpush.bf16.msra.mxu0 0
    %3383 = vmatpush.bf16.msra.mxu0 0
    %3384 = vmatpush.bf16.msra.mxu0 0
    %3385 = vmatpush.bf16.msra.mxu0 %v2922
    %3386 = vmatpush.bf16.msra.mxu0 %v2858
    %3387 = vmatmul.bf16.gmra.mxu0 %v2994
    %v3388 = vpop.f32.mrf.mxu0
    %v3389 = vadd.f32 %v2968, %v3388
    %v3390 = vpop.f32.mrf.mxu0
    %v3391 = vadd.f32 %v2972, %v3390
    %3392 = vmatmul.bf16.gmra.mxu0 %v2997
    %v3393 = vpop.f32.mrf.mxu0
    %v3394 = vadd.f32 %v2976, %v3393
    %v3395 = vpop.f32.mrf.mxu0
    %v3396 = vadd.f32 %v2980, %v3395
    %3397 = vdwg.mxu0
    %3398 = vmatpush.bf16.msra.mxu0 0
    %3399 = vmatpush.bf16.msra.mxu0 0
    %3400 = vmatpush.bf16.msra.mxu0 0
    %3401 = vmatpush.bf16.msra.mxu0 0
    %3402 = vmatpush.bf16.msra.mxu0 0
    %3403 = vmatpush.bf16.msra.mxu0 0
    %3404 = vmatpush.bf16.msra.mxu0 %v2923
    %3405 = vmatpush.bf16.msra.mxu0 %v2859
    %3406 = vmatmul.bf16.gmra.mxu0 %v2994
    %v3407 = vpop.f32.mrf.mxu0
    %v3408 = vadd.f32 %v2968, %v3407
    %v3409 = vpop.f32.mrf.mxu0
    %v3410 = vadd.f32 %v2972, %v3409
    %3411 = vmatmul.bf16.gmra.mxu0 %v2997
    %v3412 = vpop.f32.mrf.mxu0
    %v3413 = vadd.f32 %v2976, %v3412
    %v3414 = vpop.f32.mrf.mxu0
    %v3415 = vadd.f32 %v2980, %v3414
    %3416 = vdwg.mxu0
    %3417 = vmatpush.bf16.msra.mxu0 0
    %3418 = vmatpush.bf16.msra.mxu0 0
    %3419 = vmatpush.bf16.msra.mxu0 0
    %3420 = vmatpush.bf16.msra.mxu0 0
    %3421 = vmatpush.bf16.msra.mxu0 0
    %3422 = vmatpush.bf16.msra.mxu0 0
    %3423 = vmatpush.bf16.msra.mxu0 %v2924
    %3424 = vmatpush.bf16.msra.mxu0 %v2860
    %3425 = vmatmul.bf16.gmra.mxu0 %v2994
    %v3426 = vpop.f32.mrf.mxu0
    %v3427 = vadd.f32 %v2968, %v3426
    %v3428 = vpop.f32.mrf.mxu0
    %v3429 = vadd.f32 %v2972, %v3428
    %3430 = vmatmul.bf16.gmra.mxu0 %v2997
    %v3431 = vpop.f32.mrf.mxu0
    %v3432 = vadd.f32 %v2976, %v3431
    %v3433 = vpop.f32.mrf.mxu0
    %v3434 = vadd.f32 %v2980, %v3433
    %3435 = vdwg.mxu0
    %3436 = vmatpush.bf16.msra.mxu0 0
    %3437 = vmatpush.bf16.msra.mxu0 0
    %3438 = vmatpush.bf16.msra.mxu0 0
    %3439 = vmatpush.bf16.msra.mxu0 0
    %3440 = vmatpush.bf16.msra.mxu0 0
    %3441 = vmatpush.bf16.msra.mxu0 0
    %3442 = vmatpush.bf16.msra.mxu0 %v2925
    %3443 = vmatpush.bf16.msra.mxu0 %v2861
    %3444 = vmatmul.bf16.gmra.mxu0 %v2994
    %v3445 = vpop.f32.mrf.mxu0
    %v3446 = vadd.f32 %v2968, %v3445
    %v3447 = vpop.f32.mrf.mxu0
    %v3448 = vadd.f32 %v2972, %v3447
    %3449 = vmatmul.bf16.gmra.mxu0 %v2997
    %v3450 = vpop.f32.mrf.mxu0
    %v3451 = vadd.f32 %v2976, %v3450
    %v3452 = vpop.f32.mrf.mxu0
    %v3453 = vadd.f32 %v2980, %v3452
    %3454 = vdwg.mxu0
    %3455 = vmatpush.bf16.msra.mxu0 0
    %3456 = vmatpush.bf16.msra.mxu0 0
    %3457 = vmatpush.bf16.msra.mxu0 0
    %3458 = vmatpush.bf16.msra.mxu0 0
    %3459 = vmatpush.bf16.msra.mxu0 0
    %3460 = vmatpush.bf16.msra.mxu0 0
    %3461 = vmatpush.bf16.msra.mxu0 %v2926
    %3462 = vmatpush.bf16.msra.mxu0 %v2862
    %3463 = vmatmul.bf16.gmra.mxu0 %v2994
    %v3464 = vpop.f32.mrf.mxu0
    %v3465 = vadd.f32 %v2968, %v3464
    %v3466 = vpop.f32.mrf.mxu0
    %v3467 = vadd.f32 %v2972, %v3466
    %3468 = vmatmul.bf16.gmra.mxu0 %v2997
    %v3469 = vpop.f32.mrf.mxu0
    %v3470 = vadd.f32 %v2976, %v3469
    %v3471 = vpop.f32.mrf.mxu0
    %v3472 = vadd.f32 %v2980, %v3471
    %3473 = vdwg.mxu0
    %3474 = vmatpush.bf16.msra.mxu0 0
    %3475 = vmatpush.bf16.msra.mxu0 0
    %3476 = vmatpush.bf16.msra.mxu0 0
    %3477 = vmatpush.bf16.msra.mxu0 0
    %3478 = vmatpush.bf16.msra.mxu0 0
    %3479 = vmatpush.bf16.msra.mxu0 0
    %3480 = vmatpush.bf16.msra.mxu0 %v2927
    %3481 = vmatpush.bf16.msra.mxu0 %v2863
    %3482 = vmatmul.bf16.gmra.mxu0 %v2994
    %v3483 = vpop.f32.mrf.mxu0
    %v3484 = vadd.f32 %v2968, %v3483
    %v3485 = vpop.f32.mrf.mxu0
    %v3486 = vadd.f32 %v2972, %v3485
    %3487 = vmatmul.bf16.gmra.mxu0 %v2997
    %v3488 = vpop.f32.mrf.mxu0
    %v3489 = vadd.f32 %v2976, %v3488
    %v3490 = vpop.f32.mrf.mxu0
    %v3491 = vadd.f32 %v2980, %v3490
    %3492 = vdwg.mxu0
    %3493 = vmatpush.bf16.msra.mxu0 0
    %3494 = vmatpush.bf16.msra.mxu0 0
    %3495 = vmatpush.bf16.msra.mxu0 0
    %3496 = vmatpush.bf16.msra.mxu0 0
    %3497 = vmatpush.bf16.msra.mxu0 0
    %3498 = vmatpush.bf16.msra.mxu0 0
    %3499 = vmatpush.bf16.msra.mxu0 %v2928
    %3500 = vmatpush.bf16.msra.mxu0 %v2864
    %3501 = vmatmul.bf16.gmra.mxu0 %v2994
    %v3502 = vpop.f32.mrf.mxu0
    %v3503 = vadd.f32 %v2968, %v3502
    %v3504 = vpop.f32.mrf.mxu0
    %v3505 = vadd.f32 %v2972, %v3504
    %3506 = vmatmul.bf16.gmra.mxu0 %v2997
    %v3507 = vpop.f32.mrf.mxu0
    %v3508 = vadd.f32 %v2976, %v3507
    %v3509 = vpop.f32.mrf.mxu0
    %v3510 = vadd.f32 %v2980, %v3509
    %3511 = vdwg.mxu0
    %3512 = vmatpush.bf16.msra.mxu0 0
    %3513 = vmatpush.bf16.msra.mxu0 0
    %3514 = vmatpush.bf16.msra.mxu0 0
    %3515 = vmatpush.bf16.msra.mxu0 0
    %3516 = vmatpush.bf16.msra.mxu0 0
    %3517 = vmatpush.bf16.msra.mxu0 0
    %3518 = vmatpush.bf16.msra.mxu0 %v2929
    %3519 = vmatpush.bf16.msra.mxu0 %v2865
    %3520 = vmatmul.bf16.gmra.mxu0 %v2994
    %v3521 = vpop.f32.mrf.mxu0
    %v3522 = vadd.f32 %v2968, %v3521
    %v3523 = vpop.f32.mrf.mxu0
    %v3524 = vadd.f32 %v2972, %v3523
    %3525 = vmatmul.bf16.gmra.mxu0 %v2997
    %v3526 = vpop.f32.mrf.mxu0
    %v3527 = vadd.f32 %v2976, %v3526
    %v3528 = vpop.f32.mrf.mxu0
    %v3529 = vadd.f32 %v2980, %v3528
    %3530 = vdwg.mxu0
    %3531 = vmatpush.bf16.msra.mxu0 0
    %3532 = vmatpush.bf16.msra.mxu0 0
    %3533 = vmatpush.bf16.msra.mxu0 0
    %3534 = vmatpush.bf16.msra.mxu0 0
    %3535 = vmatpush.bf16.msra.mxu0 0
    %3536 = vmatpush.bf16.msra.mxu0 0
    %3537 = vmatpush.bf16.msra.mxu0 %v2930
    %3538 = vmatpush.bf16.msra.mxu0 %v2866
    %3539 = vmatmul.bf16.gmra.mxu0 %v2994
    %v3540 = vpop.f32.mrf.mxu0
    %v3541 = vadd.f32 %v2968, %v3540
    %v3542 = vpop.f32.mrf.mxu0
    %v3543 = vadd.f32 %v2972, %v3542
    %3544 = vmatmul.bf16.gmra.mxu0 %v2997
    %v3545 = vpop.f32.mrf.mxu0
    %v3546 = vadd.f32 %v2976, %v3545
    %v3547 = vpop.f32.mrf.mxu0
    %v3548 = vadd.f32 %v2980, %v3547
    %3549 = vdwg.mxu0
    %3550 = vmatpush.bf16.msra.mxu0 0
    %3551 = vmatpush.bf16.msra.mxu0 0
    %3552 = vmatpush.bf16.msra.mxu0 0
    %3553 = vmatpush.bf16.msra.mxu0 0
    %3554 = vmatpush.bf16.msra.mxu0 0
    %3555 = vmatpush.bf16.msra.mxu0 0
    %3556 = vmatpush.bf16.msra.mxu0 %v2931
    %3557 = vmatpush.bf16.msra.mxu0 %v2867
    %3558 = vmatmul.bf16.gmra.mxu0 %v2994
    %v3559 = vpop.f32.mrf.mxu0
    %v3560 = vadd.f32 %v2968, %v3559
    %v3561 = vpop.f32.mrf.mxu0
    %v3562 = vadd.f32 %v2972, %v3561
    %3563 = vmatmul.bf16.gmra.mxu0 %v2997
    %v3564 = vpop.f32.mrf.mxu0
    %v3565 = vadd.f32 %v2976, %v3564
    %v3566 = vpop.f32.mrf.mxu0
    %v3567 = vadd.f32 %v2980, %v3566
    %3568 = vdwg.mxu0
    %3569 = vmatpush.bf16.msra.mxu0 0
    %3570 = vmatpush.bf16.msra.mxu0 0
    %3571 = vmatpush.bf16.msra.mxu0 0
    %3572 = vmatpush.bf16.msra.mxu0 0
    %3573 = vmatpush.bf16.msra.mxu0 0
    %3574 = vmatpush.bf16.msra.mxu0 0
    %3575 = vmatpush.bf16.msra.mxu0 %v2932
    %3576 = vmatpush.bf16.msra.mxu0 %v2868
    %3577 = vmatmul.bf16.gmra.mxu0 %v2994
    %v3578 = vpop.f32.mrf.mxu0
    %v3579 = vadd.f32 %v2968, %v3578
    %v3580 = vpop.f32.mrf.mxu0
    %v3581 = vadd.f32 %v2972, %v3580
    %3582 = vmatmul.bf16.gmra.mxu0 %v2997
    %v3583 = vpop.f32.mrf.mxu0
    %v3584 = vadd.f32 %v2976, %v3583
    %v3585 = vpop.f32.mrf.mxu0
    %v3586 = vadd.f32 %v2980, %v3585
    %3587 = vdwg.mxu0
    %3588 = vmatpush.bf16.msra.mxu0 0
    %3589 = vmatpush.bf16.msra.mxu0 0
    %3590 = vmatpush.bf16.msra.mxu0 0
    %3591 = vmatpush.bf16.msra.mxu0 0
    %3592 = vmatpush.bf16.msra.mxu0 0
    %3593 = vmatpush.bf16.msra.mxu0 0
    %3594 = vmatpush.bf16.msra.mxu0 %v2933
    %3595 = vmatpush.bf16.msra.mxu0 %v2869
    %3596 = vmatmul.bf16.gmra.mxu0 %v2994
    %v3597 = vpop.f32.mrf.mxu0
    %v3598 = vadd.f32 %v2968, %v3597
    %v3599 = vpop.f32.mrf.mxu0
    %v3600 = vadd.f32 %v2972, %v3599
    %3601 = vmatmul.bf16.gmra.mxu0 %v2997
    %v3602 = vpop.f32.mrf.mxu0
    %v3603 = vadd.f32 %v2976, %v3602
    %v3604 = vpop.f32.mrf.mxu0
    %v3605 = vadd.f32 %v2980, %v3604
    %3606 = vdwg.mxu0
    %3607 = vmatpush.bf16.msra.mxu0 0
    %3608 = vmatpush.bf16.msra.mxu0 0
    %3609 = vmatpush.bf16.msra.mxu0 0
    %3610 = vmatpush.bf16.msra.mxu0 0
    %3611 = vmatpush.bf16.msra.mxu0 0
    %3612 = vmatpush.bf16.msra.mxu0 0
    %3613 = vmatpush.bf16.msra.mxu0 %v2934
    %3614 = vmatpush.bf16.msra.mxu0 %v2870
    %3615 = vmatmul.bf16.gmra.mxu0 %v2994
    %v3616 = vpop.f32.mrf.mxu0
    %v3617 = vadd.f32 %v2968, %v3616
    %v3618 = vpop.f32.mrf.mxu0
    %v3619 = vadd.f32 %v2972, %v3618
    %3620 = vmatmul.bf16.gmra.mxu0 %v2997
    %v3621 = vpop.f32.mrf.mxu0
    %v3622 = vadd.f32 %v2976, %v3621
    %v3623 = vpop.f32.mrf.mxu0
    %v3624 = vadd.f32 %v2980, %v3623
    %3625 = vdwg.mxu0
    %3626 = vmatpush.bf16.msra.mxu0 0
    %3627 = vmatpush.bf16.msra.mxu0 0
    %3628 = vmatpush.bf16.msra.mxu0 0
    %3629 = vmatpush.bf16.msra.mxu0 0
    %3630 = vmatpush.bf16.msra.mxu0 0
    %3631 = vmatpush.bf16.msra.mxu0 0
    %3632 = vmatpush.bf16.msra.mxu0 %v2935
    %3633 = vmatpush.bf16.msra.mxu0 %v2871
    %3634 = vmatmul.bf16.gmra.mxu0 %v2994
    %v3635 = vpop.f32.mrf.mxu0
    %v3636 = vadd.f32 %v2968, %v3635
    %v3637 = vpop.f32.mrf.mxu0
    %v3638 = vadd.f32 %v2972, %v3637
    %3639 = vmatmul.bf16.gmra.mxu0 %v2997
    %v3640 = vpop.f32.mrf.mxu0
    %v3641 = vadd.f32 %v2976, %v3640
    %v3642 = vpop.f32.mrf.mxu0
    %v3643 = vadd.f32 %v2980, %v3642
    %3644 = vdwg.mxu0
    %3645 = vmatpush.bf16.msra.mxu0 0
    %3646 = vmatpush.bf16.msra.mxu0 0
    %3647 = vmatpush.bf16.msra.mxu0 0
    %3648 = vmatpush.bf16.msra.mxu0 0
    %3649 = vmatpush.bf16.msra.mxu0 0
    %3650 = vmatpush.bf16.msra.mxu0 0
    %3651 = vmatpush.bf16.msra.mxu0 %v2936
    %3652 = vmatpush.bf16.msra.mxu0 %v2872
    %3653 = vmatmul.bf16.gmra.mxu0 %v2994
    %v3654 = vpop.f32.mrf.mxu0
    %v3655 = vadd.f32 %v2968, %v3654
    %v3656 = vpop.f32.mrf.mxu0
    %v3657 = vadd.f32 %v2972, %v3656
    %3658 = vmatmul.bf16.gmra.mxu0 %v2997
    %v3659 = vpop.f32.mrf.mxu0
    %v3660 = vadd.f32 %v2976, %v3659
    %v3661 = vpop.f32.mrf.mxu0
    %v3662 = vadd.f32 %v2980, %v3661
    %3663 = vdwg.mxu0
    %3664 = vmatpush.bf16.msra.mxu0 0
    %3665 = vmatpush.bf16.msra.mxu0 0
    %3666 = vmatpush.bf16.msra.mxu0 0
    %3667 = vmatpush.bf16.msra.mxu0 0
    %3668 = vmatpush.bf16.msra.mxu0 0
    %3669 = vmatpush.bf16.msra.mxu0 0
    %3670 = vmatpush.bf16.msra.mxu0 %v2937
    %3671 = vmatpush.bf16.msra.mxu0 %v2873
    %3672 = vmatmul.bf16.gmra.mxu0 %v2994
    %v3673 = vpop.f32.mrf.mxu0
    %v3674 = vadd.f32 %v2968, %v3673
    %v3675 = vpop.f32.mrf.mxu0
    %v3676 = vadd.f32 %v2972, %v3675
    %3677 = vmatmul.bf16.gmra.mxu0 %v2997
    %v3678 = vpop.f32.mrf.mxu0
    %v3679 = vadd.f32 %v2976, %v3678
    %v3680 = vpop.f32.mrf.mxu0
    %v3681 = vadd.f32 %v2980, %v3680
    %3682 = vdwg.mxu0
    %3683 = vmatpush.bf16.msra.mxu0 0
    %3684 = vmatpush.bf16.msra.mxu0 0
    %3685 = vmatpush.bf16.msra.mxu0 0
    %3686 = vmatpush.bf16.msra.mxu0 0
    %3687 = vmatpush.bf16.msra.mxu0 0
    %3688 = vmatpush.bf16.msra.mxu0 0
    %3689 = vmatpush.bf16.msra.mxu0 %v2938
    %3690 = vmatpush.bf16.msra.mxu0 %v2874
    %3691 = vmatmul.bf16.gmra.mxu0 %v2994
    %v3692 = vpop.f32.mrf.mxu0
    %v3693 = vadd.f32 %v2968, %v3692
    %v3694 = vpop.f32.mrf.mxu0
    %v3695 = vadd.f32 %v2972, %v3694
    %3696 = vmatmul.bf16.gmra.mxu0 %v2997
    %v3697 = vpop.f32.mrf.mxu0
    %v3698 = vadd.f32 %v2976, %v3697
    %v3699 = vpop.f32.mrf.mxu0
    %v3700 = vadd.f32 %v2980, %v3699
    %3701 = vdwg.mxu0
    %3702 = vmatpush.bf16.msra.mxu0 0
    %3703 = vmatpush.bf16.msra.mxu0 0
    %3704 = vmatpush.bf16.msra.mxu0 0
    %3705 = vmatpush.bf16.msra.mxu0 0
    %3706 = vmatpush.bf16.msra.mxu0 0
    %3707 = vmatpush.bf16.msra.mxu0 0
    %3708 = vmatpush.bf16.msra.mxu0 %v2939
    %3709 = vmatpush.bf16.msra.mxu0 %v2875
    %3710 = vmatmul.bf16.gmra.mxu0 %v2994
    %v3711 = vpop.f32.mrf.mxu0
    %v3712 = vadd.f32 %v2968, %v3711
    %v3713 = vpop.f32.mrf.mxu0
    %v3714 = vadd.f32 %v2972, %v3713
    %3715 = vmatmul.bf16.gmra.mxu0 %v2997
    %v3716 = vpop.f32.mrf.mxu0
    %v3717 = vadd.f32 %v2976, %v3716
    %v3718 = vpop.f32.mrf.mxu0
    %v3719 = vadd.f32 %v2980, %v3718
    %3720 = vdwg.mxu0
    %3721 = vmatpush.bf16.msra.mxu0 0
    %3722 = vmatpush.bf16.msra.mxu0 0
    %3723 = vmatpush.bf16.msra.mxu0 0
    %3724 = vmatpush.bf16.msra.mxu0 0
    %3725 = vmatpush.bf16.msra.mxu0 0
    %3726 = vmatpush.bf16.msra.mxu0 0
    %3727 = vmatpush.bf16.msra.mxu0 %v2940
    %3728 = vmatpush.bf16.msra.mxu0 %v2876
    %3729 = vmatmul.bf16.gmra.mxu0 %v2994
    %v3730 = vpop.f32.mrf.mxu0
    %v3731 = vadd.f32 %v2968, %v3730
    %v3732 = vpop.f32.mrf.mxu0
    %v3733 = vadd.f32 %v2972, %v3732
    %3734 = vmatmul.bf16.gmra.mxu0 %v2997
    %v3735 = vpop.f32.mrf.mxu0
    %v3736 = vadd.f32 %v2976, %v3735
    %v3737 = vpop.f32.mrf.mxu0
    %v3738 = vadd.f32 %v2980, %v3737
    %3739 = vdwg.mxu0
    %3740 = vmatpush.bf16.msra.mxu0 0
    %3741 = vmatpush.bf16.msra.mxu0 0
    %3742 = vmatpush.bf16.msra.mxu0 0
    %3743 = vmatpush.bf16.msra.mxu0 0
    %3744 = vmatpush.bf16.msra.mxu0 0
    %3745 = vmatpush.bf16.msra.mxu0 0
    %3746 = vmatpush.bf16.msra.mxu0 %v2941
    %3747 = vmatpush.bf16.msra.mxu0 %v2877
    %3748 = vmatmul.bf16.gmra.mxu0 %v2994
    %v3749 = vpop.f32.mrf.mxu0
    %v3750 = vadd.f32 %v2968, %v3749
    %v3751 = vpop.f32.mrf.mxu0
    %v3752 = vadd.f32 %v2972, %v3751
    %3753 = vmatmul.bf16.gmra.mxu0 %v2997
    %v3754 = vpop.f32.mrf.mxu0
    %v3755 = vadd.f32 %v2976, %v3754
    %v3756 = vpop.f32.mrf.mxu0
    %v3757 = vadd.f32 %v2980, %v3756
    %3758 = vdwg.mxu0
    %3759 = vmatpush.bf16.msra.mxu0 0
    %3760 = vmatpush.bf16.msra.mxu0 0
    %3761 = vmatpush.bf16.msra.mxu0 0
    %3762 = vmatpush.bf16.msra.mxu0 0
    %3763 = vmatpush.bf16.msra.mxu0 0
    %3764 = vmatpush.bf16.msra.mxu0 0
    %3765 = vmatpush.bf16.msra.mxu0 %v2942
    %3766 = vmatpush.bf16.msra.mxu0 %v2878
    %3767 = vmatmul.bf16.gmra.mxu0 %v2994
    %v3768 = vpop.f32.mrf.mxu0
    %v3769 = vadd.f32 %v2968, %v3768
    %v3770 = vpop.f32.mrf.mxu0
    %v3771 = vadd.f32 %v2972, %v3770
    %3772 = vmatmul.bf16.gmra.mxu0 %v2997
    %v3773 = vpop.f32.mrf.mxu0
    %v3774 = vadd.f32 %v2976, %v3773
    %v3775 = vpop.f32.mrf.mxu0
    %v3776 = vadd.f32 %v2980, %v3775
    %3777 = vdwg.mxu0
    %3778 = vmatpush.bf16.msra.mxu0 0
    %3779 = vmatpush.bf16.msra.mxu0 0
    %3780 = vmatpush.bf16.msra.mxu0 0
    %3781 = vmatpush.bf16.msra.mxu0 0
    %3782 = vmatpush.bf16.msra.mxu0 0
    %3783 = vmatpush.bf16.msra.mxu0 0
    %3784 = vmatpush.bf16.msra.mxu0 %v2943
    %3785 = vmatpush.bf16.msra.mxu0 %v2879
    %3786 = vmatmul.bf16.gmra.mxu0 %v2994
    %v3787 = vpop.f32.mrf.mxu0
    %v3788 = vadd.f32 %v2968, %v3787
    %v3789 = vpop.f32.mrf.mxu0
    %v3790 = vadd.f32 %v2972, %v3789
    %3791 = vmatmul.bf16.gmra.mxu0 %v2997
    %v3792 = vpop.f32.mrf.mxu0
    %v3793 = vadd.f32 %v2976, %v3792
    %v3794 = vpop.f32.mrf.mxu0
    %v3795 = vadd.f32 %v2980, %v3794
    %3796 = vdwg.mxu0
    %3797 = vmatpush.bf16.msra.mxu0 0
    %3798 = vmatpush.bf16.msra.mxu0 0
    %3799 = vmatpush.bf16.msra.mxu0 0
    %3800 = vmatpush.bf16.msra.mxu0 0
    %3801 = vmatpush.bf16.msra.mxu0 0
    %3802 = vmatpush.bf16.msra.mxu0 0
    %3803 = vmatpush.bf16.msra.mxu0 %v2944
    %3804 = vmatpush.bf16.msra.mxu0 %v2880
    %3805 = vmatmul.bf16.gmra.mxu0 %v2994
    %v3806 = vpop.f32.mrf.mxu0
    %v3807 = vadd.f32 %v2968, %v3806
    %v3808 = vpop.f32.mrf.mxu0
    %v3809 = vadd.f32 %v2972, %v3808
    %3810 = vmatmul.bf16.gmra.mxu0 %v2997
    %v3811 = vpop.f32.mrf.mxu0
    %v3812 = vadd.f32 %v2976, %v3811
    %v3813 = vpop.f32.mrf.mxu0
    %v3814 = vadd.f32 %v2980, %v3813
    %3815 = vdwg.mxu0
    %3816 = vmatpush.bf16.msra.mxu0 0
    %3817 = vmatpush.bf16.msra.mxu0 0
    %3818 = vmatpush.bf16.msra.mxu0 0
    %3819 = vmatpush.bf16.msra.mxu0 0
    %3820 = vmatpush.bf16.msra.mxu0 0
    %3821 = vmatpush.bf16.msra.mxu0 0
    %3822 = vmatpush.bf16.msra.mxu0 %v2945
    %3823 = vmatpush.bf16.msra.mxu0 %v2881
    %3824 = vmatmul.bf16.gmra.mxu0 %v2994
    %v3825 = vpop.f32.mrf.mxu0
    %v3826 = vadd.f32 %v2968, %v3825
    %v3827 = vpop.f32.mrf.mxu0
    %v3828 = vadd.f32 %v2972, %v3827
    %3829 = vmatmul.bf16.gmra.mxu0 %v2997
    %v3830 = vpop.f32.mrf.mxu0
    %v3831 = vadd.f32 %v2976, %v3830
    %v3832 = vpop.f32.mrf.mxu0
    %v3833 = vadd.f32 %v2980, %v3832
    %3834 = vdwg.mxu0
    %3835 = vmatpush.bf16.msra.mxu0 0
    %3836 = vmatpush.bf16.msra.mxu0 0
    %3837 = vmatpush.bf16.msra.mxu0 0
    %3838 = vmatpush.bf16.msra.mxu0 0
    %3839 = vmatpush.bf16.msra.mxu0 0
    %3840 = vmatpush.bf16.msra.mxu0 0
    %3841 = vmatpush.bf16.msra.mxu0 %v2946
    %3842 = vmatpush.bf16.msra.mxu0 %v2882
    %3843 = vmatmul.bf16.gmra.mxu0 %v2994
    %v3844 = vpop.f32.mrf.mxu0
    %v3845 = vadd.f32 %v2968, %v3844
    %v3846 = vpop.f32.mrf.mxu0
    %v3847 = vadd.f32 %v2972, %v3846
    %3848 = vmatmul.bf16.gmra.mxu0 %v2997
    %v3849 = vpop.f32.mrf.mxu0
    %v3850 = vadd.f32 %v2976, %v3849
    %v3851 = vpop.f32.mrf.mxu0
    %v3852 = vadd.f32 %v2980, %v3851
    %3853 = vdwg.mxu0
    %3854 = vmatpush.bf16.msra.mxu0 0
    %3855 = vmatpush.bf16.msra.mxu0 0
    %3856 = vmatpush.bf16.msra.mxu0 0
    %3857 = vmatpush.bf16.msra.mxu0 0
    %3858 = vmatpush.bf16.msra.mxu0 0
    %3859 = vmatpush.bf16.msra.mxu0 0
    %3860 = vmatpush.bf16.msra.mxu0 %v2947
    %3861 = vmatpush.bf16.msra.mxu0 %v2883
    %3862 = vmatmul.bf16.gmra.mxu0 %v2994
    %v3863 = vpop.f32.mrf.mxu0
    %v3864 = vadd.f32 %v2968, %v3863
    %v3865 = vpop.f32.mrf.mxu0
    %v3866 = vadd.f32 %v2972, %v3865
    %3867 = vmatmul.bf16.gmra.mxu0 %v2997
    %v3868 = vpop.f32.mrf.mxu0
    %v3869 = vadd.f32 %v2976, %v3868
    %v3870 = vpop.f32.mrf.mxu0
    %v3871 = vadd.f32 %v2980, %v3870
    %3872 = vdwg.mxu0
    %3873 = vmatpush.bf16.msra.mxu0 0
    %3874 = vmatpush.bf16.msra.mxu0 0
    %3875 = vmatpush.bf16.msra.mxu0 0
    %3876 = vmatpush.bf16.msra.mxu0 0
    %3877 = vmatpush.bf16.msra.mxu0 0
    %3878 = vmatpush.bf16.msra.mxu0 0
    %3879 = vmatpush.bf16.msra.mxu0 %v2948
    %3880 = vmatpush.bf16.msra.mxu0 %v2884
    %3881 = vmatmul.bf16.gmra.mxu0 %v2994
    %v3882 = vpop.f32.mrf.mxu0
    %v3883 = vadd.f32 %v2968, %v3882
    %v3884 = vpop.f32.mrf.mxu0
    %v3885 = vadd.f32 %v2972, %v3884
    %3886 = vmatmul.bf16.gmra.mxu0 %v2997
    %v3887 = vpop.f32.mrf.mxu0
    %v3888 = vadd.f32 %v2976, %v3887
    %v3889 = vpop.f32.mrf.mxu0
    %v3890 = vadd.f32 %v2980, %v3889
    %3891 = vdwg.mxu0
    %3892 = vmatpush.bf16.msra.mxu0 0
    %3893 = vmatpush.bf16.msra.mxu0 0
    %3894 = vmatpush.bf16.msra.mxu0 0
    %3895 = vmatpush.bf16.msra.mxu0 0
    %3896 = vmatpush.bf16.msra.mxu0 0
    %3897 = vmatpush.bf16.msra.mxu0 0
    %3898 = vmatpush.bf16.msra.mxu0 %v2949
    %3899 = vmatpush.bf16.msra.mxu0 %v2885
    %3900 = vmatmul.bf16.gmra.mxu0 %v2994
    %v3901 = vpop.f32.mrf.mxu0
    %v3902 = vadd.f32 %v2968, %v3901
    %v3903 = vpop.f32.mrf.mxu0
    %v3904 = vadd.f32 %v2972, %v3903
    %3905 = vmatmul.bf16.gmra.mxu0 %v2997
    %v3906 = vpop.f32.mrf.mxu0
    %v3907 = vadd.f32 %v2976, %v3906
    %v3908 = vpop.f32.mrf.mxu0
    %v3909 = vadd.f32 %v2980, %v3908
    %3910 = vdwg.mxu0
    %3911 = vmatpush.bf16.msra.mxu0 0
    %3912 = vmatpush.bf16.msra.mxu0 0
    %3913 = vmatpush.bf16.msra.mxu0 0
    %3914 = vmatpush.bf16.msra.mxu0 0
    %3915 = vmatpush.bf16.msra.mxu0 0
    %3916 = vmatpush.bf16.msra.mxu0 0
    %3917 = vmatpush.bf16.msra.mxu0 %v2950
    %3918 = vmatpush.bf16.msra.mxu0 %v2886
    %3919 = vmatmul.bf16.gmra.mxu0 %v2994
    %v3920 = vpop.f32.mrf.mxu0
    %v3921 = vadd.f32 %v2968, %v3920
    %v3922 = vpop.f32.mrf.mxu0
    %v3923 = vadd.f32 %v2972, %v3922
    %3924 = vmatmul.bf16.gmra.mxu0 %v2997
    %v3925 = vpop.f32.mrf.mxu0
    %v3926 = vadd.f32 %v2976, %v3925
    %v3927 = vpop.f32.mrf.mxu0
    %v3928 = vadd.f32 %v2980, %v3927
    %3929 = vdwg.mxu0
    %3930 = vmatpush.bf16.msra.mxu0 0
    %3931 = vmatpush.bf16.msra.mxu0 0
    %3932 = vmatpush.bf16.msra.mxu0 0
    %3933 = vmatpush.bf16.msra.mxu0 0
    %3934 = vmatpush.bf16.msra.mxu0 0
    %3935 = vmatpush.bf16.msra.mxu0 0
    %3936 = vmatpush.bf16.msra.mxu0 %v2951
    %3937 = vmatpush.bf16.msra.mxu0 %v2887
    %3938 = vmatmul.bf16.gmra.mxu0 %v2994
    %v3939 = vpop.f32.mrf.mxu0
    %v3940 = vadd.f32 %v2968, %v3939
    %v3941 = vpop.f32.mrf.mxu0
    %v3942 = vadd.f32 %v2972, %v3941
    %3943 = vmatmul.bf16.gmra.mxu0 %v2997
    %v3944 = vpop.f32.mrf.mxu0
    %v3945 = vadd.f32 %v2976, %v3944
    %v3946 = vpop.f32.mrf.mxu0
    %v3947 = vadd.f32 %v2980, %v3946
    %3948 = vdwg.mxu0
    %3949 = vmatpush.bf16.msra.mxu0 0
    %3950 = vmatpush.bf16.msra.mxu0 0
    %3951 = vmatpush.bf16.msra.mxu0 0
    %3952 = vmatpush.bf16.msra.mxu0 0
    %3953 = vmatpush.bf16.msra.mxu0 0
    %3954 = vmatpush.bf16.msra.mxu0 0
    %3955 = vmatpush.bf16.msra.mxu0 %v2952
    %3956 = vmatpush.bf16.msra.mxu0 %v2888
    %3957 = vmatmul.bf16.gmra.mxu0 %v2994
    %v3958 = vpop.f32.mrf.mxu0
    %v3959 = vadd.f32 %v2968, %v3958
    %v3960 = vpop.f32.mrf.mxu0
    %v3961 = vadd.f32 %v2972, %v3960
    %3962 = vmatmul.bf16.gmra.mxu0 %v2997
    %v3963 = vpop.f32.mrf.mxu0
    %v3964 = vadd.f32 %v2976, %v3963
    %v3965 = vpop.f32.mrf.mxu0
    %v3966 = vadd.f32 %v2980, %v3965
    %3967 = vdwg.mxu0
    %3968 = vmatpush.bf16.msra.mxu0 0
    %3969 = vmatpush.bf16.msra.mxu0 0
    %3970 = vmatpush.bf16.msra.mxu0 0
    %3971 = vmatpush.bf16.msra.mxu0 0
    %3972 = vmatpush.bf16.msra.mxu0 0
    %3973 = vmatpush.bf16.msra.mxu0 0
    %3974 = vmatpush.bf16.msra.mxu0 %v2953
    %3975 = vmatpush.bf16.msra.mxu0 %v2889
    %3976 = vmatmul.bf16.gmra.mxu0 %v2994
    %v3977 = vpop.f32.mrf.mxu0
    %v3978 = vadd.f32 %v2968, %v3977
    %v3979 = vpop.f32.mrf.mxu0
    %v3980 = vadd.f32 %v2972, %v3979
    %3981 = vmatmul.bf16.gmra.mxu0 %v2997
    %v3982 = vpop.f32.mrf.mxu0
    %v3983 = vadd.f32 %v2976, %v3982
    %v3984 = vpop.f32.mrf.mxu0
    %v3985 = vadd.f32 %v2980, %v3984
    %3986 = vdwg.mxu0
    %3987 = vmatpush.bf16.msra.mxu0 0
    %3988 = vmatpush.bf16.msra.mxu0 0
    %3989 = vmatpush.bf16.msra.mxu0 0
    %3990 = vmatpush.bf16.msra.mxu0 0
    %3991 = vmatpush.bf16.msra.mxu0 0
    %3992 = vmatpush.bf16.msra.mxu0 0
    %3993 = vmatpush.bf16.msra.mxu0 %v2954
    %3994 = vmatpush.bf16.msra.mxu0 %v2890
    %3995 = vmatmul.bf16.gmra.mxu0 %v2994
    %v3996 = vpop.f32.mrf.mxu0
    %v3997 = vadd.f32 %v2968, %v3996
    %v3998 = vpop.f32.mrf.mxu0
    %v3999 = vadd.f32 %v2972, %v3998
    %4000 = vmatmul.bf16.gmra.mxu0 %v2997
    %v4001 = vpop.f32.mrf.mxu0
    %v4002 = vadd.f32 %v2976, %v4001
    %v4003 = vpop.f32.mrf.mxu0
    %v4004 = vadd.f32 %v2980, %v4003
    %4005 = vdwg.mxu0
    %4006 = vmatpush.bf16.msra.mxu0 0
    %4007 = vmatpush.bf16.msra.mxu0 0
    %4008 = vmatpush.bf16.msra.mxu0 0
    %4009 = vmatpush.bf16.msra.mxu0 0
    %4010 = vmatpush.bf16.msra.mxu0 0
    %4011 = vmatpush.bf16.msra.mxu0 0
    %4012 = vmatpush.bf16.msra.mxu0 %v2955
    %4013 = vmatpush.bf16.msra.mxu0 %v2891
    %4014 = vmatmul.bf16.gmra.mxu0 %v2994
    %v4015 = vpop.f32.mrf.mxu0
    %v4016 = vadd.f32 %v2968, %v4015
    %v4017 = vpop.f32.mrf.mxu0
    %v4018 = vadd.f32 %v2972, %v4017
    %4019 = vmatmul.bf16.gmra.mxu0 %v2997
    %v4020 = vpop.f32.mrf.mxu0
    %v4021 = vadd.f32 %v2976, %v4020
    %v4022 = vpop.f32.mrf.mxu0
    %v4023 = vadd.f32 %v2980, %v4022
    %4024 = vdwg.mxu0
    %4025 = vmatpush.bf16.msra.mxu0 0
    %4026 = vmatpush.bf16.msra.mxu0 0
    %4027 = vmatpush.bf16.msra.mxu0 0
    %4028 = vmatpush.bf16.msra.mxu0 0
    %4029 = vmatpush.bf16.msra.mxu0 0
    %4030 = vmatpush.bf16.msra.mxu0 0
    %4031 = vmatpush.bf16.msra.mxu0 %v2956
    %4032 = vmatpush.bf16.msra.mxu0 %v2892
    %4033 = vmatmul.bf16.gmra.mxu0 %v2994
    %v4034 = vpop.f32.mrf.mxu0
    %v4035 = vadd.f32 %v2968, %v4034
    %v4036 = vpop.f32.mrf.mxu0
    %v4037 = vadd.f32 %v2972, %v4036
    %4038 = vmatmul.bf16.gmra.mxu0 %v2997
    %v4039 = vpop.f32.mrf.mxu0
    %v4040 = vadd.f32 %v2976, %v4039
    %v4041 = vpop.f32.mrf.mxu0
    %v4042 = vadd.f32 %v2980, %v4041
    %4043 = vdwg.mxu0
    %4044 = vmatpush.bf16.msra.mxu0 0
    %4045 = vmatpush.bf16.msra.mxu0 0
    %4046 = vmatpush.bf16.msra.mxu0 0
    %4047 = vmatpush.bf16.msra.mxu0 0
    %4048 = vmatpush.bf16.msra.mxu0 0
    %4049 = vmatpush.bf16.msra.mxu0 0
    %4050 = vmatpush.bf16.msra.mxu0 %v2957
    %4051 = vmatpush.bf16.msra.mxu0 %v2893
    %4052 = vmatmul.bf16.gmra.mxu0 %v2994
    %v4053 = vpop.f32.mrf.mxu0
    %v4054 = vadd.f32 %v2968, %v4053
    %v4055 = vpop.f32.mrf.mxu0
    %v4056 = vadd.f32 %v2972, %v4055
    %4057 = vmatmul.bf16.gmra.mxu0 %v2997
    %v4058 = vpop.f32.mrf.mxu0
    %v4059 = vadd.f32 %v2976, %v4058
    %v4060 = vpop.f32.mrf.mxu0
    %v4061 = vadd.f32 %v2980, %v4060
    %4062 = vdwg.mxu0
    %4063 = vmatpush.bf16.msra.mxu0 0
    %4064 = vmatpush.bf16.msra.mxu0 0
    %4065 = vmatpush.bf16.msra.mxu0 0
    %4066 = vmatpush.bf16.msra.mxu0 0
    %4067 = vmatpush.bf16.msra.mxu0 0
    %4068 = vmatpush.bf16.msra.mxu0 0
    %4069 = vmatpush.bf16.msra.mxu0 %v2958
    %4070 = vmatpush.bf16.msra.mxu0 %v2894
    %4071 = vmatmul.bf16.gmra.mxu0 %v2994
    %v4072 = vpop.f32.mrf.mxu0
    %v4073 = vadd.f32 %v2968, %v4072
    %v4074 = vpop.f32.mrf.mxu0
    %v4075 = vadd.f32 %v2972, %v4074
    %4076 = vmatmul.bf16.gmra.mxu0 %v2997
    %v4077 = vpop.f32.mrf.mxu0
    %v4078 = vadd.f32 %v2976, %v4077
    %v4079 = vpop.f32.mrf.mxu0
    %v4080 = vadd.f32 %v2980, %v4079
    %4081 = vdwg.mxu0
    %4082 = vmatpush.bf16.msra.mxu0 0
    %4083 = vmatpush.bf16.msra.mxu0 0
    %4084 = vmatpush.bf16.msra.mxu0 0
    %4085 = vmatpush.bf16.msra.mxu0 0
    %4086 = vmatpush.bf16.msra.mxu0 0
    %4087 = vmatpush.bf16.msra.mxu0 0
    %4088 = vmatpush.bf16.msra.mxu0 %v2959
    %4089 = vmatpush.bf16.msra.mxu0 %v2895
    %4090 = vmatmul.bf16.gmra.mxu0 %v2994
    %v4091 = vpop.f32.mrf.mxu0
    %v4092 = vadd.f32 %v2968, %v4091
    %v4093 = vpop.f32.mrf.mxu0
    %v4094 = vadd.f32 %v2972, %v4093
    %4095 = vmatmul.bf16.gmra.mxu0 %v2997
    %v4096 = vpop.f32.mrf.mxu0
    %v4097 = vadd.f32 %v2976, %v4096
    %v4098 = vpop.f32.mrf.mxu0
    %v4099 = vadd.f32 %v2980, %v4098
    %4100 = vdwg.mxu0
    %4101 = vmatpush.bf16.msra.mxu0 0
    %4102 = vmatpush.bf16.msra.mxu0 0
    %4103 = vmatpush.bf16.msra.mxu0 0
    %4104 = vmatpush.bf16.msra.mxu0 0
    %4105 = vmatpush.bf16.msra.mxu0 0
    %4106 = vmatpush.bf16.msra.mxu0 0
    %4107 = vmatpush.bf16.msra.mxu0 %v2960
    %4108 = vmatpush.bf16.msra.mxu0 %v2896
    %4109 = vmatmul.bf16.gmra.mxu0 %v2994
    %v4110 = vpop.f32.mrf.mxu0
    %v4111 = vadd.f32 %v2968, %v4110
    %v4112 = vpop.f32.mrf.mxu0
    %v4113 = vadd.f32 %v2972, %v4112
    %4114 = vmatmul.bf16.gmra.mxu0 %v2997
    %v4115 = vpop.f32.mrf.mxu0
    %v4116 = vadd.f32 %v2976, %v4115
    %v4117 = vpop.f32.mrf.mxu0
    %v4118 = vadd.f32 %v2980, %v4117
    %4119 = vdwg.mxu0
    %4120 = vmatpush.bf16.msra.mxu0 0
    %4121 = vmatpush.bf16.msra.mxu0 0
    %4122 = vmatpush.bf16.msra.mxu0 0
    %4123 = vmatpush.bf16.msra.mxu0 0
    %4124 = vmatpush.bf16.msra.mxu0 0
    %4125 = vmatpush.bf16.msra.mxu0 0
    %4126 = vmatpush.bf16.msra.mxu0 %v2961
    %4127 = vmatpush.bf16.msra.mxu0 %v2897
    %4128 = vmatmul.bf16.gmra.mxu0 %v2994
    %v4129 = vpop.f32.mrf.mxu0
    %v4130 = vadd.f32 %v2968, %v4129
    %v4131 = vpop.f32.mrf.mxu0
    %v4132 = vadd.f32 %v2972, %v4131
    %4133 = vmatmul.bf16.gmra.mxu0 %v2997
    %v4134 = vpop.f32.mrf.mxu0
    %v4135 = vadd.f32 %v2976, %v4134
    %v4136 = vpop.f32.mrf.mxu0
    %v4137 = vadd.f32 %v2980, %v4136
    %4138 = vdwg.mxu0
    %4139 = vmatpush.bf16.msra.mxu0 0
    %4140 = vmatpush.bf16.msra.mxu0 0
    %4141 = vmatpush.bf16.msra.mxu0 0
    %4142 = vmatpush.bf16.msra.mxu0 0
    %4143 = vmatpush.bf16.msra.mxu0 0
    %4144 = vmatpush.bf16.msra.mxu0 0
    %4145 = vmatpush.bf16.msra.mxu0 %v2962
    %4146 = vmatpush.bf16.msra.mxu0 %v2898
    %4147 = vmatmul.bf16.gmra.mxu0 %v2994
    %v4148 = vpop.f32.mrf.mxu0
    %v4149 = vadd.f32 %v2968, %v4148
    %v4150 = vpop.f32.mrf.mxu0
    %v4151 = vadd.f32 %v2972, %v4150
    %4152 = vmatmul.bf16.gmra.mxu0 %v2997
    %v4153 = vpop.f32.mrf.mxu0
    %v4154 = vadd.f32 %v2976, %v4153
    %v4155 = vpop.f32.mrf.mxu0
    %v4156 = vadd.f32 %v2980, %v4155
    %4157 = vdwg.mxu0
    %4158 = vmatpush.bf16.msra.mxu0 0
    %4159 = vmatpush.bf16.msra.mxu0 0
    %4160 = vmatpush.bf16.msra.mxu0 0
    %4161 = vmatpush.bf16.msra.mxu0 0
    %4162 = vmatpush.bf16.msra.mxu0 0
    %4163 = vmatpush.bf16.msra.mxu0 0
    %4164 = vmatpush.bf16.msra.mxu0 %v2963
    %4165 = vmatpush.bf16.msra.mxu0 %v2899
    %4166 = vmatmul.bf16.gmra.mxu0 %v2994
    %v4167 = vpop.f32.mrf.mxu0
    %v4168 = vadd.f32 %v2968, %v4167
    %v4169 = vpop.f32.mrf.mxu0
    %v4170 = vadd.f32 %v2972, %v4169
    %4171 = vmatmul.bf16.gmra.mxu0 %v2997
    %v4172 = vpop.f32.mrf.mxu0
    %v4173 = vadd.f32 %v2976, %v4172
    %v4174 = vpop.f32.mrf.mxu0
    %v4175 = vadd.f32 %v2980, %v4174
    %4176 = vdwg.mxu0
    %4177 = vmatpush.bf16.msra.mxu0 0
    %4178 = vmatpush.bf16.msra.mxu0 0
    %4179 = vmatpush.bf16.msra.mxu0 0
    %4180 = vmatpush.bf16.msra.mxu0 0
    %4181 = vmatpush.bf16.msra.mxu0 0
    %4182 = vmatpush.bf16.msra.mxu0 0
    %4183 = vmatpush.bf16.msra.mxu0 %v2964
    %4184 = vmatpush.bf16.msra.mxu0 %v2900
    %4185 = vmatmul.bf16.gmra.mxu0 %v2994
    %v4186 = vpop.f32.mrf.mxu0
    %v4187 = vadd.f32 %v2968, %v4186
    %v4188 = vpop.f32.mrf.mxu0
    %v4189 = vadd.f32 %v2972, %v4188
    %4190 = vmatmul.bf16.gmra.mxu0 %v2997
    %v4191 = vpop.f32.mrf.mxu0
    %v4192 = vadd.f32 %v2976, %v4191
    %v4193 = vpop.f32.mrf.mxu0
    %v4194 = vadd.f32 %v2980, %v4193
    %4195 = vdwg.mxu0
    %4196 = vmatpush.bf16.msra.mxu0 0
    %4197 = vmatpush.bf16.msra.mxu0 0
    %4198 = vmatpush.bf16.msra.mxu0 0
    %4199 = vmatpush.bf16.msra.mxu0 0
    %4200 = vmatpush.bf16.msra.mxu0 0
    %4201 = vmatpush.bf16.msra.mxu0 0
    %4202 = vmatpush.bf16.msra.mxu0 %v2965
    %4203 = vmatpush.bf16.msra.mxu0 %v2901
    %4204 = vmatmul.bf16.gmra.mxu0 %v2994
    %v4205 = vpop.f32.mrf.mxu0
    %v4206 = vadd.f32 %v2968, %v4205
    %v4207 = vpop.f32.mrf.mxu0
    %v4208 = vadd.f32 %v2972, %v4207
    %4209 = vmatmul.bf16.gmra.mxu0 %v2997
    %v4210 = vpop.f32.mrf.mxu0
    %v4211 = vadd.f32 %v2976, %v4210
    %v4212 = vpop.f32.mrf.mxu0
    %v4213 = vadd.f32 %v2980, %v4212
    %4214 = vdwg.mxu0
    %v4215 = vmul.f32 %v3009, 0.5
    %v4216 = vmul.f32 %v3028, 0.5
    %v4217 = vmul.f32 %v3047, 0.5
    %v4218 = vmul.f32 %v3066, 0.5
    %v4219 = vmul.f32 %v3085, 0.5
    %v4220 = vmul.f32 %v3104, 0.5
    %v4221 = vmul.f32 %v3123, 0.5
    %v4222 = vmul.f32 %v3142, 0.5
    %v4223 = vmul.f32 %v3161, 0.5
    %v4224 = vmul.f32 %v3180, 0.5
    %v4225 = vmul.f32 %v3199, 0.5
    %v4226 = vmul.f32 %v3218, 0.5
    %v4227 = vmul.f32 %v3237, 0.5
    %v4228 = vmul.f32 %v3256, 0.5
    %v4229 = vmul.f32 %v3275, 0.5
    %v4230 = vmul.f32 %v3294, 0.5
    %v4231 = vmul.f32 %v3313, 0.5
    %v4232 = vmul.f32 %v3332, 0.5
    %v4233 = vmul.f32 %v3351, 0.5
    %v4234 = vmul.f32 %v3370, 0.5
    %v4235 = vmul.f32 %v3389, 0.5
    %v4236 = vmul.f32 %v3408, 0.5
    %v4237 = vmul.f32 %v3427, 0.5
    %v4238 = vmul.f32 %v3446, 0.5
    %v4239 = vmul.f32 %v3465, 0.5
    %v4240 = vmul.f32 %v3484, 0.5
    %v4241 = vmul.f32 %v3503, 0.5
    %v4242 = vmul.f32 %v3522, 0.5
    %v4243 = vmul.f32 %v3541, 0.5
    %v4244 = vmul.f32 %v3560, 0.5
    %v4245 = vmul.f32 %v3579, 0.5
    %v4246 = vmul.f32 %v3598, 0.5
    %v4247 = vmul.f32 %v3617, 0.5
    %v4248 = vmul.f32 %v3636, 0.5
    %v4249 = vmul.f32 %v3655, 0.5
    %v4250 = vmul.f32 %v3674, 0.5
    %v4251 = vmul.f32 %v3693, 0.5
    %v4252 = vmul.f32 %v3712, 0.5
    %v4253 = vmul.f32 %v3731, 0.5
    %v4254 = vmul.f32 %v3750, 0.5
    %v4255 = vmul.f32 %v3769, 0.5
    %v4256 = vmul.f32 %v3788, 0.5
    %v4257 = vmul.f32 %v3807, 0.5
    %v4258 = vmul.f32 %v3826, 0.5
    %v4259 = vmul.f32 %v3845, 0.5
    %v4260 = vmul.f32 %v3864, 0.5
    %v4261 = vmul.f32 %v3883, 0.5
    %v4262 = vmul.f32 %v3902, 0.5
    %v4263 = vmul.f32 %v3921, 0.5
    %v4264 = vmul.f32 %v3940, 0.5
    %v4265 = vmul.f32 %v3959, 0.5
    %v4266 = vmul.f32 %v3978, 0.5
    %v4267 = vmul.f32 %v3997, 0.5
    %v4268 = vmul.f32 %v4016, 0.5
    %v4269 = vmul.f32 %v4035, 0.5
    %v4270 = vmul.f32 %v4054, 0.5
    %v4271 = vmul.f32 %v4073, 0.5
    %v4272 = vmul.f32 %v4092, 0.5
    %v4273 = vmul.f32 %v4111, 0.5
    %v4274 = vmul.f32 %v4130, 0.5
    %v4275 = vmul.f32 %v4149, 0.5
    %v4276 = vmul.f32 %v4168, 0.5
    %v4277 = vmul.f32 %v4187, 0.5
    %v4278 = vmul.f32 %v4206, 0.5
    %v4279 = vmul.f32 %v3011, 0.5
    %v4280 = vmul.f32 %v3030, 0.5
    %v4281 = vmul.f32 %v3049, 0.5
    %v4282 = vmul.f32 %v3068, 0.5
    %v4283 = vmul.f32 %v3087, 0.5
    %v4284 = vmul.f32 %v3106, 0.5
    %v4285 = vmul.f32 %v3125, 0.5
    %v4286 = vmul.f32 %v3144, 0.5
    %v4287 = vmul.f32 %v3163, 0.5
    %v4288 = vmul.f32 %v3182, 0.5
    %v4289 = vmul.f32 %v3201, 0.5
    %v4290 = vmul.f32 %v3220, 0.5
    %v4291 = vmul.f32 %v3239, 0.5
    %v4292 = vmul.f32 %v3258, 0.5
    %v4293 = vmul.f32 %v3277, 0.5
    %v4294 = vmul.f32 %v3296, 0.5
    %v4295 = vmul.f32 %v3315, 0.5
    %v4296 = vmul.f32 %v3334, 0.5
    %v4297 = vmul.f32 %v3353, 0.5
    %v4298 = vmul.f32 %v3372, 0.5
    %v4299 = vmul.f32 %v3391, 0.5
    %v4300 = vmul.f32 %v3410, 0.5
    %v4301 = vmul.f32 %v3429, 0.5
    %v4302 = vmul.f32 %v3448, 0.5
    %v4303 = vmul.f32 %v3467, 0.5
    %v4304 = vmul.f32 %v3486, 0.5
    %v4305 = vmul.f32 %v3505, 0.5
    %v4306 = vmul.f32 %v3524, 0.5
    %v4307 = vmul.f32 %v3543, 0.5
    %v4308 = vmul.f32 %v3562, 0.5
    %v4309 = vmul.f32 %v3581, 0.5
    %v4310 = vmul.f32 %v3600, 0.5
    %v4311 = vmul.f32 %v3619, 0.5
    %v4312 = vmul.f32 %v3638, 0.5
    %v4313 = vmul.f32 %v3657, 0.5
    %v4314 = vmul.f32 %v3676, 0.5
    %v4315 = vmul.f32 %v3695, 0.5
    %v4316 = vmul.f32 %v3714, 0.5
    %v4317 = vmul.f32 %v3733, 0.5
    %v4318 = vmul.f32 %v3752, 0.5
    %v4319 = vmul.f32 %v3771, 0.5
    %v4320 = vmul.f32 %v3790, 0.5
    %v4321 = vmul.f32 %v3809, 0.5
    %v4322 = vmul.f32 %v3828, 0.5
    %v4323 = vmul.f32 %v3847, 0.5
    %v4324 = vmul.f32 %v3866, 0.5
    %v4325 = vmul.f32 %v3885, 0.5
    %v4326 = vmul.f32 %v3904, 0.5
    %v4327 = vmul.f32 %v3923, 0.5
    %v4328 = vmul.f32 %v3942, 0.5
    %v4329 = vmul.f32 %v3961, 0.5
    %v4330 = vmul.f32 %v3980, 0.5
    %v4331 = vmul.f32 %v3999, 0.5
    %v4332 = vmul.f32 %v4018, 0.5
    %v4333 = vmul.f32 %v4037, 0.5
    %v4334 = vmul.f32 %v4056, 0.5
    %v4335 = vmul.f32 %v4075, 0.5
    %v4336 = vmul.f32 %v4094, 0.5
    %v4337 = vmul.f32 %v4113, 0.5
    %v4338 = vmul.f32 %v4132, 0.5
    %v4339 = vmul.f32 %v4151, 0.5
    %v4340 = vmul.f32 %v4170, 0.5
    %v4341 = vmul.f32 %v4189, 0.5
    %v4342 = vmul.f32 %v4208, 0.5
    %v4343 = vmul.f32 %v3014, 0.5
    %v4344 = vmul.f32 %v3033, 0.5
    %v4345 = vmul.f32 %v3052, 0.5
    %v4346 = vmul.f32 %v3071, 0.5
    %v4347 = vmul.f32 %v3090, 0.5
    %v4348 = vmul.f32 %v3109, 0.5
    %v4349 = vmul.f32 %v3128, 0.5
    %v4350 = vmul.f32 %v3147, 0.5
    %v4351 = vmul.f32 %v3166, 0.5
    %v4352 = vmul.f32 %v3185, 0.5
    %v4353 = vmul.f32 %v3204, 0.5
    %v4354 = vmul.f32 %v3223, 0.5
    %v4355 = vmul.f32 %v3242, 0.5
    %v4356 = vmul.f32 %v3261, 0.5
    %v4357 = vmul.f32 %v3280, 0.5
    %v4358 = vmul.f32 %v3299, 0.5
    %v4359 = vmul.f32 %v3318, 0.5
    %v4360 = vmul.f32 %v3337, 0.5
    %v4361 = vmul.f32 %v3356, 0.5
    %v4362 = vmul.f32 %v3375, 0.5
    %v4363 = vmul.f32 %v3394, 0.5
    %v4364 = vmul.f32 %v3413, 0.5
    %v4365 = vmul.f32 %v3432, 0.5
    %v4366 = vmul.f32 %v3451, 0.5
    %v4367 = vmul.f32 %v3470, 0.5
    %v4368 = vmul.f32 %v3489, 0.5
    %v4369 = vmul.f32 %v3508, 0.5
    %v4370 = vmul.f32 %v3527, 0.5
    %v4371 = vmul.f32 %v3546, 0.5
    %v4372 = vmul.f32 %v3565, 0.5
    %v4373 = vmul.f32 %v3584, 0.5
    %v4374 = vmul.f32 %v3603, 0.5
    %v4375 = vmul.f32 %v3622, 0.5
    %v4376 = vmul.f32 %v3641, 0.5
    %v4377 = vmul.f32 %v3660, 0.5
    %v4378 = vmul.f32 %v3679, 0.5
    %v4379 = vmul.f32 %v3698, 0.5
    %v4380 = vmul.f32 %v3717, 0.5
    %v4381 = vmul.f32 %v3736, 0.5
    %v4382 = vmul.f32 %v3755, 0.5
    %v4383 = vmul.f32 %v3774, 0.5
    %v4384 = vmul.f32 %v3793, 0.5
    %v4385 = vmul.f32 %v3812, 0.5
    %v4386 = vmul.f32 %v3831, 0.5
    %v4387 = vmul.f32 %v3850, 0.5
    %v4388 = vmul.f32 %v3869, 0.5
    %v4389 = vmul.f32 %v3888, 0.5
    %v4390 = vmul.f32 %v3907, 0.5
    %v4391 = vmul.f32 %v3926, 0.5
    %v4392 = vmul.f32 %v3945, 0.5
    %v4393 = vmul.f32 %v3964, 0.5
    %v4394 = vmul.f32 %v3983, 0.5
    %v4395 = vmul.f32 %v4002, 0.5
    %v4396 = vmul.f32 %v4021, 0.5
    %v4397 = vmul.f32 %v4040, 0.5
    %v4398 = vmul.f32 %v4059, 0.5
    %v4399 = vmul.f32 %v4078, 0.5
    %v4400 = vmul.f32 %v4097, 0.5
    %v4401 = vmul.f32 %v4116, 0.5
    %v4402 = vmul.f32 %v4135, 0.5
    %v4403 = vmul.f32 %v4154, 0.5
    %v4404 = vmul.f32 %v4173, 0.5
    %v4405 = vmul.f32 %v4192, 0.5
    %v4406 = vmul.f32 %v4211, 0.5
    %v4407 = vmul.f32 %v3016, 0.5
    %v4408 = vmul.f32 %v3035, 0.5
    %v4409 = vmul.f32 %v3054, 0.5
    %v4410 = vmul.f32 %v3073, 0.5
    %v4411 = vmul.f32 %v3092, 0.5
    %v4412 = vmul.f32 %v3111, 0.5
    %v4413 = vmul.f32 %v3130, 0.5
    %v4414 = vmul.f32 %v3149, 0.5
    %v4415 = vmul.f32 %v3168, 0.5
    %v4416 = vmul.f32 %v3187, 0.5
    %v4417 = vmul.f32 %v3206, 0.5
    %v4418 = vmul.f32 %v3225, 0.5
    %v4419 = vmul.f32 %v3244, 0.5
    %v4420 = vmul.f32 %v3263, 0.5
    %v4421 = vmul.f32 %v3282, 0.5
    %v4422 = vmul.f32 %v3301, 0.5
    %v4423 = vmul.f32 %v3320, 0.5
    %v4424 = vmul.f32 %v3339, 0.5
    %v4425 = vmul.f32 %v3358, 0.5
    %v4426 = vmul.f32 %v3377, 0.5
    %v4427 = vmul.f32 %v3396, 0.5
    %v4428 = vmul.f32 %v3415, 0.5
    %v4429 = vmul.f32 %v3434, 0.5
    %v4430 = vmul.f32 %v3453, 0.5
    %v4431 = vmul.f32 %v3472, 0.5
    %v4432 = vmul.f32 %v3491, 0.5
    %v4433 = vmul.f32 %v3510, 0.5
    %v4434 = vmul.f32 %v3529, 0.5
    %v4435 = vmul.f32 %v3548, 0.5
    %v4436 = vmul.f32 %v3567, 0.5
    %v4437 = vmul.f32 %v3586, 0.5
    %v4438 = vmul.f32 %v3605, 0.5
    %v4439 = vmul.f32 %v3624, 0.5
    %v4440 = vmul.f32 %v3643, 0.5
    %v4441 = vmul.f32 %v3662, 0.5
    %v4442 = vmul.f32 %v3681, 0.5
    %v4443 = vmul.f32 %v3700, 0.5
    %v4444 = vmul.f32 %v3719, 0.5
    %v4445 = vmul.f32 %v3738, 0.5
    %v4446 = vmul.f32 %v3757, 0.5
    %v4447 = vmul.f32 %v3776, 0.5
    %v4448 = vmul.f32 %v3795, 0.5
    %v4449 = vmul.f32 %v3814, 0.5
    %v4450 = vmul.f32 %v3833, 0.5
    %v4451 = vmul.f32 %v3852, 0.5
    %v4452 = vmul.f32 %v3871, 0.5
    %v4453 = vmul.f32 %v3890, 0.5
    %v4454 = vmul.f32 %v3909, 0.5
    %v4455 = vmul.f32 %v3928, 0.5
    %v4456 = vmul.f32 %v3947, 0.5
    %v4457 = vmul.f32 %v3966, 0.5
    %v4458 = vmul.f32 %v3985, 0.5
    %v4459 = vmul.f32 %v4004, 0.5
    %v4460 = vmul.f32 %v4023, 0.5
    %v4461 = vmul.f32 %v4042, 0.5
    %v4462 = vmul.f32 %v4061, 0.5
    %v4463 = vmul.f32 %v4080, 0.5
    %v4464 = vmul.f32 %v4099, 0.5
    %v4465 = vmul.f32 %v4118, 0.5
    %v4466 = vmul.f32 %v4137, 0.5
    %v4467 = vmul.f32 %v4156, 0.5
    %v4468 = vmul.f32 %v4175, 0.5
    %v4469 = vmul.f32 %v4194, 0.5
    %v4470 = vmul.f32 %v4213, 0.5
    %4471 = vset.pattern.permute.xlu0 5
    %4472 = vperm.xlu0 %4471, %v1786
    %v4473 = vpop.permute.xlu0 %4472
    %4475 = vset.pattern.permute.xlu0 5
    %4476 = vperm.xlu0 %4475, %v1787
    %v4477 = vpop.permute.xlu0 %4476
    %4479 = vset.pattern.permute.xlu0 5
    %4480 = vperm.xlu0 %4479, %v1788
    %v4481 = vpop.permute.xlu0 %4480
    %4483 = vset.pattern.permute.xlu0 5
    %4484 = vperm.xlu0 %4483, %v1789
    %v4485 = vpop.permute.xlu0 %4484
    %v4487 = vmul.f32 %v4473, %v3009
    %v4488 = vmul.f32 %v4473, %v3028
    %v4489 = vmul.f32 %v4473, %v3047
    %v4490 = vmul.f32 %v4473, %v3066
    %v4491 = vmul.f32 %v4473, %v3085
    %v4492 = vmul.f32 %v4473, %v3104
    %v4493 = vmul.f32 %v4473, %v3123
    %v4494 = vmul.f32 %v4473, %v3142
    %v4495 = vmul.f32 %v4473, %v3161
    %v4496 = vmul.f32 %v4473, %v3180
    %v4497 = vmul.f32 %v4473, %v3199
    %v4498 = vmul.f32 %v4473, %v3218
    %v4499 = vmul.f32 %v4473, %v3237
    %v4500 = vmul.f32 %v4473, %v3256
    %v4501 = vmul.f32 %v4473, %v3275
    %v4502 = vmul.f32 %v4473, %v3294
    %v4503 = vmul.f32 %v4473, %v3313
    %v4504 = vmul.f32 %v4473, %v3332
    %v4505 = vmul.f32 %v4473, %v3351
    %v4506 = vmul.f32 %v4473, %v3370
    %v4507 = vmul.f32 %v4473, %v3389
    %v4508 = vmul.f32 %v4473, %v3408
    %v4509 = vmul.f32 %v4473, %v3427
    %v4510 = vmul.f32 %v4473, %v3446
    %v4511 = vmul.f32 %v4473, %v3465
    %v4512 = vmul.f32 %v4473, %v3484
    %v4513 = vmul.f32 %v4473, %v3503
    %v4514 = vmul.f32 %v4473, %v3522
    %v4515 = vmul.f32 %v4473, %v3541
    %v4516 = vmul.f32 %v4473, %v3560
    %v4517 = vmul.f32 %v4473, %v3579
    %v4518 = vmul.f32 %v4473, %v3598
    %v4519 = vmul.f32 %v4473, %v3617
    %v4520 = vmul.f32 %v4473, %v3636
    %v4521 = vmul.f32 %v4473, %v3655
    %v4522 = vmul.f32 %v4473, %v3674
    %v4523 = vmul.f32 %v4473, %v3693
    %v4524 = vmul.f32 %v4473, %v3712
    %v4525 = vmul.f32 %v4473, %v3731
    %v4526 = vmul.f32 %v4473, %v3750
    %v4527 = vmul.f32 %v4473, %v3769
    %v4528 = vmul.f32 %v4473, %v3788
    %v4529 = vmul.f32 %v4473, %v3807
    %v4530 = vmul.f32 %v4473, %v3826
    %v4531 = vmul.f32 %v4473, %v3845
    %v4532 = vmul.f32 %v4473, %v3864
    %v4533 = vmul.f32 %v4473, %v3883
    %v4534 = vmul.f32 %v4473, %v3902
    %v4535 = vmul.f32 %v4473, %v3921
    %v4536 = vmul.f32 %v4473, %v3940
    %v4537 = vmul.f32 %v4473, %v3959
    %v4538 = vmul.f32 %v4473, %v3978
    %v4539 = vmul.f32 %v4473, %v3997
    %v4540 = vmul.f32 %v4473, %v4016
    %v4541 = vmul.f32 %v4473, %v4035
    %v4542 = vmul.f32 %v4473, %v4054
    %v4543 = vmul.f32 %v4473, %v4073
    %v4544 = vmul.f32 %v4473, %v4092
    %v4545 = vmul.f32 %v4473, %v4111
    %v4546 = vmul.f32 %v4473, %v4130
    %v4547 = vmul.f32 %v4473, %v4149
    %v4548 = vmul.f32 %v4473, %v4168
    %v4549 = vmul.f32 %v4473, %v4187
    %v4550 = vmul.f32 %v4473, %v4206
    %v4551 = vmul.f32 %v4477, %v3011
    %v4552 = vmul.f32 %v4477, %v3030
    %v4553 = vmul.f32 %v4477, %v3049
    %v4554 = vmul.f32 %v4477, %v3068
    %v4555 = vmul.f32 %v4477, %v3087
    %v4556 = vmul.f32 %v4477, %v3106
    %v4557 = vmul.f32 %v4477, %v3125
    %v4558 = vmul.f32 %v4477, %v3144
    %v4559 = vmul.f32 %v4477, %v3163
    %v4560 = vmul.f32 %v4477, %v3182
    %v4561 = vmul.f32 %v4477, %v3201
    %v4562 = vmul.f32 %v4477, %v3220
    %v4563 = vmul.f32 %v4477, %v3239
    %v4564 = vmul.f32 %v4477, %v3258
    %v4565 = vmul.f32 %v4477, %v3277
    %v4566 = vmul.f32 %v4477, %v3296
    %v4567 = vmul.f32 %v4477, %v3315
    %v4568 = vmul.f32 %v4477, %v3334
    %v4569 = vmul.f32 %v4477, %v3353
    %v4570 = vmul.f32 %v4477, %v3372
    %v4571 = vmul.f32 %v4477, %v3391
    %v4572 = vmul.f32 %v4477, %v3410
    %v4573 = vmul.f32 %v4477, %v3429
    %v4574 = vmul.f32 %v4477, %v3448
    %v4575 = vmul.f32 %v4477, %v3467
    %v4576 = vmul.f32 %v4477, %v3486
    %v4577 = vmul.f32 %v4477, %v3505
    %v4578 = vmul.f32 %v4477, %v3524
    %v4579 = vmul.f32 %v4477, %v3543
    %v4580 = vmul.f32 %v4477, %v3562
    %v4581 = vmul.f32 %v4477, %v3581
    %v4582 = vmul.f32 %v4477, %v3600
    %v4583 = vmul.f32 %v4477, %v3619
    %v4584 = vmul.f32 %v4477, %v3638
    %v4585 = vmul.f32 %v4477, %v3657
    %v4586 = vmul.f32 %v4477, %v3676
    %v4587 = vmul.f32 %v4477, %v3695
    %v4588 = vmul.f32 %v4477, %v3714
    %v4589 = vmul.f32 %v4477, %v3733
    %v4590 = vmul.f32 %v4477, %v3752
    %v4591 = vmul.f32 %v4477, %v3771
    %v4592 = vmul.f32 %v4477, %v3790
    %v4593 = vmul.f32 %v4477, %v3809
    %v4594 = vmul.f32 %v4477, %v3828
    %v4595 = vmul.f32 %v4477, %v3847
    %v4596 = vmul.f32 %v4477, %v3866
    %v4597 = vmul.f32 %v4477, %v3885
    %v4598 = vmul.f32 %v4477, %v3904
    %v4599 = vmul.f32 %v4477, %v3923
    %v4600 = vmul.f32 %v4477, %v3942
    %v4601 = vmul.f32 %v4477, %v3961
    %v4602 = vmul.f32 %v4477, %v3980
    %v4603 = vmul.f32 %v4477, %v3999
    %v4604 = vmul.f32 %v4477, %v4018
    %v4605 = vmul.f32 %v4477, %v4037
    %v4606 = vmul.f32 %v4477, %v4056
    %v4607 = vmul.f32 %v4477, %v4075
    %v4608 = vmul.f32 %v4477, %v4094
    %v4609 = vmul.f32 %v4477, %v4113
    %v4610 = vmul.f32 %v4477, %v4132
    %v4611 = vmul.f32 %v4477, %v4151
    %v4612 = vmul.f32 %v4477, %v4170
    %v4613 = vmul.f32 %v4477, %v4189
    %v4614 = vmul.f32 %v4477, %v4208
    %v4615 = vmul.f32 %v4481, %v3014
    %v4616 = vmul.f32 %v4481, %v3033
    %v4617 = vmul.f32 %v4481, %v3052
    %v4618 = vmul.f32 %v4481, %v3071
    %v4619 = vmul.f32 %v4481, %v3090
    %v4620 = vmul.f32 %v4481, %v3109
    %v4621 = vmul.f32 %v4481, %v3128
    %v4622 = vmul.f32 %v4481, %v3147
    %v4623 = vmul.f32 %v4481, %v3166
    %v4624 = vmul.f32 %v4481, %v3185
    %v4625 = vmul.f32 %v4481, %v3204
    %v4626 = vmul.f32 %v4481, %v3223
    %v4627 = vmul.f32 %v4481, %v3242
    %v4628 = vmul.f32 %v4481, %v3261
    %v4629 = vmul.f32 %v4481, %v3280
    %v4630 = vmul.f32 %v4481, %v3299
    %v4631 = vmul.f32 %v4481, %v3318
    %v4632 = vmul.f32 %v4481, %v3337
    %v4633 = vmul.f32 %v4481, %v3356
    %v4634 = vmul.f32 %v4481, %v3375
    %v4635 = vmul.f32 %v4481, %v3394
    %v4636 = vmul.f32 %v4481, %v3413
    %v4637 = vmul.f32 %v4481, %v3432
    %v4638 = vmul.f32 %v4481, %v3451
    %v4639 = vmul.f32 %v4481, %v3470
    %v4640 = vmul.f32 %v4481, %v3489
    %v4641 = vmul.f32 %v4481, %v3508
    %v4642 = vmul.f32 %v4481, %v3527
    %v4643 = vmul.f32 %v4481, %v3546
    %v4644 = vmul.f32 %v4481, %v3565
    %v4645 = vmul.f32 %v4481, %v3584
    %v4646 = vmul.f32 %v4481, %v3603
    %v4647 = vmul.f32 %v4481, %v3622
    %v4648 = vmul.f32 %v4481, %v3641
    %v4649 = vmul.f32 %v4481, %v3660
    %v4650 = vmul.f32 %v4481, %v3679
    %v4651 = vmul.f32 %v4481, %v3698
    %v4652 = vmul.f32 %v4481, %v3717
    %v4653 = vmul.f32 %v4481, %v3736
    %v4654 = vmul.f32 %v4481, %v3755
    %v4655 = vmul.f32 %v4481, %v3774
    %v4656 = vmul.f32 %v4481, %v3793
    %v4657 = vmul.f32 %v4481, %v3812
    %v4658 = vmul.f32 %v4481, %v3831
    %v4659 = vmul.f32 %v4481, %v3850
    %v4660 = vmul.f32 %v4481, %v3869
    %v4661 = vmul.f32 %v4481, %v3888
    %v4662 = vmul.f32 %v4481, %v3907
    %v4663 = vmul.f32 %v4481, %v3926
    %v4664 = vmul.f32 %v4481, %v3945
    %v4665 = vmul.f32 %v4481, %v3964
    %v4666 = vmul.f32 %v4481, %v3983
    %v4667 = vmul.f32 %v4481, %v4002
    %v4668 = vmul.f32 %v4481, %v4021
    %v4669 = vmul.f32 %v4481, %v4040
    %v4670 = vmul.f32 %v4481, %v4059
    %v4671 = vmul.f32 %v4481, %v4078
    %v4672 = vmul.f32 %v4481, %v4097
    %v4673 = vmul.f32 %v4481, %v4116
    %v4674 = vmul.f32 %v4481, %v4135
    %v4675 = vmul.f32 %v4481, %v4154
    %v4676 = vmul.f32 %v4481, %v4173
    %v4677 = vmul.f32 %v4481, %v4192
    %v4678 = vmul.f32 %v4481, %v4211
    %v4679 = vmul.f32 %v4485, %v3016
    %v4680 = vmul.f32 %v4485, %v3035
    %v4681 = vmul.f32 %v4485, %v3054
    %v4682 = vmul.f32 %v4485, %v3073
    %v4683 = vmul.f32 %v4485, %v3092
    %v4684 = vmul.f32 %v4485, %v3111
    %v4685 = vmul.f32 %v4485, %v3130
    %v4686 = vmul.f32 %v4485, %v3149
    %v4687 = vmul.f32 %v4485, %v3168
    %v4688 = vmul.f32 %v4485, %v3187
    %v4689 = vmul.f32 %v4485, %v3206
    %v4690 = vmul.f32 %v4485, %v3225
    %v4691 = vmul.f32 %v4485, %v3244
    %v4692 = vmul.f32 %v4485, %v3263
    %v4693 = vmul.f32 %v4485, %v3282
    %v4694 = vmul.f32 %v4485, %v3301
    %v4695 = vmul.f32 %v4485, %v3320
    %v4696 = vmul.f32 %v4485, %v3339
    %v4697 = vmul.f32 %v4485, %v3358
    %v4698 = vmul.f32 %v4485, %v3377
    %v4699 = vmul.f32 %v4485, %v3396
    %v4700 = vmul.f32 %v4485, %v3415
    %v4701 = vmul.f32 %v4485, %v3434
    %v4702 = vmul.f32 %v4485, %v3453
    %v4703 = vmul.f32 %v4485, %v3472
    %v4704 = vmul.f32 %v4485, %v3491
    %v4705 = vmul.f32 %v4485, %v3510
    %v4706 = vmul.f32 %v4485, %v3529
    %v4707 = vmul.f32 %v4485, %v3548
    %v4708 = vmul.f32 %v4485, %v3567
    %v4709 = vmul.f32 %v4485, %v3586
    %v4710 = vmul.f32 %v4485, %v3605
    %v4711 = vmul.f32 %v4485, %v3624
    %v4712 = vmul.f32 %v4485, %v3643
    %v4713 = vmul.f32 %v4485, %v3662
    %v4714 = vmul.f32 %v4485, %v3681
    %v4715 = vmul.f32 %v4485, %v3700
    %v4716 = vmul.f32 %v4485, %v3719
    %v4717 = vmul.f32 %v4485, %v3738
    %v4718 = vmul.f32 %v4485, %v3757
    %v4719 = vmul.f32 %v4485, %v3776
    %v4720 = vmul.f32 %v4485, %v3795
    %v4721 = vmul.f32 %v4485, %v3814
    %v4722 = vmul.f32 %v4485, %v3833
    %v4723 = vmul.f32 %v4485, %v3852
    %v4724 = vmul.f32 %v4485, %v3871
    %v4725 = vmul.f32 %v4485, %v3890
    %v4726 = vmul.f32 %v4485, %v3909
    %v4727 = vmul.f32 %v4485, %v3928
    %v4728 = vmul.f32 %v4485, %v3947
    %v4729 = vmul.f32 %v4485, %v3966
    %v4730 = vmul.f32 %v4485, %v3985
    %v4731 = vmul.f32 %v4485, %v4004
    %v4732 = vmul.f32 %v4485, %v4023
    %v4733 = vmul.f32 %v4485, %v4042
    %v4734 = vmul.f32 %v4485, %v4061
    %v4735 = vmul.f32 %v4485, %v4080
    %v4736 = vmul.f32 %v4485, %v4099
    %v4737 = vmul.f32 %v4485, %v4118
    %v4738 = vmul.f32 %v4485, %v4137
    %v4739 = vmul.f32 %v4485, %v4156
    %v4740 = vmul.f32 %v4485, %v4175
    %v4741 = vmul.f32 %v4485, %v4194
    %v4742 = vmul.f32 %v4485, %v4213
    %v4743 = vtanh.pop %v4487
    %v4744 = vtanh.pop %v4488
    %v4745 = vtanh.pop %v4489
    %v4746 = vtanh.pop %v4490
    %v4747 = vtanh.pop %v4491
    %v4748 = vtanh.pop %v4492
    %v4749 = vtanh.pop %v4493
    %v4750 = vtanh.pop %v4494
    %v4751 = vtanh.pop %v4495
    %v4752 = vtanh.pop %v4496
    %v4753 = vtanh.pop %v4497
    %v4754 = vtanh.pop %v4498
    %v4755 = vtanh.pop %v4499
    %v4756 = vtanh.pop %v4500
    %v4757 = vtanh.pop %v4501
    %v4758 = vtanh.pop %v4502
    %v4759 = vtanh.pop %v4503
    %v4760 = vtanh.pop %v4504
    %v4761 = vtanh.pop %v4505
    %v4762 = vtanh.pop %v4506
    %v4763 = vtanh.pop %v4507
    %v4764 = vtanh.pop %v4508
    %v4765 = vtanh.pop %v4509
    %v4766 = vtanh.pop %v4510
    %v4767 = vtanh.pop %v4511
    %v4768 = vtanh.pop %v4512
    %v4769 = vtanh.pop %v4513
    %v4770 = vtanh.pop %v4514
    %v4771 = vtanh.pop %v4515
    %v4772 = vtanh.pop %v4516
    %v4773 = vtanh.pop %v4517
    %v4774 = vtanh.pop %v4518
    %v4775 = vtanh.pop %v4519
    %v4776 = vtanh.pop %v4520
    %v4777 = vtanh.pop %v4521
    %v4778 = vtanh.pop %v4522
    %v4779 = vtanh.pop %v4523
    %v4780 = vtanh.pop %v4524
    %v4781 = vtanh.pop %v4525
    %v4782 = vtanh.pop %v4526
    %v4783 = vtanh.pop %v4527
    %v4784 = vtanh.pop %v4528
    %v4785 = vtanh.pop %v4529
    %v4786 = vtanh.pop %v4530
    %v4787 = vtanh.pop %v4531
    %v4788 = vtanh.pop %v4532
    %v4789 = vtanh.pop %v4533
    %v4790 = vtanh.pop %v4534
    %v4791 = vtanh.pop %v4535
    %v4792 = vtanh.pop %v4536
    %v4793 = vtanh.pop %v4537
    %v4794 = vtanh.pop %v4538
    %v4795 = vtanh.pop %v4539
    %v4796 = vtanh.pop %v4540
    %v4797 = vtanh.pop %v4541
    %v4798 = vtanh.pop %v4542
    %v4799 = vtanh.pop %v4543
    %v4800 = vtanh.pop %v4544
    %v4801 = vtanh.pop %v4545
    %v4802 = vtanh.pop %v4546
    %v4803 = vtanh.pop %v4547
    %v4804 = vtanh.pop %v4548
    %v4805 = vtanh.pop %v4549
    %v4806 = vtanh.pop %v4550
    %v4807 = vtanh.pop %v4551
    %v4808 = vtanh.pop %v4552
    %v4809 = vtanh.pop %v4553
    %v4810 = vtanh.pop %v4554
    %v4811 = vtanh.pop %v4555
    %v4812 = vtanh.pop %v4556
    %v4813 = vtanh.pop %v4557
    %v4814 = vtanh.pop %v4558
    %v4815 = vtanh.pop %v4559
    %v4816 = vtanh.pop %v4560
    %v4817 = vtanh.pop %v4561
    %v4818 = vtanh.pop %v4562
    %v4819 = vtanh.pop %v4563
    %v4820 = vtanh.pop %v4564
    %v4821 = vtanh.pop %v4565
    %v4822 = vtanh.pop %v4566
    %v4823 = vtanh.pop %v4567
    %v4824 = vtanh.pop %v4568
    %v4825 = vtanh.pop %v4569
    %v4826 = vtanh.pop %v4570
    %v4827 = vtanh.pop %v4571
    %v4828 = vtanh.pop %v4572
    %v4829 = vtanh.pop %v4573
    %v4830 = vtanh.pop %v4574
    %v4831 = vtanh.pop %v4575
    %v4832 = vtanh.pop %v4576
    %v4833 = vtanh.pop %v4577
    %v4834 = vtanh.pop %v4578
    %v4835 = vtanh.pop %v4579
    %v4836 = vtanh.pop %v4580
    %v4837 = vtanh.pop %v4581
    %v4838 = vtanh.pop %v4582
    %v4839 = vtanh.pop %v4583
    %v4840 = vtanh.pop %v4584
    %v4841 = vtanh.pop %v4585
    %v4842 = vtanh.pop %v4586
    %v4843 = vtanh.pop %v4587
    %v4844 = vtanh.pop %v4588
    %v4845 = vtanh.pop %v4589
    %v4846 = vtanh.pop %v4590
    %v4847 = vtanh.pop %v4591
    %v4848 = vtanh.pop %v4592
    %v4849 = vtanh.pop %v4593
    %v4850 = vtanh.pop %v4594
    %v4851 = vtanh.pop %v4595
    %v4852 = vtanh.pop %v4596
    %v4853 = vtanh.pop %v4597
    %v4854 = vtanh.pop %v4598
    %v4855 = vtanh.pop %v4599
    %v4856 = vtanh.pop %v4600
    %v4857 = vtanh.pop %v4601
    %v4858 = vtanh.pop %v4602
    %v4859 = vtanh.pop %v4603
    %v4860 = vtanh.pop %v4604
    %v4861 = vtanh.pop %v4605
    %v4862 = vtanh.pop %v4606
    %v4863 = vtanh.pop %v4607
    %v4864 = vtanh.pop %v4608
    %v4865 = vtanh.pop %v4609
    %v4866 = vtanh.pop %v4610
    %v4867 = vtanh.pop %v4611
    %v4868 = vtanh.pop %v4612
    %v4869 = vtanh.pop %v4613
    %v4870 = vtanh.pop %v4614
    %v4871 = vtanh.pop %v4615
    %v4872 = vtanh.pop %v4616
    %v4873 = vtanh.pop %v4617
    %v4874 = vtanh.pop %v4618
    %v4875 = vtanh.pop %v4619
    %v4876 = vtanh.pop %v4620
    %v4877 = vtanh.pop %v4621
    %v4878 = vtanh.pop %v4622
    %v4879 = vtanh.pop %v4623
    %v4880 = vtanh.pop %v4624
    %v4881 = vtanh.pop %v4625
    %v4882 = vtanh.pop %v4626
    %v4883 = vtanh.pop %v4627
    %v4884 = vtanh.pop %v4628
    %v4885 = vtanh.pop %v4629
    %v4886 = vtanh.pop %v4630
    %v4887 = vtanh.pop %v4631
    %v4888 = vtanh.pop %v4632
    %v4889 = vtanh.pop %v4633
    %v4890 = vtanh.pop %v4634
    %v4891 = vtanh.pop %v4635
    %v4892 = vtanh.pop %v4636
    %v4893 = vtanh.pop %v4637
    %v4894 = vtanh.pop %v4638
    %v4895 = vtanh.pop %v4639
    %v4896 = vtanh.pop %v4640
    %v4897 = vtanh.pop %v4641
    %v4898 = vtanh.pop %v4642
    %v4899 = vtanh.pop %v4643
    %v4900 = vtanh.pop %v4644
    %v4901 = vtanh.pop %v4645
    %v4902 = vtanh.pop %v4646
    %v4903 = vtanh.pop %v4647
    %v4904 = vtanh.pop %v4648
    %v4905 = vtanh.pop %v4649
    %v4906 = vtanh.pop %v4650
    %v4907 = vtanh.pop %v4651
    %v4908 = vtanh.pop %v4652
    %v4909 = vtanh.pop %v4653
    %v4910 = vtanh.pop %v4654
    %v4911 = vtanh.pop %v4655
    %v4912 = vtanh.pop %v4656
    %v4913 = vtanh.pop %v4657
    %v4914 = vtanh.pop %v4658
    %v4915 = vtanh.pop %v4659
    %v4916 = vtanh.pop %v4660
    %v4917 = vtanh.pop %v4661
    %v4918 = vtanh.pop %v4662
    %v4919 = vtanh.pop %v4663
    %v4920 = vtanh.pop %v4664
    %v4921 = vtanh.pop %v4665
    %v4922 = vtanh.pop %v4666
    %v4923 = vtanh.pop %v4667
    %v4924 = vtanh.pop %v4668
    %v4925 = vtanh.pop %v4669
    %v4926 = vtanh.pop %v4670
    %v4927 = vtanh.pop %v4671
    %v4928 = vtanh.pop %v4672
    %v4929 = vtanh.pop %v4673
    %v4930 = vtanh.pop %v4674
    %v4931 = vtanh.pop %v4675
    %v4932 = vtanh.pop %v4676
    %v4933 = vtanh.pop %v4677
    %v4934 = vtanh.pop %v4678
    %v4935 = vtanh.pop %v4679
    %v4936 = vtanh.pop %v4680
    %v4937 = vtanh.pop %v4681
    %v4938 = vtanh.pop %v4682
    %v4939 = vtanh.pop %v4683
    %v4940 = vtanh.pop %v4684
    %v4941 = vtanh.pop %v4685
    %v4942 = vtanh.pop %v4686
    %v4943 = vtanh.pop %v4687
    %v4944 = vtanh.pop %v4688
    %v4945 = vtanh.pop %v4689
    %v4946 = vtanh.pop %v4690
    %v4947 = vtanh.pop %v4691
    %v4948 = vtanh.pop %v4692
    %v4949 = vtanh.pop %v4693
    %v4950 = vtanh.pop %v4694
    %v4951 = vtanh.pop %v4695
    %v4952 = vtanh.pop %v4696
    %v4953 = vtanh.pop %v4697
    %v4954 = vtanh.pop %v4698
    %v4955 = vtanh.pop %v4699
    %v4956 = vtanh.pop %v4700
    %v4957 = vtanh.pop %v4701
    %v4958 = vtanh.pop %v4702
    %v4959 = vtanh.pop %v4703
    %v4960 = vtanh.pop %v4704
    %v4961 = vtanh.pop %v4705
    %v4962 = vtanh.pop %v4706
    %v4963 = vtanh.pop %v4707
    %v4964 = vtanh.pop %v4708
    %v4965 = vtanh.pop %v4709
    %v4966 = vtanh.pop %v4710
    %v4967 = vtanh.pop %v4711
    %v4968 = vtanh.pop %v4712
    %v4969 = vtanh.pop %v4713
    %v4970 = vtanh.pop %v4714
    %v4971 = vtanh.pop %v4715
    %v4972 = vtanh.pop %v4716
    %v4973 = vtanh.pop %v4717
    %v4974 = vtanh.pop %v4718
    %v4975 = vtanh.pop %v4719
    %v4976 = vtanh.pop %v4720
    %v4977 = vtanh.pop %v4721
    %v4978 = vtanh.pop %v4722
    %v4979 = vtanh.pop %v4723
    %v4980 = vtanh.pop %v4724
    %v4981 = vtanh.pop %v4725
    %v4982 = vtanh.pop %v4726
    %v4983 = vtanh.pop %v4727
    %v4984 = vtanh.pop %v4728
    %v4985 = vtanh.pop %v4729
    %v4986 = vtanh.pop %v4730
    %v4987 = vtanh.pop %v4731
    %v4988 = vtanh.pop %v4732
    %v4989 = vtanh.pop %v4733
    %v4990 = vtanh.pop %v4734
    %v4991 = vtanh.pop %v4735
    %v4992 = vtanh.pop %v4736
    %v4993 = vtanh.pop %v4737
    %v4994 = vtanh.pop %v4738
    %v4995 = vtanh.pop %v4739
    %v4996 = vtanh.pop %v4740
    %v4997 = vtanh.pop %v4741
    %v4998 = vtanh.pop %v4742
    %v4999 = vadd.f32 %v4743, 1.0
    %v5000 = vadd.f32 %v4744, 1.0
    %v5001 = vadd.f32 %v4745, 1.0
    %v5002 = vadd.f32 %v4746, 1.0
    %v5003 = vadd.f32 %v4747, 1.0
    %v5004 = vadd.f32 %v4748, 1.0
    %v5005 = vadd.f32 %v4749, 1.0
    %v5006 = vadd.f32 %v4750, 1.0
    %v5007 = vadd.f32 %v4751, 1.0
    %v5008 = vadd.f32 %v4752, 1.0
    %v5009 = vadd.f32 %v4753, 1.0
    %v5010 = vadd.f32 %v4754, 1.0
    %v5011 = vadd.f32 %v4755, 1.0
    %v5012 = vadd.f32 %v4756, 1.0
    %v5013 = vadd.f32 %v4757, 1.0
    %v5014 = vadd.f32 %v4758, 1.0
    %v5015 = vadd.f32 %v4759, 1.0
    %v5016 = vadd.f32 %v4760, 1.0
    %v5017 = vadd.f32 %v4761, 1.0
    %v5018 = vadd.f32 %v4762, 1.0
    %v5019 = vadd.f32 %v4763, 1.0
    %v5020 = vadd.f32 %v4764, 1.0
    %v5021 = vadd.f32 %v4765, 1.0
    %v5022 = vadd.f32 %v4766, 1.0
    %v5023 = vadd.f32 %v4767, 1.0
    %v5024 = vadd.f32 %v4768, 1.0
    %v5025 = vadd.f32 %v4769, 1.0
    %v5026 = vadd.f32 %v4770, 1.0
    %v5027 = vadd.f32 %v4771, 1.0
    %v5028 = vadd.f32 %v4772, 1.0
    %v5029 = vadd.f32 %v4773, 1.0
    %v5030 = vadd.f32 %v4774, 1.0
    %v5031 = vadd.f32 %v4775, 1.0
    %v5032 = vadd.f32 %v4776, 1.0
    %v5033 = vadd.f32 %v4777, 1.0
    %v5034 = vadd.f32 %v4778, 1.0
    %v5035 = vadd.f32 %v4779, 1.0
    %v5036 = vadd.f32 %v4780, 1.0
    %v5037 = vadd.f32 %v4781, 1.0
    %v5038 = vadd.f32 %v4782, 1.0
    %v5039 = vadd.f32 %v4783, 1.0
    %v5040 = vadd.f32 %v4784, 1.0
    %v5041 = vadd.f32 %v4785, 1.0
    %v5042 = vadd.f32 %v4786, 1.0
    %v5043 = vadd.f32 %v4787, 1.0
    %v5044 = vadd.f32 %v4788, 1.0
    %v5045 = vadd.f32 %v4789, 1.0
    %v5046 = vadd.f32 %v4790, 1.0
    %v5047 = vadd.f32 %v4791, 1.0
    %v5048 = vadd.f32 %v4792, 1.0
    %v5049 = vadd.f32 %v4793, 1.0
    %v5050 = vadd.f32 %v4794, 1.0
    %v5051 = vadd.f32 %v4795, 1.0
    %v5052 = vadd.f32 %v4796, 1.0
    %v5053 = vadd.f32 %v4797, 1.0
    %v5054 = vadd.f32 %v4798, 1.0
    %v5055 = vadd.f32 %v4799, 1.0
    %v5056 = vadd.f32 %v4800, 1.0
    %v5057 = vadd.f32 %v4801, 1.0
    %v5058 = vadd.f32 %v4802, 1.0
    %v5059 = vadd.f32 %v4803, 1.0
    %v5060 = vadd.f32 %v4804, 1.0
    %v5061 = vadd.f32 %v4805, 1.0
    %v5062 = vadd.f32 %v4806, 1.0
    %v5063 = vadd.f32 %v4807, 1.0
    %v5064 = vadd.f32 %v4808, 1.0
    %v5065 = vadd.f32 %v4809, 1.0
    %v5066 = vadd.f32 %v4810, 1.0
    %v5067 = vadd.f32 %v4811, 1.0
    %v5068 = vadd.f32 %v4812, 1.0
    %v5069 = vadd.f32 %v4813, 1.0
    %v5070 = vadd.f32 %v4814, 1.0
    %v5071 = vadd.f32 %v4815, 1.0
    %v5072 = vadd.f32 %v4816, 1.0
    %v5073 = vadd.f32 %v4817, 1.0
    %v5074 = vadd.f32 %v4818, 1.0
    %v5075 = vadd.f32 %v4819, 1.0
    %v5076 = vadd.f32 %v4820, 1.0
    %v5077 = vadd.f32 %v4821, 1.0
    %v5078 = vadd.f32 %v4822, 1.0
    %v5079 = vadd.f32 %v4823, 1.0
    %v5080 = vadd.f32 %v4824, 1.0
    %v5081 = vadd.f32 %v4825, 1.0
    %v5082 = vadd.f32 %v4826, 1.0
    %v5083 = vadd.f32 %v4827, 1.0
    %v5084 = vadd.f32 %v4828, 1.0
    %v5085 = vadd.f32 %v4829, 1.0
    %v5086 = vadd.f32 %v4830, 1.0
    %v5087 = vadd.f32 %v4831, 1.0
    %v5088 = vadd.f32 %v4832, 1.0
    %v5089 = vadd.f32 %v4833, 1.0
    %v5090 = vadd.f32 %v4834, 1.0
    %v5091 = vadd.f32 %v4835, 1.0
    %v5092 = vadd.f32 %v4836, 1.0
    %v5093 = vadd.f32 %v4837, 1.0
    %v5094 = vadd.f32 %v4838, 1.0
    %v5095 = vadd.f32 %v4839, 1.0
    %v5096 = vadd.f32 %v4840, 1.0
    %v5097 = vadd.f32 %v4841, 1.0
    %v5098 = vadd.f32 %v4842, 1.0
    %v5099 = vadd.f32 %v4843, 1.0
    %v5100 = vadd.f32 %v4844, 1.0
    %v5101 = vadd.f32 %v4845, 1.0
    %v5102 = vadd.f32 %v4846, 1.0
    %v5103 = vadd.f32 %v4847, 1.0
    %v5104 = vadd.f32 %v4848, 1.0
    %v5105 = vadd.f32 %v4849, 1.0
    %v5106 = vadd.f32 %v4850, 1.0
    %v5107 = vadd.f32 %v4851, 1.0
    %v5108 = vadd.f32 %v4852, 1.0
    %v5109 = vadd.f32 %v4853, 1.0
    %v5110 = vadd.f32 %v4854, 1.0
    %v5111 = vadd.f32 %v4855, 1.0
    %v5112 = vadd.f32 %v4856, 1.0
    %v5113 = vadd.f32 %v4857, 1.0
    %v5114 = vadd.f32 %v4858, 1.0
    %v5115 = vadd.f32 %v4859, 1.0
    %v5116 = vadd.f32 %v4860, 1.0
    %v5117 = vadd.f32 %v4861, 1.0
    %v5118 = vadd.f32 %v4862, 1.0
    %v5119 = vadd.f32 %v4863, 1.0
    %v5120 = vadd.f32 %v4864, 1.0
    %v5121 = vadd.f32 %v4865, 1.0
    %v5122 = vadd.f32 %v4866, 1.0
    %v5123 = vadd.f32 %v4867, 1.0
    %v5124 = vadd.f32 %v4868, 1.0
    %v5125 = vadd.f32 %v4869, 1.0
    %v5126 = vadd.f32 %v4870, 1.0
    %v5127 = vadd.f32 %v4871, 1.0
    %v5128 = vadd.f32 %v4872, 1.0
    %v5129 = vadd.f32 %v4873, 1.0
    %v5130 = vadd.f32 %v4874, 1.0
    %v5131 = vadd.f32 %v4875, 1.0
    %v5132 = vadd.f32 %v4876, 1.0
    %v5133 = vadd.f32 %v4877, 1.0
    %v5134 = vadd.f32 %v4878, 1.0
    %v5135 = vadd.f32 %v4879, 1.0
    %v5136 = vadd.f32 %v4880, 1.0
    %v5137 = vadd.f32 %v4881, 1.0
    %v5138 = vadd.f32 %v4882, 1.0
    %v5139 = vadd.f32 %v4883, 1.0
    %v5140 = vadd.f32 %v4884, 1.0
    %v5141 = vadd.f32 %v4885, 1.0
    %v5142 = vadd.f32 %v4886, 1.0
    %v5143 = vadd.f32 %v4887, 1.0
    %v5144 = vadd.f32 %v4888, 1.0
    %v5145 = vadd.f32 %v4889, 1.0
    %v5146 = vadd.f32 %v4890, 1.0
    %v5147 = vadd.f32 %v4891, 1.0
    %v5148 = vadd.f32 %v4892, 1.0
    %v5149 = vadd.f32 %v4893, 1.0
    %v5150 = vadd.f32 %v4894, 1.0
    %v5151 = vadd.f32 %v4895, 1.0
    %v5152 = vadd.f32 %v4896, 1.0
    %v5153 = vadd.f32 %v4897, 1.0
    %v5154 = vadd.f32 %v4898, 1.0
    %v5155 = vadd.f32 %v4899, 1.0
    %v5156 = vadd.f32 %v4900, 1.0
    %v5157 = vadd.f32 %v4901, 1.0
    %v5158 = vadd.f32 %v4902, 1.0
    %v5159 = vadd.f32 %v4903, 1.0
    %v5160 = vadd.f32 %v4904, 1.0
    %v5161 = vadd.f32 %v4905, 1.0
    %v5162 = vadd.f32 %v4906, 1.0
    %v5163 = vadd.f32 %v4907, 1.0
    %v5164 = vadd.f32 %v4908, 1.0
    %v5165 = vadd.f32 %v4909, 1.0
    %v5166 = vadd.f32 %v4910, 1.0
    %v5167 = vadd.f32 %v4911, 1.0
    %v5168 = vadd.f32 %v4912, 1.0
    %v5169 = vadd.f32 %v4913, 1.0
    %v5170 = vadd.f32 %v4914, 1.0
    %v5171 = vadd.f32 %v4915, 1.0
    %v5172 = vadd.f32 %v4916, 1.0
    %v5173 = vadd.f32 %v4917, 1.0
    %v5174 = vadd.f32 %v4918, 1.0
    %v5175 = vadd.f32 %v4919, 1.0
    %v5176 = vadd.f32 %v4920, 1.0
    %v5177 = vadd.f32 %v4921, 1.0
    %v5178 = vadd.f32 %v4922, 1.0
    %v5179 = vadd.f32 %v4923, 1.0
    %v5180 = vadd.f32 %v4924, 1.0
    %v5181 = vadd.f32 %v4925, 1.0
    %v5182 = vadd.f32 %v4926, 1.0
    %v5183 = vadd.f32 %v4927, 1.0
    %v5184 = vadd.f32 %v4928, 1.0
    %v5185 = vadd.f32 %v4929, 1.0
    %v5186 = vadd.f32 %v4930, 1.0
    %v5187 = vadd.f32 %v4931, 1.0
    %v5188 = vadd.f32 %v4932, 1.0
    %v5189 = vadd.f32 %v4933, 1.0
    %v5190 = vadd.f32 %v4934, 1.0
    %v5191 = vadd.f32 %v4935, 1.0
    %v5192 = vadd.f32 %v4936, 1.0
    %v5193 = vadd.f32 %v4937, 1.0
    %v5194 = vadd.f32 %v4938, 1.0
    %v5195 = vadd.f32 %v4939, 1.0
    %v5196 = vadd.f32 %v4940, 1.0
    %v5197 = vadd.f32 %v4941, 1.0
    %v5198 = vadd.f32 %v4942, 1.0
    %v5199 = vadd.f32 %v4943, 1.0
    %v5200 = vadd.f32 %v4944, 1.0
    %v5201 = vadd.f32 %v4945, 1.0
    %v5202 = vadd.f32 %v4946, 1.0
    %v5203 = vadd.f32 %v4947, 1.0
    %v5204 = vadd.f32 %v4948, 1.0
    %v5205 = vadd.f32 %v4949, 1.0
    %v5206 = vadd.f32 %v4950, 1.0
    %v5207 = vadd.f32 %v4951, 1.0
    %v5208 = vadd.f32 %v4952, 1.0
    %v5209 = vadd.f32 %v4953, 1.0
    %v5210 = vadd.f32 %v4954, 1.0
    %v5211 = vadd.f32 %v4955, 1.0
    %v5212 = vadd.f32 %v4956, 1.0
    %v5213 = vadd.f32 %v4957, 1.0
    %v5214 = vadd.f32 %v4958, 1.0
    %v5215 = vadd.f32 %v4959, 1.0
    %v5216 = vadd.f32 %v4960, 1.0
    %v5217 = vadd.f32 %v4961, 1.0
    %v5218 = vadd.f32 %v4962, 1.0
    %v5219 = vadd.f32 %v4963, 1.0
    %v5220 = vadd.f32 %v4964, 1.0
    %v5221 = vadd.f32 %v4965, 1.0
    %v5222 = vadd.f32 %v4966, 1.0
    %v5223 = vadd.f32 %v4967, 1.0
    %v5224 = vadd.f32 %v4968, 1.0
    %v5225 = vadd.f32 %v4969, 1.0
    %v5226 = vadd.f32 %v4970, 1.0
    %v5227 = vadd.f32 %v4971, 1.0
    %v5228 = vadd.f32 %v4972, 1.0
    %v5229 = vadd.f32 %v4973, 1.0
    %v5230 = vadd.f32 %v4974, 1.0
    %v5231 = vadd.f32 %v4975, 1.0
    %v5232 = vadd.f32 %v4976, 1.0
    %v5233 = vadd.f32 %v4977, 1.0
    %v5234 = vadd.f32 %v4978, 1.0
    %v5235 = vadd.f32 %v4979, 1.0
    %v5236 = vadd.f32 %v4980, 1.0
    %v5237 = vadd.f32 %v4981, 1.0
    %v5238 = vadd.f32 %v4982, 1.0
    %v5239 = vadd.f32 %v4983, 1.0
    %v5240 = vadd.f32 %v4984, 1.0
    %v5241 = vadd.f32 %v4985, 1.0
    %v5242 = vadd.f32 %v4986, 1.0
    %v5243 = vadd.f32 %v4987, 1.0
    %v5244 = vadd.f32 %v4988, 1.0
    %v5245 = vadd.f32 %v4989, 1.0
    %v5246 = vadd.f32 %v4990, 1.0
    %v5247 = vadd.f32 %v4991, 1.0
    %v5248 = vadd.f32 %v4992, 1.0
    %v5249 = vadd.f32 %v4993, 1.0
    %v5250 = vadd.f32 %v4994, 1.0
    %v5251 = vadd.f32 %v4995, 1.0
    %v5252 = vadd.f32 %v4996, 1.0
    %v5253 = vadd.f32 %v4997, 1.0
    %v5254 = vadd.f32 %v4998, 1.0
    %v5255 = vmul.f32 %v4215, %v4999
    %v5256 = vmul.f32 %v4216, %v5000
    %v5257 = vmul.f32 %v4217, %v5001
    %v5258 = vmul.f32 %v4218, %v5002
    %v5259 = vmul.f32 %v4219, %v5003
    %v5260 = vmul.f32 %v4220, %v5004
    %v5261 = vmul.f32 %v4221, %v5005
    %v5262 = vmul.f32 %v4222, %v5006
    %v5263 = vmul.f32 %v4223, %v5007
    %v5264 = vmul.f32 %v4224, %v5008
    %v5265 = vmul.f32 %v4225, %v5009
    %v5266 = vmul.f32 %v4226, %v5010
    %v5267 = vmul.f32 %v4227, %v5011
    %v5268 = vmul.f32 %v4228, %v5012
    %v5269 = vmul.f32 %v4229, %v5013
    %v5270 = vmul.f32 %v4230, %v5014
    %v5271 = vmul.f32 %v4231, %v5015
    %v5272 = vmul.f32 %v4232, %v5016
    %v5273 = vmul.f32 %v4233, %v5017
    %v5274 = vmul.f32 %v4234, %v5018
    %v5275 = vmul.f32 %v4235, %v5019
    %v5276 = vmul.f32 %v4236, %v5020
    %v5277 = vmul.f32 %v4237, %v5021
    %v5278 = vmul.f32 %v4238, %v5022
    %v5279 = vmul.f32 %v4239, %v5023
    %v5280 = vmul.f32 %v4240, %v5024
    %v5281 = vmul.f32 %v4241, %v5025
    %v5282 = vmul.f32 %v4242, %v5026
    %v5283 = vmul.f32 %v4243, %v5027
    %v5284 = vmul.f32 %v4244, %v5028
    %v5285 = vmul.f32 %v4245, %v5029
    %v5286 = vmul.f32 %v4246, %v5030
    %v5287 = vmul.f32 %v4247, %v5031
    %v5288 = vmul.f32 %v4248, %v5032
    %v5289 = vmul.f32 %v4249, %v5033
    %v5290 = vmul.f32 %v4250, %v5034
    %v5291 = vmul.f32 %v4251, %v5035
    %v5292 = vmul.f32 %v4252, %v5036
    %v5293 = vmul.f32 %v4253, %v5037
    %v5294 = vmul.f32 %v4254, %v5038
    %v5295 = vmul.f32 %v4255, %v5039
    %v5296 = vmul.f32 %v4256, %v5040
    %v5297 = vmul.f32 %v4257, %v5041
    %v5298 = vmul.f32 %v4258, %v5042
    %v5299 = vmul.f32 %v4259, %v5043
    %v5300 = vmul.f32 %v4260, %v5044
    %v5301 = vmul.f32 %v4261, %v5045
    %v5302 = vmul.f32 %v4262, %v5046
    %v5303 = vmul.f32 %v4263, %v5047
    %v5304 = vmul.f32 %v4264, %v5048
    %v5305 = vmul.f32 %v4265, %v5049
    %v5306 = vmul.f32 %v4266, %v5050
    %v5307 = vmul.f32 %v4267, %v5051
    %v5308 = vmul.f32 %v4268, %v5052
    %v5309 = vmul.f32 %v4269, %v5053
    %v5310 = vmul.f32 %v4270, %v5054
    %v5311 = vmul.f32 %v4271, %v5055
    %v5312 = vmul.f32 %v4272, %v5056
    %v5313 = vmul.f32 %v4273, %v5057
    %v5314 = vmul.f32 %v4274, %v5058
    %v5315 = vmul.f32 %v4275, %v5059
    %v5316 = vmul.f32 %v4276, %v5060
    %v5317 = vmul.f32 %v4277, %v5061
    %v5318 = vmul.f32 %v4278, %v5062
    %v5319 = vmul.f32 %v4279, %v5063
    %v5320 = vmul.f32 %v4280, %v5064
    %v5321 = vmul.f32 %v4281, %v5065
    %v5322 = vmul.f32 %v4282, %v5066
    %v5323 = vmul.f32 %v4283, %v5067
    %v5324 = vmul.f32 %v4284, %v5068
    %v5325 = vmul.f32 %v4285, %v5069
    %v5326 = vmul.f32 %v4286, %v5070
    %v5327 = vmul.f32 %v4287, %v5071
    %v5328 = vmul.f32 %v4288, %v5072
    %v5329 = vmul.f32 %v4289, %v5073
    %v5330 = vmul.f32 %v4290, %v5074
    %v5331 = vmul.f32 %v4291, %v5075
    %v5332 = vmul.f32 %v4292, %v5076
    %v5333 = vmul.f32 %v4293, %v5077
    %v5334 = vmul.f32 %v4294, %v5078
    %v5335 = vmul.f32 %v4295, %v5079
    %v5336 = vmul.f32 %v4296, %v5080
    %v5337 = vmul.f32 %v4297, %v5081
    %v5338 = vmul.f32 %v4298, %v5082
    %v5339 = vmul.f32 %v4299, %v5083
    %v5340 = vmul.f32 %v4300, %v5084
    %v5341 = vmul.f32 %v4301, %v5085
    %v5342 = vmul.f32 %v4302, %v5086
    %v5343 = vmul.f32 %v4303, %v5087
    %v5344 = vmul.f32 %v4304, %v5088
    %v5345 = vmul.f32 %v4305, %v5089
    %v5346 = vmul.f32 %v4306, %v5090
    %v5347 = vmul.f32 %v4307, %v5091
    %v5348 = vmul.f32 %v4308, %v5092
    %v5349 = vmul.f32 %v4309, %v5093
    %v5350 = vmul.f32 %v4310, %v5094
    %v5351 = vmul.f32 %v4311, %v5095
    %v5352 = vmul.f32 %v4312, %v5096
    %v5353 = vmul.f32 %v4313, %v5097
    %v5354 = vmul.f32 %v4314, %v5098
    %v5355 = vmul.f32 %v4315, %v5099
    %v5356 = vmul.f32 %v4316, %v5100
    %v5357 = vmul.f32 %v4317, %v5101
    %v5358 = vmul.f32 %v4318, %v5102
    %v5359 = vmul.f32 %v4319, %v5103
    %v5360 = vmul.f32 %v4320, %v5104
    %v5361 = vmul.f32 %v4321, %v5105
    %v5362 = vmul.f32 %v4322, %v5106
    %v5363 = vmul.f32 %v4323, %v5107
    %v5364 = vmul.f32 %v4324, %v5108
    %v5365 = vmul.f32 %v4325, %v5109
    %v5366 = vmul.f32 %v4326, %v5110
    %v5367 = vmul.f32 %v4327, %v5111
    %v5368 = vmul.f32 %v4328, %v5112
    %v5369 = vmul.f32 %v4329, %v5113
    %v5370 = vmul.f32 %v4330, %v5114
    %v5371 = vmul.f32 %v4331, %v5115
    %v5372 = vmul.f32 %v4332, %v5116
    %v5373 = vmul.f32 %v4333, %v5117
    %v5374 = vmul.f32 %v4334, %v5118
    %v5375 = vmul.f32 %v4335, %v5119
    %v5376 = vmul.f32 %v4336, %v5120
    %v5377 = vmul.f32 %v4337, %v5121
    %v5378 = vmul.f32 %v4338, %v5122
    %v5379 = vmul.f32 %v4339, %v5123
    %v5380 = vmul.f32 %v4340, %v5124
    %v5381 = vmul.f32 %v4341, %v5125
    %v5382 = vmul.f32 %v4342, %v5126
    %v5383 = vmul.f32 %v4343, %v5127
    %v5384 = vmul.f32 %v4344, %v5128
    %v5385 = vmul.f32 %v4345, %v5129
    %v5386 = vmul.f32 %v4346, %v5130
    %v5387 = vmul.f32 %v4347, %v5131
    %v5388 = vmul.f32 %v4348, %v5132
    %v5389 = vmul.f32 %v4349, %v5133
    %v5390 = vmul.f32 %v4350, %v5134
    %v5391 = vmul.f32 %v4351, %v5135
    %v5392 = vmul.f32 %v4352, %v5136
    %v5393 = vmul.f32 %v4353, %v5137
    %v5394 = vmul.f32 %v4354, %v5138
    %v5395 = vmul.f32 %v4355, %v5139
    %v5396 = vmul.f32 %v4356, %v5140
    %v5397 = vmul.f32 %v4357, %v5141
    %v5398 = vmul.f32 %v4358, %v5142
    %v5399 = vmul.f32 %v4359, %v5143
    %v5400 = vmul.f32 %v4360, %v5144
    %v5401 = vmul.f32 %v4361, %v5145
    %v5402 = vmul.f32 %v4362, %v5146
    %v5403 = vmul.f32 %v4363, %v5147
    %v5404 = vmul.f32 %v4364, %v5148
    %v5405 = vmul.f32 %v4365, %v5149
    %v5406 = vmul.f32 %v4366, %v5150
    %v5407 = vmul.f32 %v4367, %v5151
    %v5408 = vmul.f32 %v4368, %v5152
    %v5409 = vmul.f32 %v4369, %v5153
    %v5410 = vmul.f32 %v4370, %v5154
    %v5411 = vmul.f32 %v4371, %v5155
    %v5412 = vmul.f32 %v4372, %v5156
    %v5413 = vmul.f32 %v4373, %v5157
    %v5414 = vmul.f32 %v4374, %v5158
    %v5415 = vmul.f32 %v4375, %v5159
    %v5416 = vmul.f32 %v4376, %v5160
    %v5417 = vmul.f32 %v4377, %v5161
    %v5418 = vmul.f32 %v4378, %v5162
    %v5419 = vmul.f32 %v4379, %v5163
    %v5420 = vmul.f32 %v4380, %v5164
    %v5421 = vmul.f32 %v4381, %v5165
    %v5422 = vmul.f32 %v4382, %v5166
    %v5423 = vmul.f32 %v4383, %v5167
    %v5424 = vmul.f32 %v4384, %v5168
    %v5425 = vmul.f32 %v4385, %v5169
    %v5426 = vmul.f32 %v4386, %v5170
    %v5427 = vmul.f32 %v4387, %v5171
    %v5428 = vmul.f32 %v4388, %v5172
    %v5429 = vmul.f32 %v4389, %v5173
    %v5430 = vmul.f32 %v4390, %v5174
    %v5431 = vmul.f32 %v4391, %v5175
    %v5432 = vmul.f32 %v4392, %v5176
    %v5433 = vmul.f32 %v4393, %v5177
    %v5434 = vmul.f32 %v4394, %v5178
    %v5435 = vmul.f32 %v4395, %v5179
    %v5436 = vmul.f32 %v4396, %v5180
    %v5437 = vmul.f32 %v4397, %v5181
    %v5438 = vmul.f32 %v4398, %v5182
    %v5439 = vmul.f32 %v4399, %v5183
    %v5440 = vmul.f32 %v4400, %v5184
    %v5441 = vmul.f32 %v4401, %v5185
    %v5442 = vmul.f32 %v4402, %v5186
    %v5443 = vmul.f32 %v4403, %v5187
    %v5444 = vmul.f32 %v4404, %v5188
    %v5445 = vmul.f32 %v4405, %v5189
    %v5446 = vmul.f32 %v4406, %v5190
    %v5447 = vmul.f32 %v4407, %v5191
    %v5448 = vmul.f32 %v4408, %v5192
    %v5449 = vmul.f32 %v4409, %v5193
    %v5450 = vmul.f32 %v4410, %v5194
    %v5451 = vmul.f32 %v4411, %v5195
    %v5452 = vmul.f32 %v4412, %v5196
    %v5453 = vmul.f32 %v4413, %v5197
    %v5454 = vmul.f32 %v4414, %v5198
    %v5455 = vmul.f32 %v4415, %v5199
    %v5456 = vmul.f32 %v4416, %v5200
    %v5457 = vmul.f32 %v4417, %v5201
    %v5458 = vmul.f32 %v4418, %v5202
    %v5459 = vmul.f32 %v4419, %v5203
    %v5460 = vmul.f32 %v4420, %v5204
    %v5461 = vmul.f32 %v4421, %v5205
    %v5462 = vmul.f32 %v4422, %v5206
    %v5463 = vmul.f32 %v4423, %v5207
    %v5464 = vmul.f32 %v4424, %v5208
    %v5465 = vmul.f32 %v4425, %v5209
    %v5466 = vmul.f32 %v4426, %v5210
    %v5467 = vmul.f32 %v4427, %v5211
    %v5468 = vmul.f32 %v4428, %v5212
    %v5469 = vmul.f32 %v4429, %v5213
    %v5470 = vmul.f32 %v4430, %v5214
    %v5471 = vmul.f32 %v4431, %v5215
    %v5472 = vmul.f32 %v4432, %v5216
    %v5473 = vmul.f32 %v4433, %v5217
    %v5474 = vmul.f32 %v4434, %v5218
    %v5475 = vmul.f32 %v4435, %v5219
    %v5476 = vmul.f32 %v4436, %v5220
    %v5477 = vmul.f32 %v4437, %v5221
    %v5478 = vmul.f32 %v4438, %v5222
    %v5479 = vmul.f32 %v4439, %v5223
    %v5480 = vmul.f32 %v4440, %v5224
    %v5481 = vmul.f32 %v4441, %v5225
    %v5482 = vmul.f32 %v4442, %v5226
    %v5483 = vmul.f32 %v4443, %v5227
    %v5484 = vmul.f32 %v4444, %v5228
    %v5485 = vmul.f32 %v4445, %v5229
    %v5486 = vmul.f32 %v4446, %v5230
    %v5487 = vmul.f32 %v4447, %v5231
    %v5488 = vmul.f32 %v4448, %v5232
    %v5489 = vmul.f32 %v4449, %v5233
    %v5490 = vmul.f32 %v4450, %v5234
    %v5491 = vmul.f32 %v4451, %v5235
    %v5492 = vmul.f32 %v4452, %v5236
    %v5493 = vmul.f32 %v4453, %v5237
    %v5494 = vmul.f32 %v4454, %v5238
    %v5495 = vmul.f32 %v4455, %v5239
    %v5496 = vmul.f32 %v4456, %v5240
    %v5497 = vmul.f32 %v4457, %v5241
    %v5498 = vmul.f32 %v4458, %v5242
    %v5499 = vmul.f32 %v4459, %v5243
    %v5500 = vmul.f32 %v4460, %v5244
    %v5501 = vmul.f32 %v4461, %v5245
    %v5502 = vmul.f32 %v4462, %v5246
    %v5503 = vmul.f32 %v4463, %v5247
    %v5504 = vmul.f32 %v4464, %v5248
    %v5505 = vmul.f32 %v4465, %v5249
    %v5506 = vmul.f32 %v4466, %v5250
    %v5507 = vmul.f32 %v4467, %v5251
    %v5508 = vmul.f32 %v4468, %v5252
    %v5509 = vmul.f32 %v4469, %v5253
    %v5510 = vmul.f32 %v4470, %v5254
    %v5511 = vld [vmem:[%s2] sm:$0x1]
    %v5512 = vpack.c.bf16 %v5319, %v5255
    %v5513 = vpack.c.bf16 %v5320, %v5256
    %v5514 = vpack.c.bf16 %v5321, %v5257
    %v5515 = vpack.c.bf16 %v5322, %v5258
    %v5516 = vpack.c.bf16 %v5323, %v5259
    %v5517 = vpack.c.bf16 %v5324, %v5260
    %v5518 = vpack.c.bf16 %v5325, %v5261
    %v5519 = vpack.c.bf16 %v5326, %v5262
    %v5520 = vpack.c.bf16 %v5327, %v5263
    %v5521 = vpack.c.bf16 %v5328, %v5264
    %v5522 = vpack.c.bf16 %v5329, %v5265
    %v5523 = vpack.c.bf16 %v5330, %v5266
    %v5524 = vpack.c.bf16 %v5331, %v5267
    %v5525 = vpack.c.bf16 %v5332, %v5268
    %v5526 = vpack.c.bf16 %v5333, %v5269
    %v5527 = vpack.c.bf16 %v5334, %v5270
    %v5528 = vpack.c.bf16 %v5335, %v5271
    %v5529 = vpack.c.bf16 %v5336, %v5272
    %v5530 = vpack.c.bf16 %v5337, %v5273
    %v5531 = vpack.c.bf16 %v5338, %v5274
    %v5532 = vpack.c.bf16 %v5339, %v5275
    %v5533 = vpack.c.bf16 %v5340, %v5276
    %v5534 = vpack.c.bf16 %v5341, %v5277
    %v5535 = vpack.c.bf16 %v5342, %v5278
    %v5536 = vpack.c.bf16 %v5343, %v5279
    %v5537 = vpack.c.bf16 %v5344, %v5280
    %v5538 = vpack.c.bf16 %v5345, %v5281
    %v5539 = vpack.c.bf16 %v5346, %v5282
    %v5540 = vpack.c.bf16 %v5347, %v5283
    %v5541 = vpack.c.bf16 %v5348, %v5284
    %v5542 = vpack.c.bf16 %v5349, %v5285
    %v5543 = vpack.c.bf16 %v5350, %v5286
    %v5544 = vpack.c.bf16 %v5351, %v5287
    %v5545 = vpack.c.bf16 %v5352, %v5288
    %v5546 = vpack.c.bf16 %v5353, %v5289
    %v5547 = vpack.c.bf16 %v5354, %v5290
    %v5548 = vpack.c.bf16 %v5355, %v5291
    %v5549 = vpack.c.bf16 %v5356, %v5292
    %v5550 = vpack.c.bf16 %v5357, %v5293
    %v5551 = vpack.c.bf16 %v5358, %v5294
    %v5552 = vpack.c.bf16 %v5359, %v5295
    %v5553 = vpack.c.bf16 %v5360, %v5296
    %v5554 = vpack.c.bf16 %v5361, %v5297
    %v5555 = vpack.c.bf16 %v5362, %v5298
    %v5556 = vpack.c.bf16 %v5363, %v5299
    %v5557 = vpack.c.bf16 %v5364, %v5300
    %v5558 = vpack.c.bf16 %v5365, %v5301
    %v5559 = vpack.c.bf16 %v5366, %v5302
    %v5560 = vpack.c.bf16 %v5367, %v5303
    %v5561 = vpack.c.bf16 %v5368, %v5304
    %v5562 = vpack.c.bf16 %v5369, %v5305
    %v5563 = vpack.c.bf16 %v5370, %v5306
    %v5564 = vpack.c.bf16 %v5371, %v5307
    %v5565 = vpack.c.bf16 %v5372, %v5308
    %v5566 = vpack.c.bf16 %v5373, %v5309
    %v5567 = vpack.c.bf16 %v5374, %v5310
    %v5568 = vpack.c.bf16 %v5375, %v5311
    %v5569 = vpack.c.bf16 %v5376, %v5312
    %v5570 = vpack.c.bf16 %v5377, %v5313
    %v5571 = vpack.c.bf16 %v5378, %v5314
    %v5572 = vpack.c.bf16 %v5379, %v5315
    %v5573 = vpack.c.bf16 %v5380, %v5316
    %v5574 = vpack.c.bf16 %v5381, %v5317
    %v5575 = vpack.c.bf16 %v5382, %v5318
    %v5576 = vpack.c.bf16 %v5447, %v5383
    %v5577 = vpack.c.bf16 %v5448, %v5384
    %v5578 = vpack.c.bf16 %v5449, %v5385
    %v5579 = vpack.c.bf16 %v5450, %v5386
    %v5580 = vpack.c.bf16 %v5451, %v5387
    %v5581 = vpack.c.bf16 %v5452, %v5388
    %v5582 = vpack.c.bf16 %v5453, %v5389
    %v5583 = vpack.c.bf16 %v5454, %v5390
    %v5584 = vpack.c.bf16 %v5455, %v5391
    %v5585 = vpack.c.bf16 %v5456, %v5392
    %v5586 = vpack.c.bf16 %v5457, %v5393
    %v5587 = vpack.c.bf16 %v5458, %v5394
    %v5588 = vpack.c.bf16 %v5459, %v5395
    %v5589 = vpack.c.bf16 %v5460, %v5396
    %v5590 = vpack.c.bf16 %v5461, %v5397
    %v5591 = vpack.c.bf16 %v5462, %v5398
    %v5592 = vpack.c.bf16 %v5463, %v5399
    %v5593 = vpack.c.bf16 %v5464, %v5400
    %v5594 = vpack.c.bf16 %v5465, %v5401
    %v5595 = vpack.c.bf16 %v5466, %v5402
    %v5596 = vpack.c.bf16 %v5467, %v5403
    %v5597 = vpack.c.bf16 %v5468, %v5404
    %v5598 = vpack.c.bf16 %v5469, %v5405
    %v5599 = vpack.c.bf16 %v5470, %v5406
    %v5600 = vpack.c.bf16 %v5471, %v5407
    %v5601 = vpack.c.bf16 %v5472, %v5408
    %v5602 = vpack.c.bf16 %v5473, %v5409
    %v5603 = vpack.c.bf16 %v5474, %v5410
    %v5604 = vpack.c.bf16 %v5475, %v5411
    %v5605 = vpack.c.bf16 %v5476, %v5412
    %v5606 = vpack.c.bf16 %v5477, %v5413
    %v5607 = vpack.c.bf16 %v5478, %v5414
    %v5608 = vpack.c.bf16 %v5479, %v5415
    %v5609 = vpack.c.bf16 %v5480, %v5416
    %v5610 = vpack.c.bf16 %v5481, %v5417
    %v5611 = vpack.c.bf16 %v5482, %v5418
    %v5612 = vpack.c.bf16 %v5483, %v5419
    %v5613 = vpack.c.bf16 %v5484, %v5420
    %v5614 = vpack.c.bf16 %v5485, %v5421
    %v5615 = vpack.c.bf16 %v5486, %v5422
    %v5616 = vpack.c.bf16 %v5487, %v5423
    %v5617 = vpack.c.bf16 %v5488, %v5424
    %v5618 = vpack.c.bf16 %v5489, %v5425
    %v5619 = vpack.c.bf16 %v5490, %v5426
    %v5620 = vpack.c.bf16 %v5491, %v5427
    %v5621 = vpack.c.bf16 %v5492, %v5428
    %v5622 = vpack.c.bf16 %v5493, %v5429
    %v5623 = vpack.c.bf16 %v5494, %v5430
    %v5624 = vpack.c.bf16 %v5495, %v5431
    %v5625 = vpack.c.bf16 %v5496, %v5432
    %v5626 = vpack.c.bf16 %v5497, %v5433
    %v5627 = vpack.c.bf16 %v5498, %v5434
    %v5628 = vpack.c.bf16 %v5499, %v5435
    %v5629 = vpack.c.bf16 %v5500, %v5436
    %v5630 = vpack.c.bf16 %v5501, %v5437
    %v5631 = vpack.c.bf16 %v5502, %v5438
    %v5632 = vpack.c.bf16 %v5503, %v5439
    %v5633 = vpack.c.bf16 %v5504, %v5440
    %v5634 = vpack.c.bf16 %v5505, %v5441
    %v5635 = vpack.c.bf16 %v5506, %v5442
    %v5636 = vpack.c.bf16 %v5507, %v5443
    %v5637 = vpack.c.bf16 %v5508, %v5444
    %v5638 = vpack.c.bf16 %v5509, %v5445
    %v5639 = vpack.c.bf16 %v5510, %v5446
    %5641 = vset.pattern.permute.xlu0 6
    %5642 = vperm.xlu0 %5641, %v53
    %v5643 = vpop.permute.xlu0 %5642
    %v5646 = vsel %vm2992, %v5511, 0
    %5648 = vmatpush.bf16.msra.mxu0 0
    %5649 = vmatpush.bf16.msra.mxu0 0
    %5650 = vmatpush.bf16.msra.mxu0 0
    %5651 = vmatpush.bf16.msra.mxu0 0
    %5652 = vmatpush.bf16.msra.mxu0 0
    %5653 = vmatpush.bf16.msra.mxu0 0
    %5654 = vmatpush.bf16.msra.mxu0 %v5576
    %5655 = vmatpush.bf16.msra.mxu0 %v5512
    %5656 = vmatmul.bf16.gmra.mxu0 %v5646
    %v5657 = vpop.f32.mrf.mxu0
    %v5658 = vadd.f32 %v5643, %v5657
    %v5659 = vpop.f32.mrf.mxu0
    %5660 = vdwg.mxu0
    %5661 = vmatpush.bf16.msra.mxu0 0
    %5662 = vmatpush.bf16.msra.mxu0 0
    %5663 = vmatpush.bf16.msra.mxu0 0
    %5664 = vmatpush.bf16.msra.mxu0 0
    %5665 = vmatpush.bf16.msra.mxu0 0
    %5666 = vmatpush.bf16.msra.mxu0 0
    %5667 = vmatpush.bf16.msra.mxu0 %v5577
    %5668 = vmatpush.bf16.msra.mxu0 %v5513
    %5669 = vmatmul.bf16.gmra.mxu0 %v5646
    %v5670 = vpop.f32.mrf.mxu0
    %v5671 = vadd.f32 %v5643, %v5670
    %v5672 = vpop.f32.mrf.mxu0
    %5673 = vdwg.mxu0
    %5674 = vmatpush.bf16.msra.mxu0 0
    %5675 = vmatpush.bf16.msra.mxu0 0
    %5676 = vmatpush.bf16.msra.mxu0 0
    %5677 = vmatpush.bf16.msra.mxu0 0
    %5678 = vmatpush.bf16.msra.mxu0 0
    %5679 = vmatpush.bf16.msra.mxu0 0
    %5680 = vmatpush.bf16.msra.mxu0 %v5578
    %5681 = vmatpush.bf16.msra.mxu0 %v5514
    %5682 = vmatmul.bf16.gmra.mxu0 %v5646
    %v5683 = vpop.f32.mrf.mxu0
    %v5684 = vadd.f32 %v5643, %v5683
    %v5685 = vpop.f32.mrf.mxu0
    %5686 = vdwg.mxu0
    %5687 = vmatpush.bf16.msra.mxu0 0
    %5688 = vmatpush.bf16.msra.mxu0 0
    %5689 = vmatpush.bf16.msra.mxu0 0
    %5690 = vmatpush.bf16.msra.mxu0 0
    %5691 = vmatpush.bf16.msra.mxu0 0
    %5692 = vmatpush.bf16.msra.mxu0 0
    %5693 = vmatpush.bf16.msra.mxu0 %v5579
    %5694 = vmatpush.bf16.msra.mxu0 %v5515
    %5695 = vmatmul.bf16.gmra.mxu0 %v5646
    %v5696 = vpop.f32.mrf.mxu0
    %v5697 = vadd.f32 %v5643, %v5696
    %v5698 = vpop.f32.mrf.mxu0
    %5699 = vdwg.mxu0
    %5700 = vmatpush.bf16.msra.mxu0 0
    %5701 = vmatpush.bf16.msra.mxu0 0
    %5702 = vmatpush.bf16.msra.mxu0 0
    %5703 = vmatpush.bf16.msra.mxu0 0
    %5704 = vmatpush.bf16.msra.mxu0 0
    %5705 = vmatpush.bf16.msra.mxu0 0
    %5706 = vmatpush.bf16.msra.mxu0 %v5580
    %5707 = vmatpush.bf16.msra.mxu0 %v5516
    %5708 = vmatmul.bf16.gmra.mxu0 %v5646
    %v5709 = vpop.f32.mrf.mxu0
    %v5710 = vadd.f32 %v5643, %v5709
    %v5711 = vpop.f32.mrf.mxu0
    %5712 = vdwg.mxu0
    %5713 = vmatpush.bf16.msra.mxu0 0
    %5714 = vmatpush.bf16.msra.mxu0 0
    %5715 = vmatpush.bf16.msra.mxu0 0
    %5716 = vmatpush.bf16.msra.mxu0 0
    %5717 = vmatpush.bf16.msra.mxu0 0
    %5718 = vmatpush.bf16.msra.mxu0 0
    %5719 = vmatpush.bf16.msra.mxu0 %v5581
    %5720 = vmatpush.bf16.msra.mxu0 %v5517
    %5721 = vmatmul.bf16.gmra.mxu0 %v5646
    %v5722 = vpop.f32.mrf.mxu0
    %v5723 = vadd.f32 %v5643, %v5722
    %v5724 = vpop.f32.mrf.mxu0
    %5725 = vdwg.mxu0
    %5726 = vmatpush.bf16.msra.mxu0 0
    %5727 = vmatpush.bf16.msra.mxu0 0
    %5728 = vmatpush.bf16.msra.mxu0 0
    %5729 = vmatpush.bf16.msra.mxu0 0
    %5730 = vmatpush.bf16.msra.mxu0 0
    %5731 = vmatpush.bf16.msra.mxu0 0
    %5732 = vmatpush.bf16.msra.mxu0 %v5582
    %5733 = vmatpush.bf16.msra.mxu0 %v5518
    %5734 = vmatmul.bf16.gmra.mxu0 %v5646
    %v5735 = vpop.f32.mrf.mxu0
    %v5736 = vadd.f32 %v5643, %v5735
    %v5737 = vpop.f32.mrf.mxu0
    %5738 = vdwg.mxu0
    %5739 = vmatpush.bf16.msra.mxu0 0
    %5740 = vmatpush.bf16.msra.mxu0 0
    %5741 = vmatpush.bf16.msra.mxu0 0
    %5742 = vmatpush.bf16.msra.mxu0 0
    %5743 = vmatpush.bf16.msra.mxu0 0
    %5744 = vmatpush.bf16.msra.mxu0 0
    %5745 = vmatpush.bf16.msra.mxu0 %v5583
    %5746 = vmatpush.bf16.msra.mxu0 %v5519
    %5747 = vmatmul.bf16.gmra.mxu0 %v5646
    %v5748 = vpop.f32.mrf.mxu0
    %v5749 = vadd.f32 %v5643, %v5748
    %v5750 = vpop.f32.mrf.mxu0
    %5751 = vdwg.mxu0
    %5752 = vmatpush.bf16.msra.mxu0 0
    %5753 = vmatpush.bf16.msra.mxu0 0
    %5754 = vmatpush.bf16.msra.mxu0 0
    %5755 = vmatpush.bf16.msra.mxu0 0
    %5756 = vmatpush.bf16.msra.mxu0 0
    %5757 = vmatpush.bf16.msra.mxu0 0
    %5758 = vmatpush.bf16.msra.mxu0 %v5584
    %5759 = vmatpush.bf16.msra.mxu0 %v5520
    %5760 = vmatmul.bf16.gmra.mxu0 %v5646
    %v5761 = vpop.f32.mrf.mxu0
    %v5762 = vadd.f32 %v5643, %v5761
    %v5763 = vpop.f32.mrf.mxu0
    %5764 = vdwg.mxu0
    %5765 = vmatpush.bf16.msra.mxu0 0
    %5766 = vmatpush.bf16.msra.mxu0 0
    %5767 = vmatpush.bf16.msra.mxu0 0
    %5768 = vmatpush.bf16.msra.mxu0 0
    %5769 = vmatpush.bf16.msra.mxu0 0
    %5770 = vmatpush.bf16.msra.mxu0 0
    %5771 = vmatpush.bf16.msra.mxu0 %v5585
    %5772 = vmatpush.bf16.msra.mxu0 %v5521
    %5773 = vmatmul.bf16.gmra.mxu0 %v5646
    %v5774 = vpop.f32.mrf.mxu0
    %v5775 = vadd.f32 %v5643, %v5774
    %v5776 = vpop.f32.mrf.mxu0
    %5777 = vdwg.mxu0
    %5778 = vmatpush.bf16.msra.mxu0 0
    %5779 = vmatpush.bf16.msra.mxu0 0
    %5780 = vmatpush.bf16.msra.mxu0 0
    %5781 = vmatpush.bf16.msra.mxu0 0
    %5782 = vmatpush.bf16.msra.mxu0 0
    %5783 = vmatpush.bf16.msra.mxu0 0
    %5784 = vmatpush.bf16.msra.mxu0 %v5586
    %5785 = vmatpush.bf16.msra.mxu0 %v5522
    %5786 = vmatmul.bf16.gmra.mxu0 %v5646
    %v5787 = vpop.f32.mrf.mxu0
    %v5788 = vadd.f32 %v5643, %v5787
    %v5789 = vpop.f32.mrf.mxu0
    %5790 = vdwg.mxu0
    %5791 = vmatpush.bf16.msra.mxu0 0
    %5792 = vmatpush.bf16.msra.mxu0 0
    %5793 = vmatpush.bf16.msra.mxu0 0
    %5794 = vmatpush.bf16.msra.mxu0 0
    %5795 = vmatpush.bf16.msra.mxu0 0
    %5796 = vmatpush.bf16.msra.mxu0 0
    %5797 = vmatpush.bf16.msra.mxu0 %v5587
    %5798 = vmatpush.bf16.msra.mxu0 %v5523
    %5799 = vmatmul.bf16.gmra.mxu0 %v5646
    %v5800 = vpop.f32.mrf.mxu0
    %v5801 = vadd.f32 %v5643, %v5800
    %v5802 = vpop.f32.mrf.mxu0
    %5803 = vdwg.mxu0
    %5804 = vmatpush.bf16.msra.mxu0 0
    %5805 = vmatpush.bf16.msra.mxu0 0
    %5806 = vmatpush.bf16.msra.mxu0 0
    %5807 = vmatpush.bf16.msra.mxu0 0
    %5808 = vmatpush.bf16.msra.mxu0 0
    %5809 = vmatpush.bf16.msra.mxu0 0
    %5810 = vmatpush.bf16.msra.mxu0 %v5588
    %5811 = vmatpush.bf16.msra.mxu0 %v5524
    %5812 = vmatmul.bf16.gmra.mxu0 %v5646
    %v5813 = vpop.f32.mrf.mxu0
    %v5814 = vadd.f32 %v5643, %v5813
    %v5815 = vpop.f32.mrf.mxu0
    %5816 = vdwg.mxu0
    %5817 = vmatpush.bf16.msra.mxu0 0
    %5818 = vmatpush.bf16.msra.mxu0 0
    %5819 = vmatpush.bf16.msra.mxu0 0
    %5820 = vmatpush.bf16.msra.mxu0 0
    %5821 = vmatpush.bf16.msra.mxu0 0
    %5822 = vmatpush.bf16.msra.mxu0 0
    %5823 = vmatpush.bf16.msra.mxu0 %v5589
    %5824 = vmatpush.bf16.msra.mxu0 %v5525
    %5825 = vmatmul.bf16.gmra.mxu0 %v5646
    %v5826 = vpop.f32.mrf.mxu0
    %v5827 = vadd.f32 %v5643, %v5826
    %v5828 = vpop.f32.mrf.mxu0
    %5829 = vdwg.mxu0
    %5830 = vmatpush.bf16.msra.mxu0 0
    %5831 = vmatpush.bf16.msra.mxu0 0
    %5832 = vmatpush.bf16.msra.mxu0 0
    %5833 = vmatpush.bf16.msra.mxu0 0
    %5834 = vmatpush.bf16.msra.mxu0 0
    %5835 = vmatpush.bf16.msra.mxu0 0
    %5836 = vmatpush.bf16.msra.mxu0 %v5590
    %5837 = vmatpush.bf16.msra.mxu0 %v5526
    %5838 = vmatmul.bf16.gmra.mxu0 %v5646
    %v5839 = vpop.f32.mrf.mxu0
    %v5840 = vadd.f32 %v5643, %v5839
    %v5841 = vpop.f32.mrf.mxu0
    %5842 = vdwg.mxu0
    %5843 = vmatpush.bf16.msra.mxu0 0
    %5844 = vmatpush.bf16.msra.mxu0 0
    %5845 = vmatpush.bf16.msra.mxu0 0
    %5846 = vmatpush.bf16.msra.mxu0 0
    %5847 = vmatpush.bf16.msra.mxu0 0
    %5848 = vmatpush.bf16.msra.mxu0 0
    %5849 = vmatpush.bf16.msra.mxu0 %v5591
    %5850 = vmatpush.bf16.msra.mxu0 %v5527
    %5851 = vmatmul.bf16.gmra.mxu0 %v5646
    %v5852 = vpop.f32.mrf.mxu0
    %v5853 = vadd.f32 %v5643, %v5852
    %v5854 = vpop.f32.mrf.mxu0
    %5855 = vdwg.mxu0
    %5856 = vmatpush.bf16.msra.mxu0 0
    %5857 = vmatpush.bf16.msra.mxu0 0
    %5858 = vmatpush.bf16.msra.mxu0 0
    %5859 = vmatpush.bf16.msra.mxu0 0
    %5860 = vmatpush.bf16.msra.mxu0 0
    %5861 = vmatpush.bf16.msra.mxu0 0
    %5862 = vmatpush.bf16.msra.mxu0 %v5592
    %5863 = vmatpush.bf16.msra.mxu0 %v5528
    %5864 = vmatmul.bf16.gmra.mxu0 %v5646
    %v5865 = vpop.f32.mrf.mxu0
    %v5866 = vadd.f32 %v5643, %v5865
    %v5867 = vpop.f32.mrf.mxu0
    %5868 = vdwg.mxu0
    %5869 = vmatpush.bf16.msra.mxu0 0
    %5870 = vmatpush.bf16.msra.mxu0 0
    %5871 = vmatpush.bf16.msra.mxu0 0
    %5872 = vmatpush.bf16.msra.mxu0 0
    %5873 = vmatpush.bf16.msra.mxu0 0
    %5874 = vmatpush.bf16.msra.mxu0 0
    %5875 = vmatpush.bf16.msra.mxu0 %v5593
    %5876 = vmatpush.bf16.msra.mxu0 %v5529
    %5877 = vmatmul.bf16.gmra.mxu0 %v5646
    %v5878 = vpop.f32.mrf.mxu0
    %v5879 = vadd.f32 %v5643, %v5878
    %v5880 = vpop.f32.mrf.mxu0
    %5881 = vdwg.mxu0
    %5882 = vmatpush.bf16.msra.mxu0 0
    %5883 = vmatpush.bf16.msra.mxu0 0
    %5884 = vmatpush.bf16.msra.mxu0 0
    %5885 = vmatpush.bf16.msra.mxu0 0
    %5886 = vmatpush.bf16.msra.mxu0 0
    %5887 = vmatpush.bf16.msra.mxu0 0
    %5888 = vmatpush.bf16.msra.mxu0 %v5594
    %5889 = vmatpush.bf16.msra.mxu0 %v5530
    %5890 = vmatmul.bf16.gmra.mxu0 %v5646
    %v5891 = vpop.f32.mrf.mxu0
    %v5892 = vadd.f32 %v5643, %v5891
    %v5893 = vpop.f32.mrf.mxu0
    %5894 = vdwg.mxu0
    %5895 = vmatpush.bf16.msra.mxu0 0
    %5896 = vmatpush.bf16.msra.mxu0 0
    %5897 = vmatpush.bf16.msra.mxu0 0
    %5898 = vmatpush.bf16.msra.mxu0 0
    %5899 = vmatpush.bf16.msra.mxu0 0
    %5900 = vmatpush.bf16.msra.mxu0 0
    %5901 = vmatpush.bf16.msra.mxu0 %v5595
    %5902 = vmatpush.bf16.msra.mxu0 %v5531
    %5903 = vmatmul.bf16.gmra.mxu0 %v5646
    %v5904 = vpop.f32.mrf.mxu0
    %v5905 = vadd.f32 %v5643, %v5904
    %v5906 = vpop.f32.mrf.mxu0
    %5907 = vdwg.mxu0
    %5908 = vmatpush.bf16.msra.mxu0 0
    %5909 = vmatpush.bf16.msra.mxu0 0
    %5910 = vmatpush.bf16.msra.mxu0 0
    %5911 = vmatpush.bf16.msra.mxu0 0
    %5912 = vmatpush.bf16.msra.mxu0 0
    %5913 = vmatpush.bf16.msra.mxu0 0
    %5914 = vmatpush.bf16.msra.mxu0 %v5596
    %5915 = vmatpush.bf16.msra.mxu0 %v5532
    %5916 = vmatmul.bf16.gmra.mxu0 %v5646
    %v5917 = vpop.f32.mrf.mxu0
    %v5918 = vadd.f32 %v5643, %v5917
    %v5919 = vpop.f32.mrf.mxu0
    %5920 = vdwg.mxu0
    %5921 = vmatpush.bf16.msra.mxu0 0
    %5922 = vmatpush.bf16.msra.mxu0 0
    %5923 = vmatpush.bf16.msra.mxu0 0
    %5924 = vmatpush.bf16.msra.mxu0 0
    %5925 = vmatpush.bf16.msra.mxu0 0
    %5926 = vmatpush.bf16.msra.mxu0 0
    %5927 = vmatpush.bf16.msra.mxu0 %v5597
    %5928 = vmatpush.bf16.msra.mxu0 %v5533
    %5929 = vmatmul.bf16.gmra.mxu0 %v5646
    %v5930 = vpop.f32.mrf.mxu0
    %v5931 = vadd.f32 %v5643, %v5930
    %v5932 = vpop.f32.mrf.mxu0
    %5933 = vdwg.mxu0
    %5934 = vmatpush.bf16.msra.mxu0 0
    %5935 = vmatpush.bf16.msra.mxu0 0
    %5936 = vmatpush.bf16.msra.mxu0 0
    %5937 = vmatpush.bf16.msra.mxu0 0
    %5938 = vmatpush.bf16.msra.mxu0 0
    %5939 = vmatpush.bf16.msra.mxu0 0
    %5940 = vmatpush.bf16.msra.mxu0 %v5598
    %5941 = vmatpush.bf16.msra.mxu0 %v5534
    %5942 = vmatmul.bf16.gmra.mxu0 %v5646
    %v5943 = vpop.f32.mrf.mxu0
    %v5944 = vadd.f32 %v5643, %v5943
    %v5945 = vpop.f32.mrf.mxu0
    %5946 = vdwg.mxu0
    %5947 = vmatpush.bf16.msra.mxu0 0
    %5948 = vmatpush.bf16.msra.mxu0 0
    %5949 = vmatpush.bf16.msra.mxu0 0
    %5950 = vmatpush.bf16.msra.mxu0 0
    %5951 = vmatpush.bf16.msra.mxu0 0
    %5952 = vmatpush.bf16.msra.mxu0 0
    %5953 = vmatpush.bf16.msra.mxu0 %v5599
    %5954 = vmatpush.bf16.msra.mxu0 %v5535
    %5955 = vmatmul.bf16.gmra.mxu0 %v5646
    %v5956 = vpop.f32.mrf.mxu0
    %v5957 = vadd.f32 %v5643, %v5956
    %v5958 = vpop.f32.mrf.mxu0
    %5959 = vdwg.mxu0
    %5960 = vmatpush.bf16.msra.mxu0 0
    %5961 = vmatpush.bf16.msra.mxu0 0
    %5962 = vmatpush.bf16.msra.mxu0 0
    %5963 = vmatpush.bf16.msra.mxu0 0
    %5964 = vmatpush.bf16.msra.mxu0 0
    %5965 = vmatpush.bf16.msra.mxu0 0
    %5966 = vmatpush.bf16.msra.mxu0 %v5600
    %5967 = vmatpush.bf16.msra.mxu0 %v5536
    %5968 = vmatmul.bf16.gmra.mxu0 %v5646
    %v5969 = vpop.f32.mrf.mxu0
    %v5970 = vadd.f32 %v5643, %v5969
    %v5971 = vpop.f32.mrf.mxu0
    %5972 = vdwg.mxu0
    %5973 = vmatpush.bf16.msra.mxu0 0
    %5974 = vmatpush.bf16.msra.mxu0 0
    %5975 = vmatpush.bf16.msra.mxu0 0
    %5976 = vmatpush.bf16.msra.mxu0 0
    %5977 = vmatpush.bf16.msra.mxu0 0
    %5978 = vmatpush.bf16.msra.mxu0 0
    %5979 = vmatpush.bf16.msra.mxu0 %v5601
    %5980 = vmatpush.bf16.msra.mxu0 %v5537
    %5981 = vmatmul.bf16.gmra.mxu0 %v5646
    %v5982 = vpop.f32.mrf.mxu0
    %v5983 = vadd.f32 %v5643, %v5982
    %v5984 = vpop.f32.mrf.mxu0
    %5985 = vdwg.mxu0
    %5986 = vmatpush.bf16.msra.mxu0 0
    %5987 = vmatpush.bf16.msra.mxu0 0
    %5988 = vmatpush.bf16.msra.mxu0 0
    %5989 = vmatpush.bf16.msra.mxu0 0
    %5990 = vmatpush.bf16.msra.mxu0 0
    %5991 = vmatpush.bf16.msra.mxu0 0
    %5992 = vmatpush.bf16.msra.mxu0 %v5602
    %5993 = vmatpush.bf16.msra.mxu0 %v5538
    %5994 = vmatmul.bf16.gmra.mxu0 %v5646
    %v5995 = vpop.f32.mrf.mxu0
    %v5996 = vadd.f32 %v5643, %v5995
    %v5997 = vpop.f32.mrf.mxu0
    %5998 = vdwg.mxu0
    %5999 = vmatpush.bf16.msra.mxu0 0
    %6000 = vmatpush.bf16.msra.mxu0 0
    %6001 = vmatpush.bf16.msra.mxu0 0
    %6002 = vmatpush.bf16.msra.mxu0 0
    %6003 = vmatpush.bf16.msra.mxu0 0
    %6004 = vmatpush.bf16.msra.mxu0 0
    %6005 = vmatpush.bf16.msra.mxu0 %v5603
    %6006 = vmatpush.bf16.msra.mxu0 %v5539
    %6007 = vmatmul.bf16.gmra.mxu0 %v5646
    %v6008 = vpop.f32.mrf.mxu0
    %v6009 = vadd.f32 %v5643, %v6008
    %v6010 = vpop.f32.mrf.mxu0
    %6011 = vdwg.mxu0
    %6012 = vmatpush.bf16.msra.mxu0 0
    %6013 = vmatpush.bf16.msra.mxu0 0
    %6014 = vmatpush.bf16.msra.mxu0 0
    %6015 = vmatpush.bf16.msra.mxu0 0
    %6016 = vmatpush.bf16.msra.mxu0 0
    %6017 = vmatpush.bf16.msra.mxu0 0
    %6018 = vmatpush.bf16.msra.mxu0 %v5604
    %6019 = vmatpush.bf16.msra.mxu0 %v5540
    %6020 = vmatmul.bf16.gmra.mxu0 %v5646
    %v6021 = vpop.f32.mrf.mxu0
    %v6022 = vadd.f32 %v5643, %v6021
    %v6023 = vpop.f32.mrf.mxu0
    %6024 = vdwg.mxu0
    %6025 = vmatpush.bf16.msra.mxu0 0
    %6026 = vmatpush.bf16.msra.mxu0 0
    %6027 = vmatpush.bf16.msra.mxu0 0
    %6028 = vmatpush.bf16.msra.mxu0 0
    %6029 = vmatpush.bf16.msra.mxu0 0
    %6030 = vmatpush.bf16.msra.mxu0 0
    %6031 = vmatpush.bf16.msra.mxu0 %v5605
    %6032 = vmatpush.bf16.msra.mxu0 %v5541
    %6033 = vmatmul.bf16.gmra.mxu0 %v5646
    %v6034 = vpop.f32.mrf.mxu0
    %v6035 = vadd.f32 %v5643, %v6034
    %v6036 = vpop.f32.mrf.mxu0
    %6037 = vdwg.mxu0
    %6038 = vmatpush.bf16.msra.mxu0 0
    %6039 = vmatpush.bf16.msra.mxu0 0
    %6040 = vmatpush.bf16.msra.mxu0 0
    %6041 = vmatpush.bf16.msra.mxu0 0
    %6042 = vmatpush.bf16.msra.mxu0 0
    %6043 = vmatpush.bf16.msra.mxu0 0
    %6044 = vmatpush.bf16.msra.mxu0 %v5606
    %6045 = vmatpush.bf16.msra.mxu0 %v5542
    %6046 = vmatmul.bf16.gmra.mxu0 %v5646
    %v6047 = vpop.f32.mrf.mxu0
    %v6048 = vadd.f32 %v5643, %v6047
    %v6049 = vpop.f32.mrf.mxu0
    %6050 = vdwg.mxu0
    %6051 = vmatpush.bf16.msra.mxu0 0
    %6052 = vmatpush.bf16.msra.mxu0 0
    %6053 = vmatpush.bf16.msra.mxu0 0
    %6054 = vmatpush.bf16.msra.mxu0 0
    %6055 = vmatpush.bf16.msra.mxu0 0
    %6056 = vmatpush.bf16.msra.mxu0 0
    %6057 = vmatpush.bf16.msra.mxu0 %v5607
    %6058 = vmatpush.bf16.msra.mxu0 %v5543
    %6059 = vmatmul.bf16.gmra.mxu0 %v5646
    %v6060 = vpop.f32.mrf.mxu0
    %v6061 = vadd.f32 %v5643, %v6060
    %v6062 = vpop.f32.mrf.mxu0
    %6063 = vdwg.mxu0
    %6064 = vmatpush.bf16.msra.mxu0 0
    %6065 = vmatpush.bf16.msra.mxu0 0
    %6066 = vmatpush.bf16.msra.mxu0 0
    %6067 = vmatpush.bf16.msra.mxu0 0
    %6068 = vmatpush.bf16.msra.mxu0 0
    %6069 = vmatpush.bf16.msra.mxu0 0
    %6070 = vmatpush.bf16.msra.mxu0 %v5608
    %6071 = vmatpush.bf16.msra.mxu0 %v5544
    %6072 = vmatmul.bf16.gmra.mxu0 %v5646
    %v6073 = vpop.f32.mrf.mxu0
    %v6074 = vadd.f32 %v5643, %v6073
    %v6075 = vpop.f32.mrf.mxu0
    %6076 = vdwg.mxu0
    %6077 = vmatpush.bf16.msra.mxu0 0
    %6078 = vmatpush.bf16.msra.mxu0 0
    %6079 = vmatpush.bf16.msra.mxu0 0
    %6080 = vmatpush.bf16.msra.mxu0 0
    %6081 = vmatpush.bf16.msra.mxu0 0
    %6082 = vmatpush.bf16.msra.mxu0 0
    %6083 = vmatpush.bf16.msra.mxu0 %v5609
    %6084 = vmatpush.bf16.msra.mxu0 %v5545
    %6085 = vmatmul.bf16.gmra.mxu0 %v5646
    %v6086 = vpop.f32.mrf.mxu0
    %v6087 = vadd.f32 %v5643, %v6086
    %v6088 = vpop.f32.mrf.mxu0
    %6089 = vdwg.mxu0
    %6090 = vmatpush.bf16.msra.mxu0 0
    %6091 = vmatpush.bf16.msra.mxu0 0
    %6092 = vmatpush.bf16.msra.mxu0 0
    %6093 = vmatpush.bf16.msra.mxu0 0
    %6094 = vmatpush.bf16.msra.mxu0 0
    %6095 = vmatpush.bf16.msra.mxu0 0
    %6096 = vmatpush.bf16.msra.mxu0 %v5610
    %6097 = vmatpush.bf16.msra.mxu0 %v5546
    %6098 = vmatmul.bf16.gmra.mxu0 %v5646
    %v6099 = vpop.f32.mrf.mxu0
    %v6100 = vadd.f32 %v5643, %v6099
    %v6101 = vpop.f32.mrf.mxu0
    %6102 = vdwg.mxu0
    %6103 = vmatpush.bf16.msra.mxu0 0
    %6104 = vmatpush.bf16.msra.mxu0 0
    %6105 = vmatpush.bf16.msra.mxu0 0
    %6106 = vmatpush.bf16.msra.mxu0 0
    %6107 = vmatpush.bf16.msra.mxu0 0
    %6108 = vmatpush.bf16.msra.mxu0 0
    %6109 = vmatpush.bf16.msra.mxu0 %v5611
    %6110 = vmatpush.bf16.msra.mxu0 %v5547
    %6111 = vmatmul.bf16.gmra.mxu0 %v5646
    %v6112 = vpop.f32.mrf.mxu0
    %v6113 = vadd.f32 %v5643, %v6112
    %v6114 = vpop.f32.mrf.mxu0
    %6115 = vdwg.mxu0
    %6116 = vmatpush.bf16.msra.mxu0 0
    %6117 = vmatpush.bf16.msra.mxu0 0
    %6118 = vmatpush.bf16.msra.mxu0 0
    %6119 = vmatpush.bf16.msra.mxu0 0
    %6120 = vmatpush.bf16.msra.mxu0 0
    %6121 = vmatpush.bf16.msra.mxu0 0
    %6122 = vmatpush.bf16.msra.mxu0 %v5612
    %6123 = vmatpush.bf16.msra.mxu0 %v5548
    %6124 = vmatmul.bf16.gmra.mxu0 %v5646
    %v6125 = vpop.f32.mrf.mxu0
    %v6126 = vadd.f32 %v5643, %v6125
    %v6127 = vpop.f32.mrf.mxu0
    %6128 = vdwg.mxu0
    %6129 = vmatpush.bf16.msra.mxu0 0
    %6130 = vmatpush.bf16.msra.mxu0 0
    %6131 = vmatpush.bf16.msra.mxu0 0
    %6132 = vmatpush.bf16.msra.mxu0 0
    %6133 = vmatpush.bf16.msra.mxu0 0
    %6134 = vmatpush.bf16.msra.mxu0 0
    %6135 = vmatpush.bf16.msra.mxu0 %v5613
    %6136 = vmatpush.bf16.msra.mxu0 %v5549
    %6137 = vmatmul.bf16.gmra.mxu0 %v5646
    %v6138 = vpop.f32.mrf.mxu0
    %v6139 = vadd.f32 %v5643, %v6138
    %v6140 = vpop.f32.mrf.mxu0
    %6141 = vdwg.mxu0
    %6142 = vmatpush.bf16.msra.mxu0 0
    %6143 = vmatpush.bf16.msra.mxu0 0
    %6144 = vmatpush.bf16.msra.mxu0 0
    %6145 = vmatpush.bf16.msra.mxu0 0
    %6146 = vmatpush.bf16.msra.mxu0 0
    %6147 = vmatpush.bf16.msra.mxu0 0
    %6148 = vmatpush.bf16.msra.mxu0 %v5614
    %6149 = vmatpush.bf16.msra.mxu0 %v5550
    %6150 = vmatmul.bf16.gmra.mxu0 %v5646
    %v6151 = vpop.f32.mrf.mxu0
    %v6152 = vadd.f32 %v5643, %v6151
    %v6153 = vpop.f32.mrf.mxu0
    %6154 = vdwg.mxu0
    %6155 = vmatpush.bf16.msra.mxu0 0
    %6156 = vmatpush.bf16.msra.mxu0 0
    %6157 = vmatpush.bf16.msra.mxu0 0
    %6158 = vmatpush.bf16.msra.mxu0 0
    %6159 = vmatpush.bf16.msra.mxu0 0
    %6160 = vmatpush.bf16.msra.mxu0 0
    %6161 = vmatpush.bf16.msra.mxu0 %v5615
    %6162 = vmatpush.bf16.msra.mxu0 %v5551
    %6163 = vmatmul.bf16.gmra.mxu0 %v5646
    %v6164 = vpop.f32.mrf.mxu0
    %v6165 = vadd.f32 %v5643, %v6164
    %v6166 = vpop.f32.mrf.mxu0
    %6167 = vdwg.mxu0
    %6168 = vmatpush.bf16.msra.mxu0 0
    %6169 = vmatpush.bf16.msra.mxu0 0
    %6170 = vmatpush.bf16.msra.mxu0 0
    %6171 = vmatpush.bf16.msra.mxu0 0
    %6172 = vmatpush.bf16.msra.mxu0 0
    %6173 = vmatpush.bf16.msra.mxu0 0
    %6174 = vmatpush.bf16.msra.mxu0 %v5616
    %6175 = vmatpush.bf16.msra.mxu0 %v5552
    %6176 = vmatmul.bf16.gmra.mxu0 %v5646
    %v6177 = vpop.f32.mrf.mxu0
    %v6178 = vadd.f32 %v5643, %v6177
    %v6179 = vpop.f32.mrf.mxu0
    %6180 = vdwg.mxu0
    %6181 = vmatpush.bf16.msra.mxu0 0
    %6182 = vmatpush.bf16.msra.mxu0 0
    %6183 = vmatpush.bf16.msra.mxu0 0
    %6184 = vmatpush.bf16.msra.mxu0 0
    %6185 = vmatpush.bf16.msra.mxu0 0
    %6186 = vmatpush.bf16.msra.mxu0 0
    %6187 = vmatpush.bf16.msra.mxu0 %v5617
    %6188 = vmatpush.bf16.msra.mxu0 %v5553
    %6189 = vmatmul.bf16.gmra.mxu0 %v5646
    %v6190 = vpop.f32.mrf.mxu0
    %v6191 = vadd.f32 %v5643, %v6190
    %v6192 = vpop.f32.mrf.mxu0
    %6193 = vdwg.mxu0
    %6194 = vmatpush.bf16.msra.mxu0 0
    %6195 = vmatpush.bf16.msra.mxu0 0
    %6196 = vmatpush.bf16.msra.mxu0 0
    %6197 = vmatpush.bf16.msra.mxu0 0
    %6198 = vmatpush.bf16.msra.mxu0 0
    %6199 = vmatpush.bf16.msra.mxu0 0
    %6200 = vmatpush.bf16.msra.mxu0 %v5618
    %6201 = vmatpush.bf16.msra.mxu0 %v5554
    %6202 = vmatmul.bf16.gmra.mxu0 %v5646
    %v6203 = vpop.f32.mrf.mxu0
    %v6204 = vadd.f32 %v5643, %v6203
    %v6205 = vpop.f32.mrf.mxu0
    %6206 = vdwg.mxu0
    %6207 = vmatpush.bf16.msra.mxu0 0
    %6208 = vmatpush.bf16.msra.mxu0 0
    %6209 = vmatpush.bf16.msra.mxu0 0
    %6210 = vmatpush.bf16.msra.mxu0 0
    %6211 = vmatpush.bf16.msra.mxu0 0
    %6212 = vmatpush.bf16.msra.mxu0 0
    %6213 = vmatpush.bf16.msra.mxu0 %v5619
    %6214 = vmatpush.bf16.msra.mxu0 %v5555
    %6215 = vmatmul.bf16.gmra.mxu0 %v5646
    %v6216 = vpop.f32.mrf.mxu0
    %v6217 = vadd.f32 %v5643, %v6216
    %v6218 = vpop.f32.mrf.mxu0
    %6219 = vdwg.mxu0
    %6220 = vmatpush.bf16.msra.mxu0 0
    %6221 = vmatpush.bf16.msra.mxu0 0
    %6222 = vmatpush.bf16.msra.mxu0 0
    %6223 = vmatpush.bf16.msra.mxu0 0
    %6224 = vmatpush.bf16.msra.mxu0 0
    %6225 = vmatpush.bf16.msra.mxu0 0
    %6226 = vmatpush.bf16.msra.mxu0 %v5620
    %6227 = vmatpush.bf16.msra.mxu0 %v5556
    %6228 = vmatmul.bf16.gmra.mxu0 %v5646
    %v6229 = vpop.f32.mrf.mxu0
    %v6230 = vadd.f32 %v5643, %v6229
    %v6231 = vpop.f32.mrf.mxu0
    %6232 = vdwg.mxu0
    %6233 = vmatpush.bf16.msra.mxu0 0
    %6234 = vmatpush.bf16.msra.mxu0 0
    %6235 = vmatpush.bf16.msra.mxu0 0
    %6236 = vmatpush.bf16.msra.mxu0 0
    %6237 = vmatpush.bf16.msra.mxu0 0
    %6238 = vmatpush.bf16.msra.mxu0 0
    %6239 = vmatpush.bf16.msra.mxu0 %v5621
    %6240 = vmatpush.bf16.msra.mxu0 %v5557
    %6241 = vmatmul.bf16.gmra.mxu0 %v5646
    %v6242 = vpop.f32.mrf.mxu0
    %v6243 = vadd.f32 %v5643, %v6242
    %v6244 = vpop.f32.mrf.mxu0
    %6245 = vdwg.mxu0
    %6246 = vmatpush.bf16.msra.mxu0 0
    %6247 = vmatpush.bf16.msra.mxu0 0
    %6248 = vmatpush.bf16.msra.mxu0 0
    %6249 = vmatpush.bf16.msra.mxu0 0
    %6250 = vmatpush.bf16.msra.mxu0 0
    %6251 = vmatpush.bf16.msra.mxu0 0
    %6252 = vmatpush.bf16.msra.mxu0 %v5622
    %6253 = vmatpush.bf16.msra.mxu0 %v5558
    %6254 = vmatmul.bf16.gmra.mxu0 %v5646
    %v6255 = vpop.f32.mrf.mxu0
    %v6256 = vadd.f32 %v5643, %v6255
    %v6257 = vpop.f32.mrf.mxu0
    %6258 = vdwg.mxu0
    %6259 = vmatpush.bf16.msra.mxu0 0
    %6260 = vmatpush.bf16.msra.mxu0 0
    %6261 = vmatpush.bf16.msra.mxu0 0
    %6262 = vmatpush.bf16.msra.mxu0 0
    %6263 = vmatpush.bf16.msra.mxu0 0
    %6264 = vmatpush.bf16.msra.mxu0 0
    %6265 = vmatpush.bf16.msra.mxu0 %v5623
    %6266 = vmatpush.bf16.msra.mxu0 %v5559
    %6267 = vmatmul.bf16.gmra.mxu0 %v5646
    %v6268 = vpop.f32.mrf.mxu0
    %v6269 = vadd.f32 %v5643, %v6268
    %v6270 = vpop.f32.mrf.mxu0
    %6271 = vdwg.mxu0
    %6272 = vmatpush.bf16.msra.mxu0 0
    %6273 = vmatpush.bf16.msra.mxu0 0
    %6274 = vmatpush.bf16.msra.mxu0 0
    %6275 = vmatpush.bf16.msra.mxu0 0
    %6276 = vmatpush.bf16.msra.mxu0 0
    %6277 = vmatpush.bf16.msra.mxu0 0
    %6278 = vmatpush.bf16.msra.mxu0 %v5624
    %6279 = vmatpush.bf16.msra.mxu0 %v5560
    %6280 = vmatmul.bf16.gmra.mxu0 %v5646
    %v6281 = vpop.f32.mrf.mxu0
    %v6282 = vadd.f32 %v5643, %v6281
    %v6283 = vpop.f32.mrf.mxu0
    %6284 = vdwg.mxu0
    %6285 = vmatpush.bf16.msra.mxu0 0
    %6286 = vmatpush.bf16.msra.mxu0 0
    %6287 = vmatpush.bf16.msra.mxu0 0
    %6288 = vmatpush.bf16.msra.mxu0 0
    %6289 = vmatpush.bf16.msra.mxu0 0
    %6290 = vmatpush.bf16.msra.mxu0 0
    %6291 = vmatpush.bf16.msra.mxu0 %v5625
    %6292 = vmatpush.bf16.msra.mxu0 %v5561
    %6293 = vmatmul.bf16.gmra.mxu0 %v5646
    %v6294 = vpop.f32.mrf.mxu0
    %v6295 = vadd.f32 %v5643, %v6294
    %v6296 = vpop.f32.mrf.mxu0
    %6297 = vdwg.mxu0
    %6298 = vmatpush.bf16.msra.mxu0 0
    %6299 = vmatpush.bf16.msra.mxu0 0
    %6300 = vmatpush.bf16.msra.mxu0 0
    %6301 = vmatpush.bf16.msra.mxu0 0
    %6302 = vmatpush.bf16.msra.mxu0 0
    %6303 = vmatpush.bf16.msra.mxu0 0
    %6304 = vmatpush.bf16.msra.mxu0 %v5626
    %6305 = vmatpush.bf16.msra.mxu0 %v5562
    %6306 = vmatmul.bf16.gmra.mxu0 %v5646
    %v6307 = vpop.f32.mrf.mxu0
    %v6308 = vadd.f32 %v5643, %v6307
    %v6309 = vpop.f32.mrf.mxu0
    %6310 = vdwg.mxu0
    %6311 = vmatpush.bf16.msra.mxu0 0
    %6312 = vmatpush.bf16.msra.mxu0 0
    %6313 = vmatpush.bf16.msra.mxu0 0
    %6314 = vmatpush.bf16.msra.mxu0 0
    %6315 = vmatpush.bf16.msra.mxu0 0
    %6316 = vmatpush.bf16.msra.mxu0 0
    %6317 = vmatpush.bf16.msra.mxu0 %v5627
    %6318 = vmatpush.bf16.msra.mxu0 %v5563
    %6319 = vmatmul.bf16.gmra.mxu0 %v5646
    %v6320 = vpop.f32.mrf.mxu0
    %v6321 = vadd.f32 %v5643, %v6320
    %v6322 = vpop.f32.mrf.mxu0
    %6323 = vdwg.mxu0
    %6324 = vmatpush.bf16.msra.mxu0 0
    %6325 = vmatpush.bf16.msra.mxu0 0
    %6326 = vmatpush.bf16.msra.mxu0 0
    %6327 = vmatpush.bf16.msra.mxu0 0
    %6328 = vmatpush.bf16.msra.mxu0 0
    %6329 = vmatpush.bf16.msra.mxu0 0
    %6330 = vmatpush.bf16.msra.mxu0 %v5628
    %6331 = vmatpush.bf16.msra.mxu0 %v5564
    %6332 = vmatmul.bf16.gmra.mxu0 %v5646
    %v6333 = vpop.f32.mrf.mxu0
    %v6334 = vadd.f32 %v5643, %v6333
    %v6335 = vpop.f32.mrf.mxu0
    %6336 = vdwg.mxu0
    %6337 = vmatpush.bf16.msra.mxu0 0
    %6338 = vmatpush.bf16.msra.mxu0 0
    %6339 = vmatpush.bf16.msra.mxu0 0
    %6340 = vmatpush.bf16.msra.mxu0 0
    %6341 = vmatpush.bf16.msra.mxu0 0
    %6342 = vmatpush.bf16.msra.mxu0 0
    %6343 = vmatpush.bf16.msra.mxu0 %v5629
    %6344 = vmatpush.bf16.msra.mxu0 %v5565
    %6345 = vmatmul.bf16.gmra.mxu0 %v5646
    %v6346 = vpop.f32.mrf.mxu0
    %v6347 = vadd.f32 %v5643, %v6346
    %v6348 = vpop.f32.mrf.mxu0
    %6349 = vdwg.mxu0
    %6350 = vmatpush.bf16.msra.mxu0 0
    %6351 = vmatpush.bf16.msra.mxu0 0
    %6352 = vmatpush.bf16.msra.mxu0 0
    %6353 = vmatpush.bf16.msra.mxu0 0
    %6354 = vmatpush.bf16.msra.mxu0 0
    %6355 = vmatpush.bf16.msra.mxu0 0
    %6356 = vmatpush.bf16.msra.mxu0 %v5630
    %6357 = vmatpush.bf16.msra.mxu0 %v5566
    %6358 = vmatmul.bf16.gmra.mxu0 %v5646
    %v6359 = vpop.f32.mrf.mxu0
    %v6360 = vadd.f32 %v5643, %v6359
    %v6361 = vpop.f32.mrf.mxu0
    %6362 = vdwg.mxu0
    %6363 = vmatpush.bf16.msra.mxu0 0
    %6364 = vmatpush.bf16.msra.mxu0 0
    %6365 = vmatpush.bf16.msra.mxu0 0
    %6366 = vmatpush.bf16.msra.mxu0 0
    %6367 = vmatpush.bf16.msra.mxu0 0
    %6368 = vmatpush.bf16.msra.mxu0 0
    %6369 = vmatpush.bf16.msra.mxu0 %v5631
    %6370 = vmatpush.bf16.msra.mxu0 %v5567
    %6371 = vmatmul.bf16.gmra.mxu0 %v5646
    %v6372 = vpop.f32.mrf.mxu0
    %v6373 = vadd.f32 %v5643, %v6372
    %v6374 = vpop.f32.mrf.mxu0
    %6375 = vdwg.mxu0
    %6376 = vmatpush.bf16.msra.mxu0 0
    %6377 = vmatpush.bf16.msra.mxu0 0
    %6378 = vmatpush.bf16.msra.mxu0 0
    %6379 = vmatpush.bf16.msra.mxu0 0
    %6380 = vmatpush.bf16.msra.mxu0 0
    %6381 = vmatpush.bf16.msra.mxu0 0
    %6382 = vmatpush.bf16.msra.mxu0 %v5632
    %6383 = vmatpush.bf16.msra.mxu0 %v5568
    %6384 = vmatmul.bf16.gmra.mxu0 %v5646
    %v6385 = vpop.f32.mrf.mxu0
    %v6386 = vadd.f32 %v5643, %v6385
    %v6387 = vpop.f32.mrf.mxu0
    %6388 = vdwg.mxu0
    %6389 = vmatpush.bf16.msra.mxu0 0
    %6390 = vmatpush.bf16.msra.mxu0 0
    %6391 = vmatpush.bf16.msra.mxu0 0
    %6392 = vmatpush.bf16.msra.mxu0 0
    %6393 = vmatpush.bf16.msra.mxu0 0
    %6394 = vmatpush.bf16.msra.mxu0 0
    %6395 = vmatpush.bf16.msra.mxu0 %v5633
    %6396 = vmatpush.bf16.msra.mxu0 %v5569
    %6397 = vmatmul.bf16.gmra.mxu0 %v5646
    %v6398 = vpop.f32.mrf.mxu0
    %v6399 = vadd.f32 %v5643, %v6398
    %v6400 = vpop.f32.mrf.mxu0
    %6401 = vdwg.mxu0
    %6402 = vmatpush.bf16.msra.mxu0 0
    %6403 = vmatpush.bf16.msra.mxu0 0
    %6404 = vmatpush.bf16.msra.mxu0 0
    %6405 = vmatpush.bf16.msra.mxu0 0
    %6406 = vmatpush.bf16.msra.mxu0 0
    %6407 = vmatpush.bf16.msra.mxu0 0
    %6408 = vmatpush.bf16.msra.mxu0 %v5634
    %6409 = vmatpush.bf16.msra.mxu0 %v5570
    %6410 = vmatmul.bf16.gmra.mxu0 %v5646
    %v6411 = vpop.f32.mrf.mxu0
    %v6412 = vadd.f32 %v5643, %v6411
    %v6413 = vpop.f32.mrf.mxu0
    %6414 = vdwg.mxu0
    %6415 = vmatpush.bf16.msra.mxu0 0
    %6416 = vmatpush.bf16.msra.mxu0 0
    %6417 = vmatpush.bf16.msra.mxu0 0
    %6418 = vmatpush.bf16.msra.mxu0 0
    %6419 = vmatpush.bf16.msra.mxu0 0
    %6420 = vmatpush.bf16.msra.mxu0 0
    %6421 = vmatpush.bf16.msra.mxu0 %v5635
    %6422 = vmatpush.bf16.msra.mxu0 %v5571
    %6423 = vmatmul.bf16.gmra.mxu0 %v5646
    %v6424 = vpop.f32.mrf.mxu0
    %v6425 = vadd.f32 %v5643, %v6424
    %v6426 = vpop.f32.mrf.mxu0
    %6427 = vdwg.mxu0
    %6428 = vmatpush.bf16.msra.mxu0 0
    %6429 = vmatpush.bf16.msra.mxu0 0
    %6430 = vmatpush.bf16.msra.mxu0 0
    %6431 = vmatpush.bf16.msra.mxu0 0
    %6432 = vmatpush.bf16.msra.mxu0 0
    %6433 = vmatpush.bf16.msra.mxu0 0
    %6434 = vmatpush.bf16.msra.mxu0 %v5636
    %6435 = vmatpush.bf16.msra.mxu0 %v5572
    %6436 = vmatmul.bf16.gmra.mxu0 %v5646
    %v6437 = vpop.f32.mrf.mxu0
    %v6438 = vadd.f32 %v5643, %v6437
    %v6439 = vpop.f32.mrf.mxu0
    %6440 = vdwg.mxu0
    %6441 = vmatpush.bf16.msra.mxu0 0
    %6442 = vmatpush.bf16.msra.mxu0 0
    %6443 = vmatpush.bf16.msra.mxu0 0
    %6444 = vmatpush.bf16.msra.mxu0 0
    %6445 = vmatpush.bf16.msra.mxu0 0
    %6446 = vmatpush.bf16.msra.mxu0 0
    %6447 = vmatpush.bf16.msra.mxu0 %v5637
    %6448 = vmatpush.bf16.msra.mxu0 %v5573
    %6449 = vmatmul.bf16.gmra.mxu0 %v5646
    %v6450 = vpop.f32.mrf.mxu0
    %v6451 = vadd.f32 %v5643, %v6450
    %v6452 = vpop.f32.mrf.mxu0
    %6453 = vdwg.mxu0
    %6454 = vmatpush.bf16.msra.mxu0 0
    %6455 = vmatpush.bf16.msra.mxu0 0
    %6456 = vmatpush.bf16.msra.mxu0 0
    %6457 = vmatpush.bf16.msra.mxu0 0
    %6458 = vmatpush.bf16.msra.mxu0 0
    %6459 = vmatpush.bf16.msra.mxu0 0
    %6460 = vmatpush.bf16.msra.mxu0 %v5638
    %6461 = vmatpush.bf16.msra.mxu0 %v5574
    %6462 = vmatmul.bf16.gmra.mxu0 %v5646
    %v6463 = vpop.f32.mrf.mxu0
    %v6464 = vadd.f32 %v5643, %v6463
    %v6465 = vpop.f32.mrf.mxu0
    %6466 = vdwg.mxu0
    %6467 = vmatpush.bf16.msra.mxu0 0
    %6468 = vmatpush.bf16.msra.mxu0 0
    %6469 = vmatpush.bf16.msra.mxu0 0
    %6470 = vmatpush.bf16.msra.mxu0 0
    %6471 = vmatpush.bf16.msra.mxu0 0
    %6472 = vmatpush.bf16.msra.mxu0 0
    %6473 = vmatpush.bf16.msra.mxu0 %v5639
    %6474 = vmatpush.bf16.msra.mxu0 %v5575
    %6475 = vmatmul.bf16.gmra.mxu0 %v5646
    %v6476 = vpop.f32.mrf.mxu0
    %v6477 = vadd.f32 %v5643, %v6476
    %v6478 = vpop.f32.mrf.mxu0
    %6479 = vdwg.mxu0
    %v6544 = vrot.slane %v5671, 6
    %v6545 = vrot.slane %v5684, 4
    %v6546 = vrot.slane %v5697, 2
    %v6547 = vrot.slane %v5723, 6
    %v6548 = vrot.slane %v5736, 4
    %v6549 = vrot.slane %v5749, 2
    %v6550 = vrot.slane %v5775, 6
    %v6551 = vrot.slane %v5788, 4
    %v6552 = vrot.slane %v5801, 2
    %v6553 = vrot.slane %v5827, 6
    %v6554 = vrot.slane %v5840, 4
    %v6555 = vrot.slane %v5853, 2
    %v6556 = vrot.slane %v5879, 6
    %v6557 = vrot.slane %v5892, 4
    %v6558 = vrot.slane %v5905, 2
    %v6559 = vrot.slane %v5931, 6
    %v6560 = vrot.slane %v5944, 4
    %v6561 = vrot.slane %v5957, 2
    %v6562 = vrot.slane %v5983, 6
    %v6563 = vrot.slane %v5996, 4
    %v6564 = vrot.slane %v6009, 2
    %v6565 = vrot.slane %v6035, 6
    %v6566 = vrot.slane %v6048, 4
    %v6567 = vrot.slane %v6061, 2
    %v6568 = vrot.slane %v6087, 6
    %v6569 = vrot.slane %v6100, 4
    %v6570 = vrot.slane %v6113, 2
    %v6571 = vrot.slane %v6139, 6
    %v6572 = vrot.slane %v6152, 4
    %v6573 = vrot.slane %v6165, 2
    %v6574 = vrot.slane %v6191, 6
    %v6575 = vrot.slane %v6204, 4
    %v6576 = vrot.slane %v6217, 2
    %v6577 = vrot.slane %v6243, 6
    %v6578 = vrot.slane %v6256, 4
    %v6579 = vrot.slane %v6269, 2
    %v6580 = vrot.slane %v6295, 6
    %v6581 = vrot.slane %v6308, 4
    %v6582 = vrot.slane %v6321, 2
    %v6583 = vrot.slane %v6347, 6
    %v6584 = vrot.slane %v6360, 4
    %v6585 = vrot.slane %v6373, 2
    %v6586 = vrot.slane %v6399, 6
    %v6587 = vrot.slane %v6412, 4
    %v6588 = vrot.slane %v6425, 2
    %v6589 = vrot.slane %v6451, 6
    %v6590 = vrot.slane %v6464, 4
    %v6591 = vrot.slane %v6477, 2
    %vm6592 = vcmask 1041408
    %v6593 = vsel %vm6592, %v5658, %v6544
    %vm6594 = vcmask 1045508
    %v6595 = vsel %vm6594, %v6545, %v6546
    %vm6596 = vcmask 1043456
    %v6597 = vsel %vm6596, %v6593, %v6595
    %v6598 = vsel %vm6592, %v5710, %v6547
    %v6599 = vsel %vm6594, %v6548, %v6549
    %v6600 = vsel %vm6596, %v6598, %v6599
    %v6601 = vsel %vm6592, %v5762, %v6550
    %v6602 = vsel %vm6594, %v6551, %v6552
    %v6603 = vsel %vm6596, %v6601, %v6602
    %v6604 = vsel %vm6592, %v5814, %v6553
    %v6605 = vsel %vm6594, %v6554, %v6555
    %v6606 = vsel %vm6596, %v6604, %v6605
    %v6607 = vsel %vm6592, %v5866, %v6556
    %v6608 = vsel %vm6594, %v6557, %v6558
    %v6609 = vsel %vm6596, %v6607, %v6608
    %v6610 = vsel %vm6592, %v5918, %v6559
    %v6611 = vsel %vm6594, %v6560, %v6561
    %v6612 = vsel %vm6596, %v6610, %v6611
    %v6613 = vsel %vm6592, %v5970, %v6562
    %v6614 = vsel %vm6594, %v6563, %v6564
    %v6615 = vsel %vm6596, %v6613, %v6614
    %v6616 = vsel %vm6592, %v6022, %v6565
    %v6617 = vsel %vm6594, %v6566, %v6567
    %v6618 = vsel %vm6596, %v6616, %v6617
    %v6619 = vsel %vm6592, %v6074, %v6568
    %v6620 = vsel %vm6594, %v6569, %v6570
    %v6621 = vsel %vm6596, %v6619, %v6620
    %v6622 = vsel %vm6592, %v6126, %v6571
    %v6623 = vsel %vm6594, %v6572, %v6573
    %v6624 = vsel %vm6596, %v6622, %v6623
    %v6625 = vsel %vm6592, %v6178, %v6574
    %v6626 = vsel %vm6594, %v6575, %v6576
    %v6627 = vsel %vm6596, %v6625, %v6626
    %v6628 = vsel %vm6592, %v6230, %v6577
    %v6629 = vsel %vm6594, %v6578, %v6579
    %v6630 = vsel %vm6596, %v6628, %v6629
    %v6631 = vsel %vm6592, %v6282, %v6580
    %v6632 = vsel %vm6594, %v6581, %v6582
    %v6633 = vsel %vm6596, %v6631, %v6632
    %v6634 = vsel %vm6592, %v6334, %v6583
    %v6635 = vsel %vm6594, %v6584, %v6585
    %v6636 = vsel %vm6596, %v6634, %v6635
    %v6637 = vsel %vm6592, %v6386, %v6586
    %v6638 = vsel %vm6594, %v6587, %v6588
    %v6639 = vsel %vm6596, %v6637, %v6638
    %v6640 = vsel %vm6592, %v6438, %v6589
    %v6641 = vsel %vm6594, %v6590, %v6591
    %v6642 = vsel %vm6596, %v6640, %v6641
    %6659 = vst [vmem:[#allocation5] sm:$0xff] %v6597
    %6660 = vst [vmem:[#allocation5 + $0x8] sm:$0xff] %v6600
    %6661 = vst [vmem:[#allocation5 + $0x10] sm:$0xff] %v6603
    %6662 = vst [vmem:[#allocation5 + $0x18] sm:$0xff] %v6606
    %6663 = vst [vmem:[#allocation5 + $0x20] sm:$0xff] %v6609
    %6664 = vst [vmem:[#allocation5 + $0x28] sm:$0xff] %v6612
    %6665 = vst [vmem:[#allocation5 + $0x30] sm:$0xff] %v6615
    %6666 = vst [vmem:[#allocation5 + $0x38] sm:$0xff] %v6618
    %6667 = vst [vmem:[#allocation5 + $0x40] sm:$0xff] %v6621
    %6668 = vst [vmem:[#allocation5 + $0x48] sm:$0xff] %v6624
    %6669 = vst [vmem:[#allocation5 + $0x50] sm:$0xff] %v6627
    %6670 = vst [vmem:[#allocation5 + $0x58] sm:$0xff] %v6630
    %6671 = vst [vmem:[#allocation5 + $0x60] sm:$0xff] %v6633
    %6672 = vst [vmem:[#allocation5 + $0x68] sm:$0xff] %v6636
    %6673 = vst [vmem:[#allocation5 + $0x70] sm:$0xff] %v6639
    %6674 = vst [vmem:[#allocation5 + $0x78] sm:$0xff] %v6642
    // Predicated region
    $region22: #{tpu_custom_call.1} parent=1 // pred_check
      _
    $region23: #{tpu_custom_call.1} parent=1 // pred_check_branch
      %6676 = sbr.rel (0) target = $region25
    $region24: #{tpu_custom_call.1} parent=1 // pred_region
      %6678 = vsyncadd [#allocation4], 0
      %s6680 = sshll.u32 [#allocation5], 4
      %s6681 = int_to_ptr.vmem [resolvable:$true] %s6680
      %s6682 = sshll.u32 %s4, 4
      %s6683 = int_to_ptr.hbm [resolvable:$true] %s6682
      %6685 = dma.vmem_to_hbm [thread:$0]  %s6681, 2048, %s6683, [#allocation4]
    $region25: #{tpu_custom_call.1} parent=1 // pred_fallthru
      _
    // Predicated region
    $region26: #{tpu_custom_call.1} parent=1 // pred_check
      _
    $region27: #{tpu_custom_call.1} parent=1 // pred_check_branch
      %6687 = sbr.rel (0) target = $region29
    $region28: #{tpu_custom_call.1} parent=1 // pred_region
      %6689 = dma.done [#allocation4], 2048
    $region29: #{tpu_custom_call.1} parent=1 // pred_fallthru
      _
    %6690 = vsyncpa [#allocation3], 1
    %6691 = vsyncpa [#allocation4], 1

</llo_original>
